<compile_context>
chip_gen: v5e
topology: v5e:2x2
jax: 0.10.0
libtpu: 0.0.40
codegen_flags: <defaults>
</compile_context>

<pallas_src>
import functools

import jax
import jax.numpy as jnp
from jax import lax
from jax.experimental import pallas as pl
from jax.experimental.pallas import tpu as pltpu


def gnconv_kernel(x_ref, w_in_ref, b_in_ref, wdw_ref, bdw_ref, mask_ref,
                  w_out_ref, b_out_ref, o_ref, pad_ref, *, dim, W, K, interior_off):
    B = x_ref.shape[0]
    HW = x_ref.shape[2]

    # Zero the (small, lane-dense) pad scratch once per grid step.  The interior is
    # fully overwritten per image below; only the halo rows / guard lanes must stay
    # zero.  No program_id==0 guard: under dimension_semantics=("parallel",) a second
    # TensorCore (megacore) starts at a non-zero program id and would never zero its
    # own scratch.
    pad_ref[...] = jnp.zeros_like(pad_ref)

    for b in range(B):
        # --- conv_in: fused 1x1 conv == one channels-major MXU matmul (bf16, f32 acc) ---
        proj = jnp.dot(w_in_ref[...], x_ref[b],
                       preferred_element_type=jnp.float32) + b_in_ref[...]   # (2*dim, HW)
        pwa = proj[:dim, :]                                                   # (dim, HW)
        abc = proj[dim:, :]                                                   # (dim, HW)

        # --- depthwise 7x7 conv, padding=3 ---
        # abc goes into a flat, row-padded scratch:
        #   [P guard lanes][P zero rows][H*W interior][P zero rows][P guard lanes],
        # all with row stride W, channels on sublanes (fully lane-dense).
        pad_ref[:, interior_off:interior_off + HW] = abc

        # Tap (dh, dw) for output position p = h*W + w reads flat index dh*W + dw + p.
        # Rows out of range hit the zero rows; columns that wrap a row boundary are
        # killed by the per-dw lane mask.  The mask depends only on dw, so it is
        # factored out of the inner dh sum (one mask multiply per dw).
        acc = None
        for dw in range(K):
            inner = None
            for dh in range(K):
                off = dh * W + dw
                tap = pad_ref[:, off:off + HW]                       # (dim, HW), lane-dense
                w_col = wdw_ref[:, dh * K + dw:dh * K + dw + 1]      # (dim, 1)
                term = tap * w_col
                inner = term if inner is None else inner + term
            contrib = inner * mask_ref[dw:dw + 1, :]                 # bcast over channels
            acc = contrib if acc is None else acc + contrib

        # Depthwise bias; self.scale == 1.0 in the module so the scaling mul is elided.
        dw_abc = acc + bdw_ref[...]

        # --- gate + conv_out: channels-major MXU matmul, result is already NCHW-flat ---
        gated = (pwa * dw_abc).astype(jnp.bfloat16)                  # (dim, HW)
        out = jnp.dot(w_out_ref[...], gated,
                      preferred_element_type=jnp.float32) + b_out_ref[...]    # (dim, HW)
        o_ref[b] = out


def gnconv(x_nchw, win_oihw, bin_, wdw_oihw, bdw, wout_oihw, bout, *, images_per_step=1):
    """GNConv forward.  Inputs are in PyTorch layouts (NCHW / OIHW)."""
    N, Cin, H, W = x_nchw.shape
    two_dim = win_oihw.shape[0]
    dim = two_dim // 2
    K = wdw_oihw.shape[-1]
    P = K // 2
    HW = H * W
    B = images_per_step
    assert N % B == 0, "images_per_step must divide the batch"

    # Channels-major everywhere -> only free reshapes at the boundary, no transposes.
    # Cast activations to bf16 once here (halves activation HBM->VMEM DMA).
    x_cm = x_nchw.reshape(N, Cin, HW).astype(jnp.bfloat16)

    # conv_in: fuse the pwa/abc halves into a single (2*dim, Cin) weight and bias.
    w_in = win_oihw[:, :, 0, 0].astype(jnp.bfloat16)                   # (2*dim, Cin)
    b_in = bin_.reshape(two_dim, 1).astype(jnp.float32)

    # Depthwise taps stay f32 (VPU accumulation), channels on sublanes.
    wdw_cm = wdw_oihw[:, 0].reshape(dim, K * K).astype(jnp.float32)    # (dim, K*K)
    bdw_cm = bdw.reshape(dim, 1).astype(jnp.float32)

    # conv_out channels-major so the kernel emits a lane-dense (dim, H*W) NCHW slab.
    w_out = wout_oihw[:, :, 0, 0].astype(jnp.bfloat16)                 # (dim, dim)
    b_out = bout.reshape(dim, 1).astype(jnp.float32)

    # Per-dw lane masks: zero columns whose W-offset falls outside the image row.
    wcol = jnp.arange(HW, dtype=jnp.int32) % W
    dwo = jnp.arange(K, dtype=jnp.int32)[:, None] - P
    mask_w = ((wcol[None, :] + dwo >= 0) &
              (wcol[None, :] + dwo < W)).astype(jnp.float32)           # (K, HW)

    # Flat row-padded scratch length: guard + P zero rows + H rows + P zero rows + guard.
    pad_len = 2 * P + (H + 2 * P) * W
    pad_lanes = ((pad_len + 127) // 128) * 128
    interior_off = P + P * W

    kernel = functools.partial(gnconv_kernel, dim=dim, W=W, K=K,
                               interior_off=interior_off)

    weight_spec = pl.BlockSpec(memory_space=pltpu.MemorySpace.VMEM)
    out_flat = pl.pallas_call(
        kernel,
        out_shape=jax.ShapeDtypeStruct((N, dim, HW), jnp.float32),
        grid=(N // B,),
        in_specs=[
            pl.BlockSpec((B, Cin, HW), lambda n: (n, 0, 0)),   # x, channels-major
            weight_spec,   # w_in  (2*dim, Cin) bf16
            weight_spec,   # b_in  (2*dim, 1)   f32
            weight_spec,   # wdw   (dim, K*K)   f32
            weight_spec,   # bdw   (dim, 1)     f32
            weight_spec,   # mask  (K, HW)      f32
            weight_spec,   # w_out (dim, dim)   bf16
            weight_spec,   # b_out (dim, 1)     f32
        ],
        out_specs=pl.BlockSpec((B, dim, HW), lambda n: (n, 0, 0)),
        scratch_shapes=[pltpu.VMEM((dim, pad_lanes), jnp.float32)],
        compiler_params=pltpu.CompilerParams(
            dimension_semantics=("parallel",)),
    )(x_cm, w_in, b_in, wdw_cm, bdw_cm, mask_w, w_out, b_out)

    # Free reshape of the minor dim: (N, dim, H*W) -> (N, dim, H, W).
    return out_flat.reshape(N, dim, H, W)


def ref_forward(x, win_oihw, bin_, wdw_oihw, bdw, wout_oihw, bout, dim):
    """Pure-JAX f32 reference in NCHW matching the PyTorch forward."""
    dn = ('NCHW', 'OIHW', 'NCHW')
    xp = lax.conv_general_dilated(
        x, win_oihw, (1, 1), ((0, 0), (0, 0)), dimension_numbers=dn,
        precision=lax.Precision.HIGHEST) + bin_[None, :, None, None]
    pwa, abc = xp[:, :dim], xp[:, dim:]
    dw = lax.conv_general_dilated(
        abc, wdw_oihw, (1, 1), ((3, 3), (3, 3)), dimension_numbers=dn,
        feature_group_count=dim,
        precision=lax.Precision.HIGHEST) + bdw[None, :, None, None]
    dw = dw * 1.0                                   # self.scale
    g = pwa * dw
    out = lax.conv_general_dilated(
        g, wout_oihw, (1, 1), ((0, 0), (0, 0)), dimension_numbers=dn,
        precision=lax.Precision.HIGHEST) + bout[None, :, None, None]
    return out


if __name__ == "__main__":
    N, Cin, H, W = 2, 16, 16, 16       # in_channels=16
    dim = 32                            # GNConv dim=32, kernel_size=7 (defaults)
    K = 7

    key = jax.random.PRNGKey(0)
    ks = jax.random.split(key, 7)
    x = jax.random.normal(ks[0], (N, Cin, H, W), jnp.float32)

    win = 0.1 * jax.random.normal(ks[1], (2 * dim, Cin, 1, 1), jnp.float32)
    bin_ = 0.1 * jax.random.normal(ks[2], (2 * dim,), jnp.float32)
    wdw = 0.05 * jax.random.normal(ks[3], (dim, 1, K, K), jnp.float32)
    bdw = 0.1 * jax.random.normal(ks[4], (dim,), jnp.float32)
    wout = 0.1 * jax.random.normal(ks[5], (dim, dim, 1, 1), jnp.float32)
    bout = 0.1 * jax.random.normal(ks[6], (dim,), jnp.float32)

    out = gnconv(x, win, bin_, wdw, bdw, wout, bout)
    out = jax.block_until_ready(out)

    ref = ref_forward(x, win, bin_, wdw, bdw, wout, bout, dim)
    err = jnp.max(jnp.abs(out - ref))
    assert out.shape == (N, dim, H, W)
    # Tolerance reflects bf16 MXU matmuls with f32 accumulation (depthwise path is f32).
    assert jnp.allclose(out, ref, atol=2e-2, rtol=2e-2), f"max abs err {err}"
    print("KERNEL_OK")
</pallas_src>

<mosaic_0001>
module attributes {stable_mosaic.version = 11 : i64} {
  func.func @gnconv_kernel(%arg0: i32, %arg1: memref<1x16x256xbf16, #tpu.memory_space<vmem>>, %arg2: memref<64x16xbf16, #tpu.memory_space<vmem>>, %arg3: memref<64x1xf32, #tpu.memory_space<vmem>>, %arg4: memref<32x49xf32, #tpu.memory_space<vmem>>, %arg5: memref<32x1xf32, #tpu.memory_space<vmem>>, %arg6: memref<7x256xf32, #tpu.memory_space<vmem>>, %arg7: memref<32x32xbf16, #tpu.memory_space<vmem>>, %arg8: memref<32x1xf32, #tpu.memory_space<vmem>>, %arg9: memref<1x32x256xf32, #tpu.memory_space<vmem>>, %arg10: memref<32x384xf32, #tpu.memory_space<vmem>>) attributes {dimension_semantics = [#tpu.dimension_semantics<parallel>], iteration_bounds = array<i64: 2>, scalar_prefetch = 0 : i64, scratch_operands = 1 : i64, tpu.core_type = #tpu.core_type<tc>, window_params = [{transform_indices = @transform_0, window_bounds = array<i64: 1, 16, 256>}, {pipeline_mode = #tpu.pipeline_mode<synchronous>, transform_indices = @transform_1, window_bounds = array<i64: 64, 16>}, {pipeline_mode = #tpu.pipeline_mode<synchronous>, transform_indices = @transform_2, window_bounds = array<i64: 64, 1>}, {pipeline_mode = #tpu.pipeline_mode<synchronous>, transform_indices = @transform_3, window_bounds = array<i64: 32, 49>}, {pipeline_mode = #tpu.pipeline_mode<synchronous>, transform_indices = @transform_4, window_bounds = array<i64: 32, 1>}, {pipeline_mode = #tpu.pipeline_mode<synchronous>, transform_indices = @transform_5, window_bounds = array<i64: 7, 256>}, {pipeline_mode = #tpu.pipeline_mode<synchronous>, transform_indices = @transform_6, window_bounds = array<i64: 32, 32>}, {pipeline_mode = #tpu.pipeline_mode<synchronous>, transform_indices = @transform_7, window_bounds = array<i64: 32, 1>}, {transform_indices = @transform_8, window_bounds = array<i64: 1, 32, 256>}]} {
    %cst = arith.constant 0.000000e+00 : f32
    %0 = vector.broadcast %cst : f32 to vector<32x384xf32>
    %c0 = arith.constant 0 : index
    %c0_0 = arith.constant 0 : index
    %1 = vector.load %arg10[%c0, %c0_0] : memref<32x384xf32, #tpu.memory_space<vmem>>, vector<32x384xf32>
    tpu.vector_store %arg10[%c0, %c0_0], %0 {strides = array<i32>} : memref<32x384xf32, #tpu.memory_space<vmem>>, vector<32x384xf32>,
    %c0_1 = arith.constant 0 : index
    %c0_2 = arith.constant 0 : index
    %2 = vector.load %arg2[%c0_1, %c0_2] : memref<64x16xbf16, #tpu.memory_space<vmem>>, vector<64x16xbf16>
    %c0_3 = arith.constant 0 : index
    %c0_4 = arith.constant 0 : index
    %c0_5 = arith.constant 0 : index
    %3 = vector.load %arg1[%c0_3, %c0_4, %c0_5] : memref<1x16x256xbf16, #tpu.memory_space<vmem>>, vector<1x16x256xbf16>
    %4 = vector.shape_cast %3 : vector<1x16x256xbf16> to vector<16x256xbf16>
    %cst_6 = arith.constant dense<0.000000e+00> : vector<64x256xf32>
    %5 = tpu.matmul %2, %4, %cst_6 {dimension_numbers = #tpu.dot_dimension_numbers<[1], [0], [0], [1], [0, 0, 1, 1], [], []>} : vector<64x16xbf16>, vector<16x256xbf16>, vector<64x256xf32> -> vector<64x256xf32>
    %c0_7 = arith.constant 0 : index
    %c0_8 = arith.constant 0 : index
    %6 = vector.load %arg3[%c0_7, %c0_8] : memref<64x1xf32, #tpu.memory_space<vmem>>, vector<64x1xf32>
    %7 = vector.broadcast %6 : vector<64x1xf32> to vector<64x256xf32>
    %8 = arith.addf %5, %7 : vector<64x256xf32>
    %9 = vector.extract_strided_slice %8 {offsets = [0, 0], sizes = [32, 256], strides = [1, 1]} : vector<64x256xf32> to vector<32x256xf32>
    %10 = vector.extract_strided_slice %8 {offsets = [32, 0], sizes = [32, 256], strides = [1, 1]} : vector<64x256xf32> to vector<32x256xf32>
    %c0_9 = arith.constant 0 : index
    %c51 = arith.constant 51 : index
    %11 = vector.load %arg10[%c0_9, %c51] : memref<32x384xf32, #tpu.memory_space<vmem>>, vector<32x256xf32>
    tpu.vector_store %arg10[%c0_9, %c51], %10 {strides = array<i32>} : memref<32x384xf32, #tpu.memory_space<vmem>>, vector<32x256xf32>,
    %c0_10 = arith.constant 0 : index
    %c0_11 = arith.constant 0 : index
    %12 = vector.load %arg10[%c0_10, %c0_11] : memref<32x384xf32, #tpu.memory_space<vmem>>, vector<32x256xf32>
    %c0_12 = arith.constant 0 : index
    %c0_13 = arith.constant 0 : index
    %13 = vector.load %arg4[%c0_12, %c0_13] : memref<32x49xf32, #tpu.memory_space<vmem>>, vector<32x1xf32>
    %14 = vector.broadcast %13 : vector<32x1xf32> to vector<32x256xf32>
    %15 = arith.mulf %12, %14 : vector<32x256xf32>
    %c0_14 = arith.constant 0 : index
    %c16 = arith.constant 16 : index
    %16 = vector.load %arg10[%c0_14, %c16] : memref<32x384xf32, #tpu.memory_space<vmem>>, vector<32x256xf32>
    %c0_15 = arith.constant 0 : index
    %c7 = arith.constant 7 : index
    %17 = vector.load %arg4[%c0_15, %c7] : memref<32x49xf32, #tpu.memory_space<vmem>>, vector<32x1xf32>
    %18 = vector.broadcast %17 : vector<32x1xf32> to vector<32x256xf32>
    %19 = arith.mulf %16, %18 : vector<32x256xf32>
    %20 = arith.addf %15, %19 : vector<32x256xf32>
    %c0_16 = arith.constant 0 : index
    %c32 = arith.constant 32 : index
    %21 = vector.load %arg10[%c0_16, %c32] : memref<32x384xf32, #tpu.memory_space<vmem>>, vector<32x256xf32>
    %c0_17 = arith.constant 0 : index
    %c14 = arith.constant 14 : index
    %22 = vector.load %arg4[%c0_17, %c14] : memref<32x49xf32, #tpu.memory_space<vmem>>, vector<32x1xf32>
    %23 = vector.broadcast %22 : vector<32x1xf32> to vector<32x256xf32>
    %24 = arith.mulf %21, %23 : vector<32x256xf32>
    %25 = arith.addf %20, %24 : vector<32x256xf32>
    %c0_18 = arith.constant 0 : index
    %c48 = arith.constant 48 : index
    %26 = vector.load %arg10[%c0_18, %c48] : memref<32x384xf32, #tpu.memory_space<vmem>>, vector<32x256xf32>
    %c0_19 = arith.constant 0 : index
    %c21 = arith.constant 21 : index
    %27 = vector.load %arg4[%c0_19, %c21] : memref<32x49xf32, #tpu.memory_space<vmem>>, vector<32x1xf32>
    %28 = vector.broadcast %27 : vector<32x1xf32> to vector<32x256xf32>
    %29 = arith.mulf %26, %28 : vector<32x256xf32>
    %30 = arith.addf %25, %29 : vector<32x256xf32>
    %c0_20 = arith.constant 0 : index
    %c64 = arith.constant 64 : index
    %31 = vector.load %arg10[%c0_20, %c64] : memref<32x384xf32, #tpu.memory_space<vmem>>, vector<32x256xf32>
    %c0_21 = arith.constant 0 : index
    %c28 = arith.constant 28 : index
    %32 = vector.load %arg4[%c0_21, %c28] : memref<32x49xf32, #tpu.memory_space<vmem>>, vector<32x1xf32>
    %33 = vector.broadcast %32 : vector<32x1xf32> to vector<32x256xf32>
    %34 = arith.mulf %31, %33 : vector<32x256xf32>
    %35 = arith.addf %30, %34 : vector<32x256xf32>
    %c0_22 = arith.constant 0 : index
    %c80 = arith.constant 80 : index
    %36 = vector.load %arg10[%c0_22, %c80] : memref<32x384xf32, #tpu.memory_space<vmem>>, vector<32x256xf32>
    %c0_23 = arith.constant 0 : index
    %c35 = arith.constant 35 : index
    %37 = vector.load %arg4[%c0_23, %c35] : memref<32x49xf32, #tpu.memory_space<vmem>>, vector<32x1xf32>
    %38 = vector.broadcast %37 : vector<32x1xf32> to vector<32x256xf32>
    %39 = arith.mulf %36, %38 : vector<32x256xf32>
    %40 = arith.addf %35, %39 : vector<32x256xf32>
    %c0_24 = arith.constant 0 : index
    %c96 = arith.constant 96 : index
    %41 = vector.load %arg10[%c0_24, %c96] : memref<32x384xf32, #tpu.memory_space<vmem>>, vector<32x256xf32>
    %c0_25 = arith.constant 0 : index
    %c42 = arith.constant 42 : index
    %42 = vector.load %arg4[%c0_25, %c42] : memref<32x49xf32, #tpu.memory_space<vmem>>, vector<32x1xf32>
    %43 = vector.broadcast %42 : vector<32x1xf32> to vector<32x256xf32>
    %44 = arith.mulf %41, %43 : vector<32x256xf32>
    %45 = arith.addf %40, %44 : vector<32x256xf32>
    %c0_26 = arith.constant 0 : index
    %c0_27 = arith.constant 0 : index
    %46 = vector.load %arg6[%c0_26, %c0_27] : memref<7x256xf32, #tpu.memory_space<vmem>>, vector<1x256xf32>
    %47 = vector.broadcast %46 : vector<1x256xf32> to vector<32x256xf32>
    %48 = arith.mulf %45, %47 : vector<32x256xf32>
    %c0_28 = arith.constant 0 : index
    %c1 = arith.constant 1 : index
    %49 = vector.load %arg10[%c0_28, %c1] : memref<32x384xf32, #tpu.memory_space<vmem>>, vector<32x256xf32>
    %c0_29 = arith.constant 0 : index
    %c1_30 = arith.constant 1 : index
    %50 = vector.load %arg4[%c0_29, %c1_30] : memref<32x49xf32, #tpu.memory_space<vmem>>, vector<32x1xf32>
    %51 = vector.broadcast %50 : vector<32x1xf32> to vector<32x256xf32>
    %52 = arith.mulf %49, %51 : vector<32x256xf32>
    %c0_31 = arith.constant 0 : index
    %c17 = arith.constant 17 : index
    %53 = vector.load %arg10[%c0_31, %c17] : memref<32x384xf32, #tpu.memory_space<vmem>>, vector<32x256xf32>
    %c0_32 = arith.constant 0 : index
    %c8 = arith.constant 8 : index
    %54 = vector.load %arg4[%c0_32, %c8] : memref<32x49xf32, #tpu.memory_space<vmem>>, vector<32x1xf32>
    %55 = vector.broadcast %54 : vector<32x1xf32> to vector<32x256xf32>
    %56 = arith.mulf %53, %55 : vector<32x256xf32>
    %57 = arith.addf %52, %56 : vector<32x256xf32>
    %c0_33 = arith.constant 0 : index
    %c33 = arith.constant 33 : index
    %58 = vector.load %arg10[%c0_33, %c33] : memref<32x384xf32, #tpu.memory_space<vmem>>, vector<32x256xf32>
    %c0_34 = arith.constant 0 : index
    %c15 = arith.constant 15 : index
    %59 = vector.load %arg4[%c0_34, %c15] : memref<32x49xf32, #tpu.memory_space<vmem>>, vector<32x1xf32>
    %60 = vector.broadcast %59 : vector<32x1xf32> to vector<32x256xf32>
    %61 = arith.mulf %58, %60 : vector<32x256xf32>
    %62 = arith.addf %57, %61 : vector<32x256xf32>
    %c0_35 = arith.constant 0 : index
    %c49 = arith.constant 49 : index
    %63 = vector.load %arg10[%c0_35, %c49] : memref<32x384xf32, #tpu.memory_space<vmem>>, vector<32x256xf32>
    %c0_36 = arith.constant 0 : index
    %c22 = arith.constant 22 : index
    %64 = vector.load %arg4[%c0_36, %c22] : memref<32x49xf32, #tpu.memory_space<vmem>>, vector<32x1xf32>
    %65 = vector.broadcast %64 : vector<32x1xf32> to vector<32x256xf32>
    %66 = arith.mulf %63, %65 : vector<32x256xf32>
    %67 = arith.addf %62, %66 : vector<32x256xf32>
    %c0_37 = arith.constant 0 : index
    %c65 = arith.constant 65 : index
    %68 = vector.load %arg10[%c0_37, %c65] : memref<32x384xf32, #tpu.memory_space<vmem>>, vector<32x256xf32>
    %c0_38 = arith.constant 0 : index
    %c29 = arith.constant 29 : index
    %69 = vector.load %arg4[%c0_38, %c29] : memref<32x49xf32, #tpu.memory_space<vmem>>, vector<32x1xf32>
    %70 = vector.broadcast %69 : vector<32x1xf32> to vector<32x256xf32>
    %71 = arith.mulf %68, %70 : vector<32x256xf32>
    %72 = arith.addf %67, %71 : vector<32x256xf32>
    %c0_39 = arith.constant 0 : index
    %c81 = arith.constant 81 : index
    %73 = vector.load %arg10[%c0_39, %c81] : memref<32x384xf32, #tpu.memory_space<vmem>>, vector<32x256xf32>
    %c0_40 = arith.constant 0 : index
    %c36 = arith.constant 36 : index
    %74 = vector.load %arg4[%c0_40, %c36] : memref<32x49xf32, #tpu.memory_space<vmem>>, vector<32x1xf32>
    %75 = vector.broadcast %74 : vector<32x1xf32> to vector<32x256xf32>
    %76 = arith.mulf %73, %75 : vector<32x256xf32>
    %77 = arith.addf %72, %76 : vector<32x256xf32>
    %c0_41 = arith.constant 0 : index
    %c97 = arith.constant 97 : index
    %78 = vector.load %arg10[%c0_41, %c97] : memref<32x384xf32, #tpu.memory_space<vmem>>, vector<32x256xf32>
    %c0_42 = arith.constant 0 : index
    %c43 = arith.constant 43 : index
    %79 = vector.load %arg4[%c0_42, %c43] : memref<32x49xf32, #tpu.memory_space<vmem>>, vector<32x1xf32>
    %80 = vector.broadcast %79 : vector<32x1xf32> to vector<32x256xf32>
    %81 = arith.mulf %78, %80 : vector<32x256xf32>
    %82 = arith.addf %77, %81 : vector<32x256xf32>
    %c1_43 = arith.constant 1 : index
    %c0_44 = arith.constant 0 : index
    %83 = vector.load %arg6[%c1_43, %c0_44] : memref<7x256xf32, #tpu.memory_space<vmem>>, vector<1x256xf32>
    %84 = vector.broadcast %83 : vector<1x256xf32> to vector<32x256xf32>
    %85 = arith.mulf %82, %84 : vector<32x256xf32>
    %86 = arith.addf %48, %85 : vector<32x256xf32>
    %c0_45 = arith.constant 0 : index
    %c2 = arith.constant 2 : index
    %87 = vector.load %arg10[%c0_45, %c2] : memref<32x384xf32, #tpu.memory_space<vmem>>, vector<32x256xf32>
    %c0_46 = arith.constant 0 : index
    %c2_47 = arith.constant 2 : index
    %88 = vector.load %arg4[%c0_46, %c2_47] : memref<32x49xf32, #tpu.memory_space<vmem>>, vector<32x1xf32>
    %89 = vector.broadcast %88 : vector<32x1xf32> to vector<32x256xf32>
    %90 = arith.mulf %87, %89 : vector<32x256xf32>
    %c0_48 = arith.constant 0 : index
    %c18 = arith.constant 18 : index
    %91 = vector.load %arg10[%c0_48, %c18] : memref<32x384xf32, #tpu.memory_space<vmem>>, vector<32x256xf32>
    %c0_49 = arith.constant 0 : index
    %c9 = arith.constant 9 : index
    %92 = vector.load %arg4[%c0_49, %c9] : memref<32x49xf32, #tpu.memory_space<vmem>>, vector<32x1xf32>
    %93 = vector.broadcast %92 : vector<32x1xf32> to vector<32x256xf32>
    %94 = arith.mulf %91, %93 : vector<32x256xf32>
    %95 = arith.addf %90, %94 : vector<32x256xf32>
    %c0_50 = arith.constant 0 : index
    %c34 = arith.constant 34 : index
    %96 = vector.load %arg10[%c0_50, %c34] : memref<32x384xf32, #tpu.memory_space<vmem>>, vector<32x256xf32>
    %c0_51 = arith.constant 0 : index
    %c16_52 = arith.constant 16 : index
    %97 = vector.load %arg4[%c0_51, %c16_52] : memref<32x49xf32, #tpu.memory_space<vmem>>, vector<32x1xf32>
    %98 = vector.broadcast %97 : vector<32x1xf32> to vector<32x256xf32>
    %99 = arith.mulf %96, %98 : vector<32x256xf32>
    %100 = arith.addf %95, %99 : vector<32x256xf32>
    %c0_53 = arith.constant 0 : index
    %c50 = arith.constant 50 : index
    %101 = vector.load %arg10[%c0_53, %c50] : memref<32x384xf32, #tpu.memory_space<vmem>>, vector<32x256xf32>
    %c0_54 = arith.constant 0 : index
    %c23 = arith.constant 23 : index
    %102 = vector.load %arg4[%c0_54, %c23] : memref<32x49xf32, #tpu.memory_space<vmem>>, vector<32x1xf32>
    %103 = vector.broadcast %102 : vector<32x1xf32> to vector<32x256xf32>
    %104 = arith.mulf %101, %103 : vector<32x256xf32>
    %105 = arith.addf %100, %104 : vector<32x256xf32>
    %c0_55 = arith.constant 0 : index
    %c66 = arith.constant 66 : index
    %106 = vector.load %arg10[%c0_55, %c66] : memref<32x384xf32, #tpu.memory_space<vmem>>, vector<32x256xf32>
    %c0_56 = arith.constant 0 : index
    %c30 = arith.constant 30 : index
    %107 = vector.load %arg4[%c0_56, %c30] : memref<32x49xf32, #tpu.memory_space<vmem>>, vector<32x1xf32>
    %108 = vector.broadcast %107 : vector<32x1xf32> to vector<32x256xf32>
    %109 = arith.mulf %106, %108 : vector<32x256xf32>
    %110 = arith.addf %105, %109 : vector<32x256xf32>
    %c0_57 = arith.constant 0 : index
    %c82 = arith.constant 82 : index
    %111 = vector.load %arg10[%c0_57, %c82] : memref<32x384xf32, #tpu.memory_space<vmem>>, vector<32x256xf32>
    %c0_58 = arith.constant 0 : index
    %c37 = arith.constant 37 : index
    %112 = vector.load %arg4[%c0_58, %c37] : memref<32x49xf32, #tpu.memory_space<vmem>>, vector<32x1xf32>
    %113 = vector.broadcast %112 : vector<32x1xf32> to vector<32x256xf32>
    %114 = arith.mulf %111, %113 : vector<32x256xf32>
    %115 = arith.addf %110, %114 : vector<32x256xf32>
    %c0_59 = arith.constant 0 : index
    %c98 = arith.constant 98 : index
    %116 = vector.load %arg10[%c0_59, %c98] : memref<32x384xf32, #tpu.memory_space<vmem>>, vector<32x256xf32>
    %c0_60 = arith.constant 0 : index
    %c44 = arith.constant 44 : index
    %117 = vector.load %arg4[%c0_60, %c44] : memref<32x49xf32, #tpu.memory_space<vmem>>, vector<32x1xf32>
    %118 = vector.broadcast %117 : vector<32x1xf32> to vector<32x256xf32>
    %119 = arith.mulf %116, %118 : vector<32x256xf32>
    %120 = arith.addf %115, %119 : vector<32x256xf32>
    %c2_61 = arith.constant 2 : index
    %c0_62 = arith.constant 0 : index
    %121 = vector.load %arg6[%c2_61, %c0_62] : memref<7x256xf32, #tpu.memory_space<vmem>>, vector<1x256xf32>
    %122 = vector.broadcast %121 : vector<1x256xf32> to vector<32x256xf32>
    %123 = arith.mulf %120, %122 : vector<32x256xf32>
    %124 = arith.addf %86, %123 : vector<32x256xf32>
    %c0_63 = arith.constant 0 : index
    %c3 = arith.constant 3 : index
    %125 = vector.load %arg10[%c0_63, %c3] : memref<32x384xf32, #tpu.memory_space<vmem>>, vector<32x256xf32>
    %c0_64 = arith.constant 0 : index
    %c3_65 = arith.constant 3 : index
    %126 = vector.load %arg4[%c0_64, %c3_65] : memref<32x49xf32, #tpu.memory_space<vmem>>, vector<32x1xf32>
    %127 = vector.broadcast %126 : vector<32x1xf32> to vector<32x256xf32>
    %128 = arith.mulf %125, %127 : vector<32x256xf32>
    %c0_66 = arith.constant 0 : index
    %c19 = arith.constant 19 : index
    %129 = vector.load %arg10[%c0_66, %c19] : memref<32x384xf32, #tpu.memory_space<vmem>>, vector<32x256xf32>
    %c0_67 = arith.constant 0 : index
    %c10 = arith.constant 10 : index
    %130 = vector.load %arg4[%c0_67, %c10] : memref<32x49xf32, #tpu.memory_space<vmem>>, vector<32x1xf32>
    %131 = vector.broadcast %130 : vector<32x1xf32> to vector<32x256xf32>
    %132 = arith.mulf %129, %131 : vector<32x256xf32>
    %133 = arith.addf %128, %132 : vector<32x256xf32>
    %c0_68 = arith.constant 0 : index
    %c35_69 = arith.constant 35 : index
    %134 = vector.load %arg10[%c0_68, %c35_69] : memref<32x384xf32, #tpu.memory_space<vmem>>, vector<32x256xf32>
    %c0_70 = arith.constant 0 : index
    %c17_71 = arith.constant 17 : index
    %135 = vector.load %arg4[%c0_70, %c17_71] : memref<32x49xf32, #tpu.memory_space<vmem>>, vector<32x1xf32>
    %136 = vector.broadcast %135 : vector<32x1xf32> to vector<32x256xf32>
    %137 = arith.mulf %134, %136 : vector<32x256xf32>
    %138 = arith.addf %133, %137 : vector<32x256xf32>
    %c0_72 = arith.constant 0 : index
    %c51_73 = arith.constant 51 : index
    %139 = vector.load %arg10[%c0_72, %c51_73] : memref<32x384xf32, #tpu.memory_space<vmem>>, vector<32x256xf32>
    %c0_74 = arith.constant 0 : index
    %c24 = arith.constant 24 : index
    %140 = vector.load %arg4[%c0_74, %c24] : memref<32x49xf32, #tpu.memory_space<vmem>>, vector<32x1xf32>
    %141 = vector.broadcast %140 : vector<32x1xf32> to vector<32x256xf32>
    %142 = arith.mulf %139, %141 : vector<32x256xf32>
    %143 = arith.addf %138, %142 : vector<32x256xf32>
    %c0_75 = arith.constant 0 : index
    %c67 = arith.constant 67 : index
    %144 = vector.load %arg10[%c0_75, %c67] : memref<32x384xf32, #tpu.memory_space<vmem>>, vector<32x256xf32>
    %c0_76 = arith.constant 0 : index
    %c31 = arith.constant 31 : index
    %145 = vector.load %arg4[%c0_76, %c31] : memref<32x49xf32, #tpu.memory_space<vmem>>, vector<32x1xf32>
    %146 = vector.broadcast %145 : vector<32x1xf32> to vector<32x256xf32>
    %147 = arith.mulf %144, %146 : vector<32x256xf32>
    %148 = arith.addf %143, %147 : vector<32x256xf32>
    %c0_77 = arith.constant 0 : index
    %c83 = arith.constant 83 : index
    %149 = vector.load %arg10[%c0_77, %c83] : memref<32x384xf32, #tpu.memory_space<vmem>>, vector<32x256xf32>
    %c0_78 = arith.constant 0 : index
    %c38 = arith.constant 38 : index
    %150 = vector.load %arg4[%c0_78, %c38] : memref<32x49xf32, #tpu.memory_space<vmem>>, vector<32x1xf32>
    %151 = vector.broadcast %150 : vector<32x1xf32> to vector<32x256xf32>
    %152 = arith.mulf %149, %151 : vector<32x256xf32>
    %153 = arith.addf %148, %152 : vector<32x256xf32>
    %c0_79 = arith.constant 0 : index
    %c99 = arith.constant 99 : index
    %154 = vector.load %arg10[%c0_79, %c99] : memref<32x384xf32, #tpu.memory_space<vmem>>, vector<32x256xf32>
    %c0_80 = arith.constant 0 : index
    %c45 = arith.constant 45 : index
    %155 = vector.load %arg4[%c0_80, %c45] : memref<32x49xf32, #tpu.memory_space<vmem>>, vector<32x1xf32>
    %156 = vector.broadcast %155 : vector<32x1xf32> to vector<32x256xf32>
    %157 = arith.mulf %154, %156 : vector<32x256xf32>
    %158 = arith.addf %153, %157 : vector<32x256xf32>
    %c3_81 = arith.constant 3 : index
    %c0_82 = arith.constant 0 : index
    %159 = vector.load %arg6[%c3_81, %c0_82] : memref<7x256xf32, #tpu.memory_space<vmem>>, vector<1x256xf32>
    %160 = vector.broadcast %159 : vector<1x256xf32> to vector<32x256xf32>
    %161 = arith.mulf %158, %160 : vector<32x256xf32>
    %162 = arith.addf %124, %161 : vector<32x256xf32>
    %c0_83 = arith.constant 0 : index
    %c4 = arith.constant 4 : index
    %163 = vector.load %arg10[%c0_83, %c4] : memref<32x384xf32, #tpu.memory_space<vmem>>, vector<32x256xf32>
    %c0_84 = arith.constant 0 : index
    %c4_85 = arith.constant 4 : index
    %164 = vector.load %arg4[%c0_84, %c4_85] : memref<32x49xf32, #tpu.memory_space<vmem>>, vector<32x1xf32>
    %165 = vector.broadcast %164 : vector<32x1xf32> to vector<32x256xf32>
    %166 = arith.mulf %163, %165 : vector<32x256xf32>
    %c0_86 = arith.constant 0 : index
    %c20 = arith.constant 20 : index
    %167 = vector.load %arg10[%c0_86, %c20] : memref<32x384xf32, #tpu.memory_space<vmem>>, vector<32x256xf32>
    %c0_87 = arith.constant 0 : index
    %c11 = arith.constant 11 : index
    %168 = vector.load %arg4[%c0_87, %c11] : memref<32x49xf32, #tpu.memory_space<vmem>>, vector<32x1xf32>
    %169 = vector.broadcast %168 : vector<32x1xf32> to vector<32x256xf32>
    %170 = arith.mulf %167, %169 : vector<32x256xf32>
    %171 = arith.addf %166, %170 : vector<32x256xf32>
    %c0_88 = arith.constant 0 : index
    %c36_89 = arith.constant 36 : index
    %172 = vector.load %arg10[%c0_88, %c36_89] : memref<32x384xf32, #tpu.memory_space<vmem>>, vector<32x256xf32>
    %c0_90 = arith.constant 0 : index
    %c18_91 = arith.constant 18 : index
    %173 = vector.load %arg4[%c0_90, %c18_91] : memref<32x49xf32, #tpu.memory_space<vmem>>, vector<32x1xf32>
    %174 = vector.broadcast %173 : vector<32x1xf32> to vector<32x256xf32>
    %175 = arith.mulf %172, %174 : vector<32x256xf32>
    %176 = arith.addf %171, %175 : vector<32x256xf32>
    %c0_92 = arith.constant 0 : index
    %c52 = arith.constant 52 : index
    %177 = vector.load %arg10[%c0_92, %c52] : memref<32x384xf32, #tpu.memory_space<vmem>>, vector<32x256xf32>
    %c0_93 = arith.constant 0 : index
    %c25 = arith.constant 25 : index
    %178 = vector.load %arg4[%c0_93, %c25] : memref<32x49xf32, #tpu.memory_space<vmem>>, vector<32x1xf32>
    %179 = vector.broadcast %178 : vector<32x1xf32> to vector<32x256xf32>
    %180 = arith.mulf %177, %179 : vector<32x256xf32>
    %181 = arith.addf %176, %180 : vector<32x256xf32>
    %c0_94 = arith.constant 0 : index
    %c68 = arith.constant 68 : index
    %182 = vector.load %arg10[%c0_94, %c68] : memref<32x384xf32, #tpu.memory_space<vmem>>, vector<32x256xf32>
    %c0_95 = arith.constant 0 : index
    %c32_96 = arith.constant 32 : index
    %183 = vector.load %arg4[%c0_95, %c32_96] : memref<32x49xf32, #tpu.memory_space<vmem>>, vector<32x1xf32>
    %184 = vector.broadcast %183 : vector<32x1xf32> to vector<32x256xf32>
    %185 = arith.mulf %182, %184 : vector<32x256xf32>
    %186 = arith.addf %181, %185 : vector<32x256xf32>
    %c0_97 = arith.constant 0 : index
    %c84 = arith.constant 84 : index
    %187 = vector.load %arg10[%c0_97, %c84] : memref<32x384xf32, #tpu.memory_space<vmem>>, vector<32x256xf32>
    %c0_98 = arith.constant 0 : index
    %c39 = arith.constant 39 : index
    %188 = vector.load %arg4[%c0_98, %c39] : memref<32x49xf32, #tpu.memory_space<vmem>>, vector<32x1xf32>
    %189 = vector.broadcast %188 : vector<32x1xf32> to vector<32x256xf32>
    %190 = arith.mulf %187, %189 : vector<32x256xf32>
    %191 = arith.addf %186, %190 : vector<32x256xf32>
    %c0_99 = arith.constant 0 : index
    %c100 = arith.constant 100 : index
    %192 = vector.load %arg10[%c0_99, %c100] : memref<32x384xf32, #tpu.memory_space<vmem>>, vector<32x256xf32>
    %c0_100 = arith.constant 0 : index
    %c46 = arith.constant 46 : index
    %193 = vector.load %arg4[%c0_100, %c46] : memref<32x49xf32, #tpu.memory_space<vmem>>, vector<32x1xf32>
    %194 = vector.broadcast %193 : vector<32x1xf32> to vector<32x256xf32>
    %195 = arith.mulf %192, %194 : vector<32x256xf32>
    %196 = arith.addf %191, %195 : vector<32x256xf32>
    %c4_101 = arith.constant 4 : index
    %c0_102 = arith.constant 0 : index
    %197 = vector.load %arg6[%c4_101, %c0_102] : memref<7x256xf32, #tpu.memory_space<vmem>>, vector<1x256xf32>
    %198 = vector.broadcast %197 : vector<1x256xf32> to vector<32x256xf32>
    %199 = arith.mulf %196, %198 : vector<32x256xf32>
    %200 = arith.addf %162, %199 : vector<32x256xf32>
    %c0_103 = arith.constant 0 : index
    %c5 = arith.constant 5 : index
    %201 = vector.load %arg10[%c0_103, %c5] : memref<32x384xf32, #tpu.memory_space<vmem>>, vector<32x256xf32>
    %c0_104 = arith.constant 0 : index
    %c5_105 = arith.constant 5 : index
    %202 = vector.load %arg4[%c0_104, %c5_105] : memref<32x49xf32, #tpu.memory_space<vmem>>, vector<32x1xf32>
    %203 = vector.broadcast %202 : vector<32x1xf32> to vector<32x256xf32>
    %204 = arith.mulf %201, %203 : vector<32x256xf32>
    %c0_106 = arith.constant 0 : index
    %c21_107 = arith.constant 21 : index
    %205 = vector.load %arg10[%c0_106, %c21_107] : memref<32x384xf32, #tpu.memory_space<vmem>>, vector<32x256xf32>
    %c0_108 = arith.constant 0 : index
    %c12 = arith.constant 12 : index
    %206 = vector.load %arg4[%c0_108, %c12] : memref<32x49xf32, #tpu.memory_space<vmem>>, vector<32x1xf32>
    %207 = vector.broadcast %206 : vector<32x1xf32> to vector<32x256xf32>
    %208 = arith.mulf %205, %207 : vector<32x256xf32>
    %209 = arith.addf %204, %208 : vector<32x256xf32>
    %c0_109 = arith.constant 0 : index
    %c37_110 = arith.constant 37 : index
    %210 = vector.load %arg10[%c0_109, %c37_110] : memref<32x384xf32, #tpu.memory_space<vmem>>, vector<32x256xf32>
    %c0_111 = arith.constant 0 : index
    %c19_112 = arith.constant 19 : index
    %211 = vector.load %arg4[%c0_111, %c19_112] : memref<32x49xf32, #tpu.memory_space<vmem>>, vector<32x1xf32>
    %212 = vector.broadcast %211 : vector<32x1xf32> to vector<32x256xf32>
    %213 = arith.mulf %210, %212 : vector<32x256xf32>
    %214 = arith.addf %209, %213 : vector<32x256xf32>
    %c0_113 = arith.constant 0 : index
    %c53 = arith.constant 53 : index
    %215 = vector.load %arg10[%c0_113, %c53] : memref<32x384xf32, #tpu.memory_space<vmem>>, vector<32x256xf32>
    %c0_114 = arith.constant 0 : index
    %c26 = arith.constant 26 : index
    %216 = vector.load %arg4[%c0_114, %c26] : memref<32x49xf32, #tpu.memory_space<vmem>>, vector<32x1xf32>
    %217 = vector.broadcast %216 : vector<32x1xf32> to vector<32x256xf32>
    %218 = arith.mulf %215, %217 : vector<32x256xf32>
    %219 = arith.addf %214, %218 : vector<32x256xf32>
    %c0_115 = arith.constant 0 : index
    %c69 = arith.constant 69 : index
    %220 = vector.load %arg10[%c0_115, %c69] : memref<32x384xf32, #tpu.memory_space<vmem>>, vector<32x256xf32>
    %c0_116 = arith.constant 0 : index
    %c33_117 = arith.constant 33 : index
    %221 = vector.load %arg4[%c0_116, %c33_117] : memref<32x49xf32, #tpu.memory_space<vmem>>, vector<32x1xf32>
    %222 = vector.broadcast %221 : vector<32x1xf32> to vector<32x256xf32>
    %223 = arith.mulf %220, %222 : vector<32x256xf32>
    %224 = arith.addf %219, %223 : vector<32x256xf32>
    %c0_118 = arith.constant 0 : index
    %c85 = arith.constant 85 : index
    %225 = vector.load %arg10[%c0_118, %c85] : memref<32x384xf32, #tpu.memory_space<vmem>>, vector<32x256xf32>
    %c0_119 = arith.constant 0 : index
    %c40 = arith.constant 40 : index
    %226 = vector.load %arg4[%c0_119, %c40] : memref<32x49xf32, #tpu.memory_space<vmem>>, vector<32x1xf32>
    %227 = vector.broadcast %226 : vector<32x1xf32> to vector<32x256xf32>
    %228 = arith.mulf %225, %227 : vector<32x256xf32>
    %229 = arith.addf %224, %228 : vector<32x256xf32>
    %c0_120 = arith.constant 0 : index
    %c101 = arith.constant 101 : index
    %230 = vector.load %arg10[%c0_120, %c101] : memref<32x384xf32, #tpu.memory_space<vmem>>, vector<32x256xf32>
    %c0_121 = arith.constant 0 : index
    %c47 = arith.constant 47 : index
    %231 = vector.load %arg4[%c0_121, %c47] : memref<32x49xf32, #tpu.memory_space<vmem>>, vector<32x1xf32>
    %232 = vector.broadcast %231 : vector<32x1xf32> to vector<32x256xf32>
    %233 = arith.mulf %230, %232 : vector<32x256xf32>
    %234 = arith.addf %229, %233 : vector<32x256xf32>
    %c5_122 = arith.constant 5 : index
    %c0_123 = arith.constant 0 : index
    %235 = vector.load %arg6[%c5_122, %c0_123] : memref<7x256xf32, #tpu.memory_space<vmem>>, vector<1x256xf32>
    %236 = vector.broadcast %235 : vector<1x256xf32> to vector<32x256xf32>
    %237 = arith.mulf %234, %236 : vector<32x256xf32>
    %238 = arith.addf %200, %237 : vector<32x256xf32>
    %c0_124 = arith.constant 0 : index
    %c6 = arith.constant 6 : index
    %239 = vector.load %arg10[%c0_124, %c6] : memref<32x384xf32, #tpu.memory_space<vmem>>, vector<32x256xf32>
    %c0_125 = arith.constant 0 : index
    %c6_126 = arith.constant 6 : index
    %240 = vector.load %arg4[%c0_125, %c6_126] : memref<32x49xf32, #tpu.memory_space<vmem>>, vector<32x1xf32>
    %241 = vector.broadcast %240 : vector<32x1xf32> to vector<32x256xf32>
    %242 = arith.mulf %239, %241 : vector<32x256xf32>
    %c0_127 = arith.constant 0 : index
    %c22_128 = arith.constant 22 : index
    %243 = vector.load %arg10[%c0_127, %c22_128] : memref<32x384xf32, #tpu.memory_space<vmem>>, vector<32x256xf32>
    %c0_129 = arith.constant 0 : index
    %c13 = arith.constant 13 : index
    %244 = vector.load %arg4[%c0_129, %c13] : memref<32x49xf32, #tpu.memory_space<vmem>>, vector<32x1xf32>
    %245 = vector.broadcast %244 : vector<32x1xf32> to vector<32x256xf32>
    %246 = arith.mulf %243, %245 : vector<32x256xf32>
    %247 = arith.addf %242, %246 : vector<32x256xf32>
    %c0_130 = arith.constant 0 : index
    %c38_131 = arith.constant 38 : index
    %248 = vector.load %arg10[%c0_130, %c38_131] : memref<32x384xf32, #tpu.memory_space<vmem>>, vector<32x256xf32>
    %c0_132 = arith.constant 0 : index
    %c20_133 = arith.constant 20 : index
    %249 = vector.load %arg4[%c0_132, %c20_133] : memref<32x49xf32, #tpu.memory_space<vmem>>, vector<32x1xf32>
    %250 = vector.broadcast %249 : vector<32x1xf32> to vector<32x256xf32>
    %251 = arith.mulf %248, %250 : vector<32x256xf32>
    %252 = arith.addf %247, %251 : vector<32x256xf32>
    %c0_134 = arith.constant 0 : index
    %c54 = arith.constant 54 : index
    %253 = vector.load %arg10[%c0_134, %c54] : memref<32x384xf32, #tpu.memory_space<vmem>>, vector<32x256xf32>
    %c0_135 = arith.constant 0 : index
    %c27 = arith.constant 27 : index
    %254 = vector.load %arg4[%c0_135, %c27] : memref<32x49xf32, #tpu.memory_space<vmem>>, vector<32x1xf32>
    %255 = vector.broadcast %254 : vector<32x1xf32> to vector<32x256xf32>
    %256 = arith.mulf %253, %255 : vector<32x256xf32>
    %257 = arith.addf %252, %256 : vector<32x256xf32>
    %c0_136 = arith.constant 0 : index
    %c70 = arith.constant 70 : index
    %258 = vector.load %arg10[%c0_136, %c70] : memref<32x384xf32, #tpu.memory_space<vmem>>, vector<32x256xf32>
    %c0_137 = arith.constant 0 : index
    %c34_138 = arith.constant 34 : index
    %259 = vector.load %arg4[%c0_137, %c34_138] : memref<32x49xf32, #tpu.memory_space<vmem>>, vector<32x1xf32>
    %260 = vector.broadcast %259 : vector<32x1xf32> to vector<32x256xf32>
    %261 = arith.mulf %258, %260 : vector<32x256xf32>
    %262 = arith.addf %257, %261 : vector<32x256xf32>
    %c0_139 = arith.constant 0 : index
    %c86 = arith.constant 86 : index
    %263 = vector.load %arg10[%c0_139, %c86] : memref<32x384xf32, #tpu.memory_space<vmem>>, vector<32x256xf32>
    %c0_140 = arith.constant 0 : index
    %c41 = arith.constant 41 : index
    %264 = vector.load %arg4[%c0_140, %c41] : memref<32x49xf32, #tpu.memory_space<vmem>>, vector<32x1xf32>
    %265 = vector.broadcast %264 : vector<32x1xf32> to vector<32x256xf32>
    %266 = arith.mulf %263, %265 : vector<32x256xf32>
    %267 = arith.addf %262, %266 : vector<32x256xf32>
    %c0_141 = arith.constant 0 : index
    %c102 = arith.constant 102 : index
    %268 = vector.load %arg10[%c0_141, %c102] : memref<32x384xf32, #tpu.memory_space<vmem>>, vector<32x256xf32>
    %c0_142 = arith.constant 0 : index
    %c48_143 = arith.constant 48 : index
    %269 = vector.load %arg4[%c0_142, %c48_143] : memref<32x49xf32, #tpu.memory_space<vmem>>, vector<32x1xf32>
    %270 = vector.broadcast %269 : vector<32x1xf32> to vector<32x256xf32>
    %271 = arith.mulf %268, %270 : vector<32x256xf32>
    %272 = arith.addf %267, %271 : vector<32x256xf32>
    %c6_144 = arith.constant 6 : index
    %c0_145 = arith.constant 0 : index
    %273 = vector.load %arg6[%c6_144, %c0_145] : memref<7x256xf32, #tpu.memory_space<vmem>>, vector<1x256xf32>
    %274 = vector.broadcast %273 : vector<1x256xf32> to vector<32x256xf32>
    %275 = arith.mulf %272, %274 : vector<32x256xf32>
    %276 = arith.addf %238, %275 : vector<32x256xf32>
    %c0_146 = arith.constant 0 : index
    %c0_147 = arith.constant 0 : index
    %277 = vector.load %arg5[%c0_146, %c0_147] : memref<32x1xf32, #tpu.memory_space<vmem>>, vector<32x1xf32>
    %278 = vector.broadcast %277 : vector<32x1xf32> to vector<32x256xf32>
    %279 = arith.addf %276, %278 : vector<32x256xf32>
    %280 = arith.mulf %9, %279 : vector<32x256xf32>
    %281 = arith.truncf %280 : vector<32x256xf32> to vector<32x256xbf16>
    %c0_148 = arith.constant 0 : index
    %c0_149 = arith.constant 0 : index
    %282 = vector.load %arg7[%c0_148, %c0_149] : memref<32x32xbf16, #tpu.memory_space<vmem>>, vector<32x32xbf16>
    %cst_150 = arith.constant dense<0.000000e+00> : vector<32x256xf32>
    %283 = tpu.matmul %282, %281, %cst_150 {dimension_numbers = #tpu.dot_dimension_numbers<[1], [0], [0], [1], [0, 0, 1, 1], [], []>} : vector<32x32xbf16>, vector<32x256xbf16>, vector<32x256xf32> -> vector<32x256xf32>
    %c0_151 = arith.constant 0 : index
    %c0_152 = arith.constant 0 : index
    %284 = vector.load %arg8[%c0_151, %c0_152] : memref<32x1xf32, #tpu.memory_space<vmem>>, vector<32x1xf32>
    %285 = vector.broadcast %284 : vector<32x1xf32> to vector<32x256xf32>
    %286 = arith.addf %283, %285 : vector<32x256xf32>
    %c0_153 = arith.constant 0 : index
    %c0_154 = arith.constant 0 : index
    %c0_155 = arith.constant 0 : index
    %287 = vector.load %arg9[%c0_153, %c0_154, %c0_155] : memref<1x32x256xf32, #tpu.memory_space<vmem>>, vector<1x32x256xf32>
    %288 = vector.shape_cast %287 : vector<1x32x256xf32> to vector<32x256xf32>
    %289 = vector.shape_cast %286 : vector<32x256xf32> to vector<1x32x256xf32>
    tpu.vector_store %arg9[%c0_153, %c0_154, %c0_155], %289 {strides = array<i32>} : memref<1x32x256xf32, #tpu.memory_space<vmem>>, vector<1x32x256xf32>,
    return
  }
  func.func @transform_0(%arg0: i32) -> (i32, i32, i32) {
    %c0_i32 = arith.constant 0 : i32
    %c0_i32_0 = arith.constant 0 : i32
    %c0_i32_1 = arith.constant 0 : i32
    return %arg0, %c0_i32, %c0_i32_0 : i32, i32, i32
  }
  func.func @transform_1(%arg0: i32) -> (i32, i32) {
    %c0_i32 = arith.constant 0 : i32
    %c0_i32_0 = arith.constant 0 : i32
    %c0_i32_1 = arith.constant 0 : i32
    return %c0_i32, %c0_i32_0 : i32, i32
  }
  func.func @transform_2(%arg0: i32) -> (i32, i32) {
    %c0_i32 = arith.constant 0 : i32
    %c0_i32_0 = arith.constant 0 : i32
    %c0_i32_1 = arith.constant 0 : i32
    return %c0_i32, %c0_i32_0 : i32, i32
  }
  func.func @transform_3(%arg0: i32) -> (i32, i32) {
    %c0_i32 = arith.constant 0 : i32
    %c0_i32_0 = arith.constant 0 : i32
    %c0_i32_1 = arith.constant 0 : i32
    return %c0_i32, %c0_i32_0 : i32, i32
  }
  func.func @transform_4(%arg0: i32) -> (i32, i32) {
    %c0_i32 = arith.constant 0 : i32
    %c0_i32_0 = arith.constant 0 : i32
    %c0_i32_1 = arith.constant 0 : i32
    return %c0_i32, %c0_i32_0 : i32, i32
  }
  func.func @transform_5(%arg0: i32) -> (i32, i32) {
    %c0_i32 = arith.constant 0 : i32
    %c0_i32_0 = arith.constant 0 : i32
    %c0_i32_1 = arith.constant 0 : i32
    return %c0_i32, %c0_i32_0 : i32, i32
  }
  func.func @transform_6(%arg0: i32) -> (i32, i32) {
    %c0_i32 = arith.constant 0 : i32
    %c0_i32_0 = arith.constant 0 : i32
    %c0_i32_1 = arith.constant 0 : i32
    return %c0_i32, %c0_i32_0 : i32, i32
  }
  func.func @transform_7(%arg0: i32) -> (i32, i32) {
    %c0_i32 = arith.constant 0 : i32
    %c0_i32_0 = arith.constant 0 : i32
    %c0_i32_1 = arith.constant 0 : i32
    return %c0_i32, %c0_i32_0 : i32, i32
  }
  func.func @transform_8(%arg0: i32) -> (i32, i32, i32) {
    %c0_i32 = arith.constant 0 : i32
    %c0_i32_0 = arith.constant 0 : i32
    %c0_i32_1 = arith.constant 0 : i32
    return %arg0, %c0_i32, %c0_i32_0 : i32, i32, i32
  }
}

</mosaic_0001>

<llo_original>
// kernel: tpu_custom_call.1
$region0: #{tpu_custom_call.1}
  #allocation0 [shape = 'u32[]', space=smem, size = 0x4, offset = 0x4, fixed_abs, tag = 'smem constant byte address 0x4 - core index']
  #allocation1 [shape = 'u32[72,128]{1,0:T(1,128)}', space=vmem, size = 0x9000, scoped, tag = 'internal scratch']
  #allocation2 [shape = 'f32[32,384]{1,0:T(8,128)}', space=vmem, size = 0xc000, scoped, tag = 'scratch operand']
  %s0 = inlined_call_operand.vmem [shape: bf16[2,16,256], index: 0, kind: input, shape index: {}]
  %s1 = inlined_call_operand.vmem [shape: bf16[64,16], index: 1, kind: input, shape index: {}]
  %s2 = inlined_call_operand.vmem [shape: f32[64,1], index: 2, kind: input, shape index: {}]
  %s3 = inlined_call_operand.vmem [shape: f32[32,49], index: 3, kind: input, shape index: {}]
  %s4 = inlined_call_operand.vmem [shape: f32[32,1], index: 4, kind: input, shape index: {}]
  %s5 = inlined_call_operand.vmem [shape: f32[7,256], index: 5, kind: input, shape index: {}]
  %s6 = inlined_call_operand.vmem [shape: bf16[32,32], index: 6, kind: input, shape index: {}]
  %s7 = inlined_call_operand.vmem [shape: f32[32,1], index: 7, kind: input, shape index: {}]
  %s8 = inlined_call_operand.hbm [shape: f32[2,32,256], index: 8, kind: output, shape index: {}]
  %s9 = sld [smem:[#allocation0]]
  $region65: #{tpu_custom_call.1} parent=0
    _
  %s11 = ssub.s32 1, %s9
  %s12 = scalar_select 0, %s11, %s9
  $region1: #{tpu_custom_call.1} parent=0
    #allocation3 [shape = 'u8[65536]{0}', space=vmem, size = 0x10000, scoped, tag = 'output window, operand 0']
    #allocation4 [shape = 's32[2]{0}', space=sflag, size = 0x8, scoped, tag = 'scoped memory for tpu_custom_call.1']
    %13 = vsyncpa [#allocation4], 0
    %s14 = scalar_lea.sflag [#allocation4], 1
    %15 = vsyncpa %s14, 0
    loop: start=0, step=1, limit=4
    $region2: #{tpu_custom_call.1} parent=1 // loop_pre_header
      _
    $region3: #{tpu_custom_call.1} parent=1 // loop_header
      %s17 = sphi 0, %s21
      %p18 = scmp.ge.s32.totalorder %s17, 4
      %s27 = sphi 0, %s29
      %s30 = sphi 0, %s27
      %s31 = sphi 0, %s30
      %s47 = sphi 0, %s31
      %s51 = sphi 0, %s51
      %s53 = sphi 0, %s51
      %s54 = sphi 0, %s53
      %s68 = sphi 0, %s54
      %s72 = sphi 0, %s72
      %s74 = sphi 0, %s72
      %s75 = sphi 0, %s74
      %s89 = sphi 0, %s75
      %s93 = sphi 0, %s93
      %s95 = sphi 0, %s93
      %s96 = sphi 0, %s95
      %s110 = sphi 0, %s96
      %s114 = sphi 0, %s114
      %s116 = sphi 0, %s114
      %s117 = sphi 0, %s116
      %s131 = sphi 0, %s117
      %s135 = sphi 0, %s135
      %s137 = sphi 0, %s135
      %s138 = sphi 0, %s137
      %s152 = sphi 0, %s138
      %s156 = sphi 0, %s156
      %s158 = sphi 0, %s156
      %s159 = sphi 0, %s158
      %s173 = sphi 0, %s159
      %s177 = sphi 0, %s177
      %s179 = sphi 0, %s177
      %s180 = sphi 0, %s179
      %s194 = sphi 0, %s180
      %s200 = sphi 0, %s202
      %s203 = sphi 0, %s200
      %s204 = sphi 0, %s203
      %s220 = sphi 0, %s204
    $region4: #{tpu_custom_call.1} parent=1 // loop_header_branch
      %20 = sbr.rel (%p18) target = $region8
    $region5: #{tpu_custom_call.1} parent=1 // loop_body
      %s22 = ssub.s32 %s17, 1
      %s23 = ssub.s32 %s17, 2
      %s24 = sadd.s32 %s17, 1
      %s25 = ssub.s32 %s17, %s24
      %p26 = scmp.eq.s32.totalorder %s25, 0
      %s28 = sadd.s32 %s27, 1
      %s29 = scalar_select %p26, %s27, %s28
      %p32 = pneg %p26
      %p33 = scmp.eq.s32.totalorder %s17, 1
      %p34 = por %p32, %p33
      %p35 = scmp.ne.s32.totalorder %s27, %s30
      %p36 = scmp.eq.s32.totalorder %s17, 0
      %p37 = por %p35, %p36
      %p38 = scmp.ne.s32.totalorder %s27, %s30
      %p39 = scmp.eq.s32.totalorder %s22, 1
      %p40 = por %p38, %p39
      %p41 = scmp.ne.s32.totalorder %s30, %s31
      %p42 = scmp.eq.s32.totalorder %s22, 0
      %p43 = por %p41, %p42
      %p44 = scmp.ne.s32.totalorder %s30, %s31
      %p45 = scmp.eq.s32.totalorder %s23, 1
      %p46 = por %p44, %p45
      %p48 = scmp.ne.s32.totalorder %s31, %s47
      %p49 = scmp.eq.s32.totalorder %s23, 0
      %p50 = por %p48, %p49
      %s52 = sadd.s32 %s51, 1
      %p55 = scmp.eq.s32.totalorder %s17, 1
      %p56 = scmp.ne.s32.totalorder %s51, %s53
      %p57 = scmp.eq.s32.totalorder %s17, 0
      %p58 = por %p56, %p57
      %p59 = scmp.ne.s32.totalorder %s51, %s53
      %p60 = scmp.eq.s32.totalorder %s22, 1
      %p61 = por %p59, %p60
      %p62 = scmp.ne.s32.totalorder %s53, %s54
      %p63 = scmp.eq.s32.totalorder %s22, 0
      %p64 = por %p62, %p63
      %p65 = scmp.ne.s32.totalorder %s53, %s54
      %p66 = scmp.eq.s32.totalorder %s23, 1
      %p67 = por %p65, %p66
      %p69 = scmp.ne.s32.totalorder %s54, %s68
      %p70 = scmp.eq.s32.totalorder %s23, 0
      %p71 = por %p69, %p70
      %s73 = sadd.s32 %s72, 1
      %p76 = scmp.eq.s32.totalorder %s17, 1
      %p77 = scmp.ne.s32.totalorder %s72, %s74
      %p78 = scmp.eq.s32.totalorder %s17, 0
      %p79 = por %p77, %p78
      %p80 = scmp.ne.s32.totalorder %s72, %s74
      %p81 = scmp.eq.s32.totalorder %s22, 1
      %p82 = por %p80, %p81
      %p83 = scmp.ne.s32.totalorder %s74, %s75
      %p84 = scmp.eq.s32.totalorder %s22, 0
      %p85 = por %p83, %p84
      %p86 = scmp.ne.s32.totalorder %s74, %s75
      %p87 = scmp.eq.s32.totalorder %s23, 1
      %p88 = por %p86, %p87
      %p90 = scmp.ne.s32.totalorder %s75, %s89
      %p91 = scmp.eq.s32.totalorder %s23, 0
      %p92 = por %p90, %p91
      %s94 = sadd.s32 %s93, 1
      %p97 = scmp.eq.s32.totalorder %s17, 1
      %p98 = scmp.ne.s32.totalorder %s93, %s95
      %p99 = scmp.eq.s32.totalorder %s17, 0
      %p100 = por %p98, %p99
      %p101 = scmp.ne.s32.totalorder %s93, %s95
      %p102 = scmp.eq.s32.totalorder %s22, 1
      %p103 = por %p101, %p102
      %p104 = scmp.ne.s32.totalorder %s95, %s96
      %p105 = scmp.eq.s32.totalorder %s22, 0
      %p106 = por %p104, %p105
      %p107 = scmp.ne.s32.totalorder %s95, %s96
      %p108 = scmp.eq.s32.totalorder %s23, 1
      %p109 = por %p107, %p108
      %p111 = scmp.ne.s32.totalorder %s96, %s110
      %p112 = scmp.eq.s32.totalorder %s23, 0
      %p113 = por %p111, %p112
      %s115 = sadd.s32 %s114, 1
      %p118 = scmp.eq.s32.totalorder %s17, 1
      %p119 = scmp.ne.s32.totalorder %s114, %s116
      %p120 = scmp.eq.s32.totalorder %s17, 0
      %p121 = por %p119, %p120
      %p122 = scmp.ne.s32.totalorder %s114, %s116
      %p123 = scmp.eq.s32.totalorder %s22, 1
      %p124 = por %p122, %p123
      %p125 = scmp.ne.s32.totalorder %s116, %s117
      %p126 = scmp.eq.s32.totalorder %s22, 0
      %p127 = por %p125, %p126
      %p128 = scmp.ne.s32.totalorder %s116, %s117
      %p129 = scmp.eq.s32.totalorder %s23, 1
      %p130 = por %p128, %p129
      %p132 = scmp.ne.s32.totalorder %s117, %s131
      %p133 = scmp.eq.s32.totalorder %s23, 0
      %p134 = por %p132, %p133
      %s136 = sadd.s32 %s135, 1
      %p139 = scmp.eq.s32.totalorder %s17, 1
      %p140 = scmp.ne.s32.totalorder %s135, %s137
      %p141 = scmp.eq.s32.totalorder %s17, 0
      %p142 = por %p140, %p141
      %p143 = scmp.ne.s32.totalorder %s135, %s137
      %p144 = scmp.eq.s32.totalorder %s22, 1
      %p145 = por %p143, %p144
      %p146 = scmp.ne.s32.totalorder %s137, %s138
      %p147 = scmp.eq.s32.totalorder %s22, 0
      %p148 = por %p146, %p147
      %p149 = scmp.ne.s32.totalorder %s137, %s138
      %p150 = scmp.eq.s32.totalorder %s23, 1
      %p151 = por %p149, %p150
      %p153 = scmp.ne.s32.totalorder %s138, %s152
      %p154 = scmp.eq.s32.totalorder %s23, 0
      %p155 = por %p153, %p154
      %s157 = sadd.s32 %s156, 1
      %p160 = scmp.eq.s32.totalorder %s17, 1
      %p161 = scmp.ne.s32.totalorder %s156, %s158
      %p162 = scmp.eq.s32.totalorder %s17, 0
      %p163 = por %p161, %p162
      %p164 = scmp.ne.s32.totalorder %s156, %s158
      %p165 = scmp.eq.s32.totalorder %s22, 1
      %p166 = por %p164, %p165
      %p167 = scmp.ne.s32.totalorder %s158, %s159
      %p168 = scmp.eq.s32.totalorder %s22, 0
      %p169 = por %p167, %p168
      %p170 = scmp.ne.s32.totalorder %s158, %s159
      %p171 = scmp.eq.s32.totalorder %s23, 1
      %p172 = por %p170, %p171
      %p174 = scmp.ne.s32.totalorder %s159, %s173
      %p175 = scmp.eq.s32.totalorder %s23, 0
      %p176 = por %p174, %p175
      %s178 = sadd.s32 %s177, 1
      %p181 = scmp.eq.s32.totalorder %s17, 1
      %p182 = scmp.ne.s32.totalorder %s177, %s179
      %p183 = scmp.eq.s32.totalorder %s17, 0
      %p184 = por %p182, %p183
      %p185 = scmp.ne.s32.totalorder %s177, %s179
      %p186 = scmp.eq.s32.totalorder %s22, 1
      %p187 = por %p185, %p186
      %p188 = scmp.ne.s32.totalorder %s179, %s180
      %p189 = scmp.eq.s32.totalorder %s22, 0
      %p190 = por %p188, %p189
      %p191 = scmp.ne.s32.totalorder %s179, %s180
      %p192 = scmp.eq.s32.totalorder %s23, 1
      %p193 = por %p191, %p192
      %p195 = scmp.ne.s32.totalorder %s180, %s194
      %p196 = scmp.eq.s32.totalorder %s23, 0
      %p197 = por %p195, %p196
      %s198 = ssub.s32 %s17, %s24
      %p199 = scmp.eq.s32.totalorder %s198, 0
      %s201 = sadd.s32 %s200, 1
      %s202 = scalar_select %p199, %s200, %s201
      %p205 = pneg %p199
      %p206 = scmp.eq.s32.totalorder %s17, 1
      %p207 = por %p205, %p206
      %p208 = scmp.ne.s32.totalorder %s200, %s203
      %p209 = scmp.eq.s32.totalorder %s17, 0
      %p210 = por %p208, %p209
      %p211 = scmp.ne.s32.totalorder %s200, %s203
      %p212 = scmp.eq.s32.totalorder %s22, 1
      %p213 = por %p211, %p212
      %p214 = scmp.ne.s32.totalorder %s203, %s204
      %p215 = scmp.eq.s32.totalorder %s22, 0
      %p216 = por %p214, %p215
      %p217 = scmp.ne.s32.totalorder %s203, %s204
      %p218 = scmp.eq.s32.totalorder %s23, 1
      %p219 = por %p217, %p218
      %p221 = scmp.ne.s32.totalorder %s204, %s220
      %p222 = scmp.eq.s32.totalorder %s23, 0
      %p223 = por %p221, %p222
      %p224 = scmp.le.s32.totalorder 1, %s17
      %p225 = scmp.lt.s32.totalorder %s17, 3
      %p226 = pnand %p224, %p225
      %p227 = pneg %p226
      // Predicated region
      $region9: #{tpu_custom_call.1} parent=5 // pred_check
        _
      $region10: #{tpu_custom_call.1} parent=5 // pred_check_branch
        %229 = sbr.rel (%p226) target = $region12
      $region11: #{tpu_custom_call.1} parent=5 // pred_region
        %s230 = ssub.s32 %s17, 1
        // Predicated region
        $region13: #{tpu_custom_call.1} parent=11 // pred_check
          %p231 = pneg %p64
        $region14: #{tpu_custom_call.1} parent=11 // pred_check_branch
          %233 = sbr.rel (%p231) target = $region16
        $region15: #{tpu_custom_call.1} parent=11 // pred_region
          _
        $region16: #{tpu_custom_call.1} parent=11 // pred_fallthru
          _
        // Predicated region
        $region17: #{tpu_custom_call.1} parent=11 // pred_check
          %p234 = pneg %p85
        $region18: #{tpu_custom_call.1} parent=11 // pred_check_branch
          %236 = sbr.rel (%p234) target = $region20
        $region19: #{tpu_custom_call.1} parent=11 // pred_region
          _
        $region20: #{tpu_custom_call.1} parent=11 // pred_fallthru
          _
        // Predicated region
        $region21: #{tpu_custom_call.1} parent=11 // pred_check
          %p237 = pneg %p106
        $region22: #{tpu_custom_call.1} parent=11 // pred_check_branch
          %239 = sbr.rel (%p237) target = $region24
        $region23: #{tpu_custom_call.1} parent=11 // pred_region
          _
        $region24: #{tpu_custom_call.1} parent=11 // pred_fallthru
          _
        // Predicated region
        $region25: #{tpu_custom_call.1} parent=11 // pred_check
          %p240 = pneg %p127
        $region26: #{tpu_custom_call.1} parent=11 // pred_check_branch
          %242 = sbr.rel (%p240) target = $region28
        $region27: #{tpu_custom_call.1} parent=11 // pred_region
          _
        $region28: #{tpu_custom_call.1} parent=11 // pred_fallthru
          _
        // Predicated region
        $region29: #{tpu_custom_call.1} parent=11 // pred_check
          %p243 = pneg %p148
        $region30: #{tpu_custom_call.1} parent=11 // pred_check_branch
          %245 = sbr.rel (%p243) target = $region32
        $region31: #{tpu_custom_call.1} parent=11 // pred_region
          _
        $region32: #{tpu_custom_call.1} parent=11 // pred_fallthru
          _
        // Predicated region
        $region33: #{tpu_custom_call.1} parent=11 // pred_check
          %p246 = pneg %p169
        $region34: #{tpu_custom_call.1} parent=11 // pred_check_branch
          %248 = sbr.rel (%p246) target = $region36
        $region35: #{tpu_custom_call.1} parent=11 // pred_region
          _
        $region36: #{tpu_custom_call.1} parent=11 // pred_fallthru
          _
        // Predicated region
        $region37: #{tpu_custom_call.1} parent=11 // pred_check
          %p249 = pneg %p190
        $region38: #{tpu_custom_call.1} parent=11 // pred_check_branch
          %251 = sbr.rel (%p249) target = $region40
        $region39: #{tpu_custom_call.1} parent=11 // pred_region
          _
        $region40: #{tpu_custom_call.1} parent=11 // pred_fallthru
          _
      $region12: #{tpu_custom_call.1} parent=5 // pred_fallthru
        _
      %p252 = scmp.lt.s32.totalorder %s17, 2
      // Predicated region
      $region41: #{tpu_custom_call.1} parent=5 // pred_check
        %p253 = pneg %p252
      $region42: #{tpu_custom_call.1} parent=5 // pred_check_branch
        %255 = sbr.rel (%p253) target = $region44
      $region43: #{tpu_custom_call.1} parent=5 // pred_region
        // Predicated region
        $region45: #{tpu_custom_call.1} parent=43 // pred_check
          %p256 = pneg %p37
        $region46: #{tpu_custom_call.1} parent=43 // pred_check_branch
          %258 = sbr.rel (%p256) target = $region48
        $region47: #{tpu_custom_call.1} parent=43 // pred_region
          %p259 = scmp.lt.s32.totalorder %s17, 1
          %s260 = scalar_select %p259, %s17, 1
          %s261 = smul.addr %s260, 4
          %s262 = smul.addr %s261, 4
          %s263 = scalar_lea.vmem %s0, %s262
        $region48: #{tpu_custom_call.1} parent=43 // pred_fallthru
          _
      $region44: #{tpu_custom_call.1} parent=5 // pred_fallthru
        _
      %p264 = scmp.le.s32.totalorder 1, %s17
      %p265 = scmp.lt.s32.totalorder %s17, 3
      %p266 = pnand %p264, %p265
      %p267 = pneg %p266
      // Predicated region
      $region49: #{tpu_custom_call.1} parent=5 // pred_check
        _
      $region50: #{tpu_custom_call.1} parent=5 // pred_check_branch
        %269 = sbr.rel (%p266) target = $region52
      $region51: #{tpu_custom_call.1} parent=5 // pred_region
        %s270 = ssub.s32 %s17, 1
        %p271 = scmp.lt.s32.totalorder %s22, 1
        %s272 = scalar_select %p271, %s22, 1
        %s273 = smul.addr %s272, 4
        %s274 = smul.addr %s273, 4
        %s275 = scalar_lea.vmem %s0, %s274
        %p276 = pneg %p43
        %p277 = pneg %p40
        %p278 = pneg %p64
        %p279 = pneg %p61
        %p280 = pneg %p85
        %p281 = pneg %p82
        %p282 = pneg %p106
        %p283 = pneg %p103
        %p284 = pneg %p127
        %p285 = pneg %p124
        %p286 = pneg %p148
        %p287 = pneg %p145
        %p288 = pneg %p169
        %p289 = pneg %p166
        %p290 = pneg %p190
        %p291 = pneg %p187
        %p292 = pneg %p216
        %p293 = pneg %p213
        %s294 = sand.u32 %s203, 1
        %s295 = scalar_lea.sflag [#allocation4], %s294
        %s296 = sand.u32 %s203, 1
        %s297 = smul.addr %s296, 64
        %s298 = scalar_lea.vmem [#allocation3], %s297
        %p299 = scmp.lt.s32.totalorder %s22, 1
        %s300 = scalar_select %p299, %s22, 1
        %s301 = smul.addr %s300, 4
        %s302 = smul.addr %s301, 4
        %s303 = scalar_lea.vmem %s0, %s302
        %305 = vst [vmem:[#allocation2] sm:$0xff] 0.0
        %306 = vst [vmem:[#allocation2 + $0x8] sm:$0xff] 0.0
        %307 = vst [vmem:[#allocation2 + $0x10] sm:$0xff] 0.0
        %308 = vst [vmem:[#allocation2 + $0x18] sm:$0xff] 0.0
        %309 = vst [vmem:[#allocation2 + $0x20] sm:$0xff] 0.0
        %310 = vst [vmem:[#allocation2 + $0x28] sm:$0xff] 0.0
        %311 = vst [vmem:[#allocation2 + $0x30] sm:$0xff] 0.0
        %312 = vst [vmem:[#allocation2 + $0x38] sm:$0xff] 0.0
        %313 = vst [vmem:[#allocation2 + $0x40] sm:$0xff] 0.0
        %314 = vst [vmem:[#allocation2 + $0x48] sm:$0xff] 0.0
        %315 = vst [vmem:[#allocation2 + $0x50] sm:$0xff] 0.0
        %316 = vst [vmem:[#allocation2 + $0x58] sm:$0xff] 0.0
        %v317 = vld [vmem:[%s1] sm:$0xf]
        %v318 = vld [vmem:[%s1 + $0x4] sm:$0xf]
        %v319 = vld [vmem:[%s1 + $0x8] sm:$0xf]
        %v320 = vld [vmem:[%s1 + $0xc] sm:$0xf]
        %v321 = vld [vmem:[%s1 + $0x10] sm:$0xf]
        %v322 = vld [vmem:[%s1 + $0x14] sm:$0xf]
        %v323 = vld [vmem:[%s1 + $0x18] sm:$0xf]
        %v324 = vld [vmem:[%s1 + $0x1c] sm:$0xf]
        %v325 = vld [vmem:[%s303] sm:$0xff]
        %v326 = vld [vmem:[%s303 + $0x8] sm:$0xff]
        %v327 = vld [vmem:[%s2] sm:$0xff]
        %v328 = vld [vmem:[%s2 + $0x8] sm:$0xff]
        %v329 = vld [vmem:[%s2 + $0x10] sm:$0xff]
        %v330 = vld [vmem:[%s2 + $0x18] sm:$0xff]
        %v331 = vld [vmem:[%s2 + $0x20] sm:$0xff]
        %v332 = vld [vmem:[%s2 + $0x28] sm:$0xff]
        %v333 = vld [vmem:[%s2 + $0x30] sm:$0xff]
        %v334 = vld [vmem:[%s2 + $0x38] sm:$0xff]
        %336 = vset.pattern.permute.xlu0 0
        %337 = vperm.xlu0 %336, %v327
        %v338 = vpop.permute.xlu0 %337
        %341 = vset.pattern.permute.xlu0 0
        %342 = vperm.xlu0 %341, %v328
        %v343 = vpop.permute.xlu0 %342
        %346 = vset.pattern.permute.xlu0 0
        %347 = vperm.xlu0 %346, %v329
        %v348 = vpop.permute.xlu0 %347
        %351 = vset.pattern.permute.xlu0 0
        %352 = vperm.xlu0 %351, %v330
        %v353 = vpop.permute.xlu0 %352
        %356 = vset.pattern.permute.xlu0 0
        %357 = vperm.xlu0 %356, %v331
        %v358 = vpop.permute.xlu0 %357
        %361 = vset.pattern.permute.xlu0 0
        %362 = vperm.xlu0 %361, %v332
        %v363 = vpop.permute.xlu0 %362
        %366 = vset.pattern.permute.xlu0 0
        %367 = vperm.xlu0 %366, %v333
        %v368 = vpop.permute.xlu0 %367
        %371 = vset.pattern.permute.xlu0 0
        %372 = vperm.xlu0 %371, %v334
        %v373 = vpop.permute.xlu0 %372
        %v383 = vunpack.c.l.b16 %v317
        %v384 = vunpack.c.l.b16 %v318
        %v385 = vunpack.c.l.b16 %v319
        %v386 = vunpack.c.l.b16 %v320
        %v387 = vunpack.c.l.b16 %v321
        %v388 = vunpack.c.l.b16 %v322
        %v389 = vunpack.c.l.b16 %v323
        %v390 = vunpack.c.l.b16 %v324
        %v391 = vpack.c.b16 %v384, %v383
        %v392 = vpack.c.b16 %v386, %v385
        %v393 = vpack.c.b16 %v388, %v387
        %v394 = vpack.c.b16 %v390, %v389
        %v397 = vunpack.c.l.b16 %v325
        %v398 = vunpack.c.h.b16 %v325
        %v399 = vunpack.c.l.b16 %v326
        %v400 = vunpack.c.h.b16 %v326
        %v401 = vpack.c.b16 %v399, %v397
        %v402 = vpack.c.b16 %v400, %v398
        %vm405 = vcmask 130048
        %v407 = vsel %vm405, %v391, 0
        %v410 = vsel %vm405, %v392, 0
        %v413 = vsel %vm405, %v393, 0
        %v416 = vsel %vm405, %v394, 0
        %418 = vmatpush.bf16.msra.mxu0 0
        %419 = vmatpush.bf16.msra.mxu0 0
        %420 = vmatpush.bf16.msra.mxu0 0
        %421 = vmatpush.bf16.msra.mxu0 0
        %422 = vmatpush.bf16.msra.mxu0 0
        %423 = vmatpush.bf16.msra.mxu0 0
        %424 = vmatpush.bf16.msra.mxu0 0
        %425 = vmatpush.bf16.msra.mxu0 %v401
        %426 = vmatmul.bf16.gmra.mxu0 %v407
        %v427 = vpop.f32.mrf.mxu0
        %v428 = vadd.f32 %v338, %v427
        %v429 = vpop.f32.mrf.mxu0
        %v430 = vadd.f32 %v343, %v429
        %431 = vmatmul.bf16.gmra.mxu0 %v410
        %v432 = vpop.f32.mrf.mxu0
        %v433 = vadd.f32 %v348, %v432
        %v434 = vpop.f32.mrf.mxu0
        %v435 = vadd.f32 %v353, %v434
        %436 = vmatmul.bf16.gmra.mxu0 %v413
        %v437 = vpop.f32.mrf.mxu0
        %v438 = vadd.f32 %v358, %v437
        %v439 = vpop.f32.mrf.mxu0
        %v440 = vadd.f32 %v363, %v439
        %441 = vmatmul.bf16.gmra.mxu0 %v416
        %v442 = vpop.f32.mrf.mxu0
        %v443 = vadd.f32 %v368, %v442
        %v444 = vpop.f32.mrf.mxu0
        %v445 = vadd.f32 %v373, %v444
        %446 = vdwg.mxu0
        %447 = vmatpush.bf16.msra.mxu0 0
        %448 = vmatpush.bf16.msra.mxu0 0
        %449 = vmatpush.bf16.msra.mxu0 0
        %450 = vmatpush.bf16.msra.mxu0 0
        %451 = vmatpush.bf16.msra.mxu0 0
        %452 = vmatpush.bf16.msra.mxu0 0
        %453 = vmatpush.bf16.msra.mxu0 0
        %454 = vmatpush.bf16.msra.mxu0 %v402
        %455 = vmatmul.bf16.gmra.mxu0 %v407
        %v456 = vpop.f32.mrf.mxu0
        %v457 = vadd.f32 %v338, %v456
        %v458 = vpop.f32.mrf.mxu0
        %v459 = vadd.f32 %v343, %v458
        %460 = vmatmul.bf16.gmra.mxu0 %v410
        %v461 = vpop.f32.mrf.mxu0
        %v462 = vadd.f32 %v348, %v461
        %v463 = vpop.f32.mrf.mxu0
        %v464 = vadd.f32 %v353, %v463
        %465 = vmatmul.bf16.gmra.mxu0 %v413
        %v466 = vpop.f32.mrf.mxu0
        %v467 = vadd.f32 %v358, %v466
        %v468 = vpop.f32.mrf.mxu0
        %v469 = vadd.f32 %v363, %v468
        %470 = vmatmul.bf16.gmra.mxu0 %v416
        %v471 = vpop.f32.mrf.mxu0
        %v472 = vadd.f32 %v368, %v471
        %v473 = vpop.f32.mrf.mxu0
        %v474 = vadd.f32 %v373, %v473
        %475 = vdwg.mxu0
        %484 = vrot.lane.b32.xlu0 %v438, 51
        %v485 = vpop.permute.xlu0 %484
        %486 = vrot.lane.b32.xlu0 %v467, 51
        %v487 = vpop.permute.xlu0 %486
        %488 = vrot.lane.b32.xlu0 %v440, 51
        %v489 = vpop.permute.xlu0 %488
        %490 = vrot.lane.b32.xlu0 %v469, 51
        %v491 = vpop.permute.xlu0 %490
        %492 = vrot.lane.b32.xlu0 %v443, 51
        %v493 = vpop.permute.xlu0 %492
        %494 = vrot.lane.b32.xlu0 %v472, 51
        %v495 = vpop.permute.xlu0 %494
        %496 = vrot.lane.b32.xlu0 %v445, 51
        %v497 = vpop.permute.xlu0 %496
        %498 = vrot.lane.b32.xlu0 %v474, 51
        %v499 = vpop.permute.xlu0 %498
        %vm500 = vcmask 416768
        %v501 = vsel %vm500, %v485, %v487
        %v502 = vsel %vm500, %v489, %v491
        %v503 = vsel %vm500, %v493, %v495
        %v504 = vsel %vm500, %v497, %v499
        %vm517 = vcmask 1047960
        %518 = vst.msk [vmem:[#allocation2] sm:$0xff] %vm517, %v485
        %519 = vst [vmem:[#allocation2 + $0x8] sm:$0xff] %v501
        %520 = vst.msk [vmem:[#allocation2 + $0x10] sm:$0xff] %vm500, %v487
        %521 = vst.msk [vmem:[#allocation2 + $0x18] sm:$0xff] %vm517, %v489
        %522 = vst [vmem:[#allocation2 + $0x20] sm:$0xff] %v502
        %523 = vst.msk [vmem:[#allocation2 + $0x28] sm:$0xff] %vm500, %v491
        %524 = vst.msk [vmem:[#allocation2 + $0x30] sm:$0xff] %vm517, %v493
        %525 = vst [vmem:[#allocation2 + $0x38] sm:$0xff] %v503
        %526 = vst.msk [vmem:[#allocation2 + $0x40] sm:$0xff] %vm500, %v495
        %527 = vst.msk [vmem:[#allocation2 + $0x48] sm:$0xff] %vm517, %v497
        %528 = vst [vmem:[#allocation2 + $0x50] sm:$0xff] %v504
        %529 = vst.msk [vmem:[#allocation2 + $0x58] sm:$0xff] %vm500, %v499
        %v530 = vld [vmem:[#allocation2] sm:$0xff]
        %v531 = vld [vmem:[#allocation2 + $0x8] sm:$0xff]
        %v532 = vld [vmem:[#allocation2 + $0x18] sm:$0xff]
        %v533 = vld [vmem:[#allocation2 + $0x20] sm:$0xff]
        %v534 = vld [vmem:[#allocation2 + $0x30] sm:$0xff]
        %v535 = vld [vmem:[#allocation2 + $0x38] sm:$0xff]
        %v536 = vld [vmem:[#allocation2 + $0x48] sm:$0xff]
        %v537 = vld [vmem:[#allocation2 + $0x50] sm:$0xff]
        %v538 = vld [vmem:[%s3] sm:$0xff]
        %v539 = vld [vmem:[%s3 + $0x8] sm:$0xff]
        %v540 = vld [vmem:[%s3 + $0x10] sm:$0xff]
        %v541 = vld [vmem:[%s3 + $0x18] sm:$0xff]
        %543 = vset.pattern.permute.xlu0 0
        %544 = vperm.xlu0 %543, %v538
        %v545 = vpop.permute.xlu0 %544
        %548 = vset.pattern.permute.xlu0 0
        %549 = vperm.xlu0 %548, %v539
        %v550 = vpop.permute.xlu0 %549
        %553 = vset.pattern.permute.xlu0 0
        %554 = vperm.xlu0 %553, %v540
        %v555 = vpop.permute.xlu0 %554
        %558 = vset.pattern.permute.xlu0 0
        %559 = vperm.xlu0 %558, %v541
        %v560 = vpop.permute.xlu0 %559
        %v562 = vmul.f32 %v530, %v545
        %v563 = vmul.f32 %v531, %v545
        %v564 = vmul.f32 %v532, %v550
        %v565 = vmul.f32 %v533, %v550
        %v566 = vmul.f32 %v534, %v555
        %v567 = vmul.f32 %v535, %v555
        %v568 = vmul.f32 %v536, %v560
        %v569 = vmul.f32 %v537, %v560
        %v570 = vld [vmem:[#allocation2] sm:$0xff]
        %v571 = vld [vmem:[#allocation2 + $0x8] sm:$0xff]
        %v572 = vld [vmem:[#allocation2 + $0x10] sm:$0xff]
        %v573 = vld [vmem:[#allocation2 + $0x18] sm:$0xff]
        %v574 = vld [vmem:[#allocation2 + $0x20] sm:$0xff]
        %v575 = vld [vmem:[#allocation2 + $0x28] sm:$0xff]
        %v576 = vld [vmem:[#allocation2 + $0x30] sm:$0xff]
        %v577 = vld [vmem:[#allocation2 + $0x38] sm:$0xff]
        %v578 = vld [vmem:[#allocation2 + $0x40] sm:$0xff]
        %v579 = vld [vmem:[#allocation2 + $0x48] sm:$0xff]
        %v580 = vld [vmem:[#allocation2 + $0x50] sm:$0xff]
        %v581 = vld [vmem:[#allocation2 + $0x58] sm:$0xff]
        %582 = vset.pattern.permute.xlu0 7
        %583 = vperm.xlu0 %582, %v538
        %v584 = vpop.permute.xlu0 %583
        %586 = vset.pattern.permute.xlu0 7
        %587 = vperm.xlu0 %586, %v539
        %v588 = vpop.permute.xlu0 %587
        %590 = vset.pattern.permute.xlu0 7
        %591 = vperm.xlu0 %590, %v540
        %v592 = vpop.permute.xlu0 %591
        %594 = vset.pattern.permute.xlu0 7
        %595 = vperm.xlu0 %594, %v541
        %v596 = vpop.permute.xlu0 %595
        %v598 = vmul.f32 %v570, %v584
        %v599 = vmul.f32 %v571, %v584
        %v600 = vmul.f32 %v572, %v584
        %v601 = vmul.f32 %v573, %v588
        %v602 = vmul.f32 %v574, %v588
        %v603 = vmul.f32 %v575, %v588
        %v604 = vmul.f32 %v576, %v592
        %v605 = vmul.f32 %v577, %v592
        %v606 = vmul.f32 %v578, %v592
        %v607 = vmul.f32 %v579, %v596
        %v608 = vmul.f32 %v580, %v596
        %v609 = vmul.f32 %v581, %v596
        %622 = vrot.lane.b32.xlu0 %v598, 112
        %v623 = vpop.permute.xlu0 %622
        %624 = vrot.lane.b32.xlu0 %v599, 112
        %v625 = vpop.permute.xlu0 %624
        %626 = vrot.lane.b32.xlu0 %v600, 112
        %v627 = vpop.permute.xlu0 %626
        %628 = vrot.lane.b32.xlu0 %v601, 112
        %v629 = vpop.permute.xlu0 %628
        %630 = vrot.lane.b32.xlu0 %v602, 112
        %v631 = vpop.permute.xlu0 %630
        %632 = vrot.lane.b32.xlu0 %v603, 112
        %v633 = vpop.permute.xlu0 %632
        %634 = vrot.lane.b32.xlu0 %v604, 112
        %v635 = vpop.permute.xlu0 %634
        %636 = vrot.lane.b32.xlu0 %v605, 112
        %v637 = vpop.permute.xlu0 %636
        %638 = vrot.lane.b32.xlu0 %v606, 112
        %v639 = vpop.permute.xlu0 %638
        %640 = vrot.lane.b32.xlu0 %v607, 112
        %v641 = vpop.permute.xlu0 %640
        %642 = vrot.lane.b32.xlu0 %v608, 112
        %v643 = vpop.permute.xlu0 %642
        %644 = vrot.lane.b32.xlu0 %v609, 112
        %v645 = vpop.permute.xlu0 %644
        %vm646 = vcmask 916480
        %v647 = vsel %vm646, %v623, %v625
        %v648 = vsel %vm646, %v625, %v627
        %v649 = vsel %vm646, %v629, %v631
        %v650 = vsel %vm646, %v631, %v633
        %v651 = vsel %vm646, %v635, %v637
        %v652 = vsel %vm646, %v637, %v639
        %v653 = vsel %vm646, %v641, %v643
        %v654 = vsel %vm646, %v643, %v645
        %v663 = vadd.f32 %v562, %v647
        %v664 = vadd.f32 %v563, %v648
        %v665 = vadd.f32 %v564, %v649
        %v666 = vadd.f32 %v565, %v650
        %v667 = vadd.f32 %v566, %v651
        %v668 = vadd.f32 %v567, %v652
        %v669 = vadd.f32 %v568, %v653
        %v670 = vadd.f32 %v569, %v654
        %671 = vset.pattern.permute.xlu0 14
        %672 = vperm.xlu0 %671, %v538
        %v673 = vpop.permute.xlu0 %672
        %675 = vset.pattern.permute.xlu0 14
        %676 = vperm.xlu0 %675, %v539
        %v677 = vpop.permute.xlu0 %676
        %679 = vset.pattern.permute.xlu0 14
        %680 = vperm.xlu0 %679, %v540
        %v681 = vpop.permute.xlu0 %680
        %683 = vset.pattern.permute.xlu0 14
        %684 = vperm.xlu0 %683, %v541
        %v685 = vpop.permute.xlu0 %684
        %v687 = vmul.f32 %v570, %v673
        %v688 = vmul.f32 %v571, %v673
        %v689 = vmul.f32 %v572, %v673
        %v690 = vmul.f32 %v573, %v677
        %v691 = vmul.f32 %v574, %v677
        %v692 = vmul.f32 %v575, %v677
        %v693 = vmul.f32 %v576, %v681
        %v694 = vmul.f32 %v577, %v681
        %v695 = vmul.f32 %v578, %v681
        %v696 = vmul.f32 %v579, %v685
        %v697 = vmul.f32 %v580, %v685
        %v698 = vmul.f32 %v581, %v685
        %711 = vrot.lane.b32.xlu0 %v687, 96
        %v712 = vpop.permute.xlu0 %711
        %713 = vrot.lane.b32.xlu0 %v688, 96
        %v714 = vpop.permute.xlu0 %713
        %715 = vrot.lane.b32.xlu0 %v689, 96
        %v716 = vpop.permute.xlu0 %715
        %717 = vrot.lane.b32.xlu0 %v690, 96
        %v718 = vpop.permute.xlu0 %717
        %719 = vrot.lane.b32.xlu0 %v691, 96
        %v720 = vpop.permute.xlu0 %719
        %721 = vrot.lane.b32.xlu0 %v692, 96
        %v722 = vpop.permute.xlu0 %721
        %723 = vrot.lane.b32.xlu0 %v693, 96
        %v724 = vpop.permute.xlu0 %723
        %725 = vrot.lane.b32.xlu0 %v694, 96
        %v726 = vpop.permute.xlu0 %725
        %727 = vrot.lane.b32.xlu0 %v695, 96
        %v728 = vpop.permute.xlu0 %727
        %729 = vrot.lane.b32.xlu0 %v696, 96
        %v730 = vpop.permute.xlu0 %729
        %731 = vrot.lane.b32.xlu0 %v697, 96
        %v732 = vpop.permute.xlu0 %731
        %733 = vrot.lane.b32.xlu0 %v698, 96
        %v734 = vpop.permute.xlu0 %733
        %vm735 = vcmask 785408
        %v736 = vsel %vm735, %v712, %v714
        %v737 = vsel %vm735, %v714, %v716
        %v738 = vsel %vm735, %v718, %v720
        %v739 = vsel %vm735, %v720, %v722
        %v740 = vsel %vm735, %v724, %v726
        %v741 = vsel %vm735, %v726, %v728
        %v742 = vsel %vm735, %v730, %v732
        %v743 = vsel %vm735, %v732, %v734
        %v752 = vadd.f32 %v663, %v736
        %v753 = vadd.f32 %v664, %v737
        %v754 = vadd.f32 %v665, %v738
        %v755 = vadd.f32 %v666, %v739
        %v756 = vadd.f32 %v667, %v740
        %v757 = vadd.f32 %v668, %v741
        %v758 = vadd.f32 %v669, %v742
        %v759 = vadd.f32 %v670, %v743
        %760 = vset.pattern.permute.xlu0 21
        %761 = vperm.xlu0 %760, %v538
        %v762 = vpop.permute.xlu0 %761
        %764 = vset.pattern.permute.xlu0 21
        %765 = vperm.xlu0 %764, %v539
        %v766 = vpop.permute.xlu0 %765
        %768 = vset.pattern.permute.xlu0 21
        %769 = vperm.xlu0 %768, %v540
        %v770 = vpop.permute.xlu0 %769
        %772 = vset.pattern.permute.xlu0 21
        %773 = vperm.xlu0 %772, %v541
        %v774 = vpop.permute.xlu0 %773
        %v776 = vmul.f32 %v570, %v762
        %v777 = vmul.f32 %v571, %v762
        %v778 = vmul.f32 %v572, %v762
        %v779 = vmul.f32 %v573, %v766
        %v780 = vmul.f32 %v574, %v766
        %v781 = vmul.f32 %v575, %v766
        %v782 = vmul.f32 %v576, %v770
        %v783 = vmul.f32 %v577, %v770
        %v784 = vmul.f32 %v578, %v770
        %v785 = vmul.f32 %v579, %v774
        %v786 = vmul.f32 %v580, %v774
        %v787 = vmul.f32 %v581, %v774
        %800 = vrot.lane.b32.xlu0 %v776, 80
        %v801 = vpop.permute.xlu0 %800
        %802 = vrot.lane.b32.xlu0 %v777, 80
        %v803 = vpop.permute.xlu0 %802
        %804 = vrot.lane.b32.xlu0 %v778, 80
        %v805 = vpop.permute.xlu0 %804
        %806 = vrot.lane.b32.xlu0 %v779, 80
        %v807 = vpop.permute.xlu0 %806
        %808 = vrot.lane.b32.xlu0 %v780, 80
        %v809 = vpop.permute.xlu0 %808
        %810 = vrot.lane.b32.xlu0 %v781, 80
        %v811 = vpop.permute.xlu0 %810
        %812 = vrot.lane.b32.xlu0 %v782, 80
        %v813 = vpop.permute.xlu0 %812
        %814 = vrot.lane.b32.xlu0 %v783, 80
        %v815 = vpop.permute.xlu0 %814
        %816 = vrot.lane.b32.xlu0 %v784, 80
        %v817 = vpop.permute.xlu0 %816
        %818 = vrot.lane.b32.xlu0 %v785, 80
        %v819 = vpop.permute.xlu0 %818
        %820 = vrot.lane.b32.xlu0 %v786, 80
        %v821 = vpop.permute.xlu0 %820
        %822 = vrot.lane.b32.xlu0 %v787, 80
        %v823 = vpop.permute.xlu0 %822
        %vm824 = vcmask 654336
        %v825 = vsel %vm824, %v801, %v803
        %v826 = vsel %vm824, %v803, %v805
        %v827 = vsel %vm824, %v807, %v809
        %v828 = vsel %vm824, %v809, %v811
        %v829 = vsel %vm824, %v813, %v815
        %v830 = vsel %vm824, %v815, %v817
        %v831 = vsel %vm824, %v819, %v821
        %v832 = vsel %vm824, %v821, %v823
        %v841 = vadd.f32 %v752, %v825
        %v842 = vadd.f32 %v753, %v826
        %v843 = vadd.f32 %v754, %v827
        %v844 = vadd.f32 %v755, %v828
        %v845 = vadd.f32 %v756, %v829
        %v846 = vadd.f32 %v757, %v830
        %v847 = vadd.f32 %v758, %v831
        %v848 = vadd.f32 %v759, %v832
        %849 = vset.pattern.permute.xlu0 28
        %850 = vperm.xlu0 %849, %v538
        %v851 = vpop.permute.xlu0 %850
        %853 = vset.pattern.permute.xlu0 28
        %854 = vperm.xlu0 %853, %v539
        %v855 = vpop.permute.xlu0 %854
        %857 = vset.pattern.permute.xlu0 28
        %858 = vperm.xlu0 %857, %v540
        %v859 = vpop.permute.xlu0 %858
        %861 = vset.pattern.permute.xlu0 28
        %862 = vperm.xlu0 %861, %v541
        %v863 = vpop.permute.xlu0 %862
        %v865 = vmul.f32 %v570, %v851
        %v866 = vmul.f32 %v571, %v851
        %v867 = vmul.f32 %v572, %v851
        %v868 = vmul.f32 %v573, %v855
        %v869 = vmul.f32 %v574, %v855
        %v870 = vmul.f32 %v575, %v855
        %v871 = vmul.f32 %v576, %v859
        %v872 = vmul.f32 %v577, %v859
        %v873 = vmul.f32 %v578, %v859
        %v874 = vmul.f32 %v579, %v863
        %v875 = vmul.f32 %v580, %v863
        %v876 = vmul.f32 %v581, %v863
        %889 = vrot.lane.b32.xlu0 %v865, 64
        %v890 = vpop.permute.xlu0 %889
        %891 = vrot.lane.b32.xlu0 %v866, 64
        %v892 = vpop.permute.xlu0 %891
        %893 = vrot.lane.b32.xlu0 %v867, 64
        %v894 = vpop.permute.xlu0 %893
        %895 = vrot.lane.b32.xlu0 %v868, 64
        %v896 = vpop.permute.xlu0 %895
        %897 = vrot.lane.b32.xlu0 %v869, 64
        %v898 = vpop.permute.xlu0 %897
        %899 = vrot.lane.b32.xlu0 %v870, 64
        %v900 = vpop.permute.xlu0 %899
        %901 = vrot.lane.b32.xlu0 %v871, 64
        %v902 = vpop.permute.xlu0 %901
        %903 = vrot.lane.b32.xlu0 %v872, 64
        %v904 = vpop.permute.xlu0 %903
        %905 = vrot.lane.b32.xlu0 %v873, 64
        %v906 = vpop.permute.xlu0 %905
        %907 = vrot.lane.b32.xlu0 %v874, 64
        %v908 = vpop.permute.xlu0 %907
        %909 = vrot.lane.b32.xlu0 %v875, 64
        %v910 = vpop.permute.xlu0 %909
        %911 = vrot.lane.b32.xlu0 %v876, 64
        %v912 = vpop.permute.xlu0 %911
        %vm913 = vcmask 523264
        %v914 = vsel %vm913, %v890, %v892
        %v915 = vsel %vm913, %v892, %v894
        %v916 = vsel %vm913, %v896, %v898
        %v917 = vsel %vm913, %v898, %v900
        %v918 = vsel %vm913, %v902, %v904
        %v919 = vsel %vm913, %v904, %v906
        %v920 = vsel %vm913, %v908, %v910
        %v921 = vsel %vm913, %v910, %v912
        %v930 = vadd.f32 %v841, %v914
        %v931 = vadd.f32 %v842, %v915
        %v932 = vadd.f32 %v843, %v916
        %v933 = vadd.f32 %v844, %v917
        %v934 = vadd.f32 %v845, %v918
        %v935 = vadd.f32 %v846, %v919
        %v936 = vadd.f32 %v847, %v920
        %v937 = vadd.f32 %v848, %v921
        %938 = vset.pattern.permute.xlu0 35
        %939 = vperm.xlu0 %938, %v538
        %v940 = vpop.permute.xlu0 %939
        %942 = vset.pattern.permute.xlu0 35
        %943 = vperm.xlu0 %942, %v539
        %v944 = vpop.permute.xlu0 %943
        %946 = vset.pattern.permute.xlu0 35
        %947 = vperm.xlu0 %946, %v540
        %v948 = vpop.permute.xlu0 %947
        %950 = vset.pattern.permute.xlu0 35
        %951 = vperm.xlu0 %950, %v541
        %v952 = vpop.permute.xlu0 %951
        %v954 = vmul.f32 %v570, %v940
        %v955 = vmul.f32 %v571, %v940
        %v956 = vmul.f32 %v572, %v940
        %v957 = vmul.f32 %v573, %v944
        %v958 = vmul.f32 %v574, %v944
        %v959 = vmul.f32 %v575, %v944
        %v960 = vmul.f32 %v576, %v948
        %v961 = vmul.f32 %v577, %v948
        %v962 = vmul.f32 %v578, %v948
        %v963 = vmul.f32 %v579, %v952
        %v964 = vmul.f32 %v580, %v952
        %v965 = vmul.f32 %v581, %v952
        %978 = vrot.lane.b32.xlu0 %v954, 48
        %v979 = vpop.permute.xlu0 %978
        %980 = vrot.lane.b32.xlu0 %v955, 48
        %v981 = vpop.permute.xlu0 %980
        %982 = vrot.lane.b32.xlu0 %v956, 48
        %v983 = vpop.permute.xlu0 %982
        %984 = vrot.lane.b32.xlu0 %v957, 48
        %v985 = vpop.permute.xlu0 %984
        %986 = vrot.lane.b32.xlu0 %v958, 48
        %v987 = vpop.permute.xlu0 %986
        %988 = vrot.lane.b32.xlu0 %v959, 48
        %v989 = vpop.permute.xlu0 %988
        %990 = vrot.lane.b32.xlu0 %v960, 48
        %v991 = vpop.permute.xlu0 %990
        %992 = vrot.lane.b32.xlu0 %v961, 48
        %v993 = vpop.permute.xlu0 %992
        %994 = vrot.lane.b32.xlu0 %v962, 48
        %v995 = vpop.permute.xlu0 %994
        %996 = vrot.lane.b32.xlu0 %v963, 48
        %v997 = vpop.permute.xlu0 %996
        %998 = vrot.lane.b32.xlu0 %v964, 48
        %v999 = vpop.permute.xlu0 %998
        %1000 = vrot.lane.b32.xlu0 %v965, 48
        %v1001 = vpop.permute.xlu0 %1000
        %vm1002 = vcmask 392192
        %v1003 = vsel %vm1002, %v979, %v981
        %v1004 = vsel %vm1002, %v981, %v983
        %v1005 = vsel %vm1002, %v985, %v987
        %v1006 = vsel %vm1002, %v987, %v989
        %v1007 = vsel %vm1002, %v991, %v993
        %v1008 = vsel %vm1002, %v993, %v995
        %v1009 = vsel %vm1002, %v997, %v999
        %v1010 = vsel %vm1002, %v999, %v1001
        %v1019 = vadd.f32 %v930, %v1003
        %v1020 = vadd.f32 %v931, %v1004
        %v1021 = vadd.f32 %v932, %v1005
        %v1022 = vadd.f32 %v933, %v1006
        %v1023 = vadd.f32 %v934, %v1007
        %v1024 = vadd.f32 %v935, %v1008
        %v1025 = vadd.f32 %v936, %v1009
        %v1026 = vadd.f32 %v937, %v1010
        %1027 = vset.pattern.permute.xlu0 42
        %1028 = vperm.xlu0 %1027, %v538
        %v1029 = vpop.permute.xlu0 %1028
        %1031 = vset.pattern.permute.xlu0 42
        %1032 = vperm.xlu0 %1031, %v539
        %v1033 = vpop.permute.xlu0 %1032
        %1035 = vset.pattern.permute.xlu0 42
        %1036 = vperm.xlu0 %1035, %v540
        %v1037 = vpop.permute.xlu0 %1036
        %1039 = vset.pattern.permute.xlu0 42
        %1040 = vperm.xlu0 %1039, %v541
        %v1041 = vpop.permute.xlu0 %1040
        %v1043 = vmul.f32 %v570, %v1029
        %v1044 = vmul.f32 %v571, %v1029
        %v1045 = vmul.f32 %v572, %v1029
        %v1046 = vmul.f32 %v573, %v1033
        %v1047 = vmul.f32 %v574, %v1033
        %v1048 = vmul.f32 %v575, %v1033
        %v1049 = vmul.f32 %v576, %v1037
        %v1050 = vmul.f32 %v577, %v1037
        %v1051 = vmul.f32 %v578, %v1037
        %v1052 = vmul.f32 %v579, %v1041
        %v1053 = vmul.f32 %v580, %v1041
        %v1054 = vmul.f32 %v581, %v1041
        %1067 = vrot.lane.b32.xlu0 %v1043, 32
        %v1068 = vpop.permute.xlu0 %1067
        %1069 = vrot.lane.b32.xlu0 %v1044, 32
        %v1070 = vpop.permute.xlu0 %1069
        %1071 = vrot.lane.b32.xlu0 %v1045, 32
        %v1072 = vpop.permute.xlu0 %1071
        %1073 = vrot.lane.b32.xlu0 %v1046, 32
        %v1074 = vpop.permute.xlu0 %1073
        %1075 = vrot.lane.b32.xlu0 %v1047, 32
        %v1076 = vpop.permute.xlu0 %1075
        %1077 = vrot.lane.b32.xlu0 %v1048, 32
        %v1078 = vpop.permute.xlu0 %1077
        %1079 = vrot.lane.b32.xlu0 %v1049, 32
        %v1080 = vpop.permute.xlu0 %1079
        %1081 = vrot.lane.b32.xlu0 %v1050, 32
        %v1082 = vpop.permute.xlu0 %1081
        %1083 = vrot.lane.b32.xlu0 %v1051, 32
        %v1084 = vpop.permute.xlu0 %1083
        %1085 = vrot.lane.b32.xlu0 %v1052, 32
        %v1086 = vpop.permute.xlu0 %1085
        %1087 = vrot.lane.b32.xlu0 %v1053, 32
        %v1088 = vpop.permute.xlu0 %1087
        %1089 = vrot.lane.b32.xlu0 %v1054, 32
        %v1090 = vpop.permute.xlu0 %1089
        %vm1091 = vcmask 261120
        %v1092 = vsel %vm1091, %v1068, %v1070
        %v1093 = vsel %vm1091, %v1070, %v1072
        %v1094 = vsel %vm1091, %v1074, %v1076
        %v1095 = vsel %vm1091, %v1076, %v1078
        %v1096 = vsel %vm1091, %v1080, %v1082
        %v1097 = vsel %vm1091, %v1082, %v1084
        %v1098 = vsel %vm1091, %v1086, %v1088
        %v1099 = vsel %vm1091, %v1088, %v1090
        %v1108 = vadd.f32 %v1019, %v1092
        %v1109 = vadd.f32 %v1020, %v1093
        %v1110 = vadd.f32 %v1021, %v1094
        %v1111 = vadd.f32 %v1022, %v1095
        %v1112 = vadd.f32 %v1023, %v1096
        %v1113 = vadd.f32 %v1024, %v1097
        %v1114 = vadd.f32 %v1025, %v1098
        %v1115 = vadd.f32 %v1026, %v1099
        %v1116 = vld [vmem:[%s5] ss:$8 sm:$0x3]
        %v1118 = vperm.slane %v1116, 0
        %v1119 = vperm.slane %v1116, 1
        %v1122 = vmul.f32 %v1108, %v1118
        %v1123 = vmul.f32 %v1109, %v1119
        %v1124 = vmul.f32 %v1110, %v1118
        %v1125 = vmul.f32 %v1111, %v1119
        %v1126 = vmul.f32 %v1112, %v1118
        %v1127 = vmul.f32 %v1113, %v1119
        %v1128 = vmul.f32 %v1114, %v1118
        %v1129 = vmul.f32 %v1115, %v1119
        %1130 = vset.pattern.permute.xlu0 1
        %1131 = vperm.xlu0 %1130, %v538
        %v1132 = vpop.permute.xlu0 %1131
        %1134 = vset.pattern.permute.xlu0 1
        %1135 = vperm.xlu0 %1134, %v539
        %v1136 = vpop.permute.xlu0 %1135
        %1138 = vset.pattern.permute.xlu0 1
        %1139 = vperm.xlu0 %1138, %v540
        %v1140 = vpop.permute.xlu0 %1139
        %1142 = vset.pattern.permute.xlu0 1
        %1143 = vperm.xlu0 %1142, %v541
        %v1144 = vpop.permute.xlu0 %1143
        %v1146 = vmul.f32 %v570, %v1132
        %v1147 = vmul.f32 %v571, %v1132
        %v1148 = vmul.f32 %v572, %v1132
        %v1149 = vmul.f32 %v573, %v1136
        %v1150 = vmul.f32 %v574, %v1136
        %v1151 = vmul.f32 %v575, %v1136
        %v1152 = vmul.f32 %v576, %v1140
        %v1153 = vmul.f32 %v577, %v1140
        %v1154 = vmul.f32 %v578, %v1140
        %v1155 = vmul.f32 %v579, %v1144
        %v1156 = vmul.f32 %v580, %v1144
        %v1157 = vmul.f32 %v581, %v1144
        %1158 = vset.pattern.permute.xlu0 8
        %1159 = vperm.xlu0 %1158, %v538
        %v1160 = vpop.permute.xlu0 %1159
        %1162 = vset.pattern.permute.xlu0 8
        %1163 = vperm.xlu0 %1162, %v539
        %v1164 = vpop.permute.xlu0 %1163
        %1166 = vset.pattern.permute.xlu0 8
        %1167 = vperm.xlu0 %1166, %v540
        %v1168 = vpop.permute.xlu0 %1167
        %1170 = vset.pattern.permute.xlu0 8
        %1171 = vperm.xlu0 %1170, %v541
        %v1172 = vpop.permute.xlu0 %1171
        %v1174 = vmul.f32 %v570, %v1160
        %v1175 = vmul.f32 %v571, %v1160
        %v1176 = vmul.f32 %v572, %v1160
        %v1177 = vmul.f32 %v573, %v1164
        %v1178 = vmul.f32 %v574, %v1164
        %v1179 = vmul.f32 %v575, %v1164
        %v1180 = vmul.f32 %v576, %v1168
        %v1181 = vmul.f32 %v577, %v1168
        %v1182 = vmul.f32 %v578, %v1168
        %v1183 = vmul.f32 %v579, %v1172
        %v1184 = vmul.f32 %v580, %v1172
        %v1185 = vmul.f32 %v581, %v1172
        %1198 = vrot.lane.b32.xlu0 %v1174, 112
        %v1199 = vpop.permute.xlu0 %1198
        %1200 = vrot.lane.b32.xlu0 %v1175, 112
        %v1201 = vpop.permute.xlu0 %1200
        %1202 = vrot.lane.b32.xlu0 %v1176, 112
        %v1203 = vpop.permute.xlu0 %1202
        %1204 = vrot.lane.b32.xlu0 %v1177, 112
        %v1205 = vpop.permute.xlu0 %1204
        %1206 = vrot.lane.b32.xlu0 %v1178, 112
        %v1207 = vpop.permute.xlu0 %1206
        %1208 = vrot.lane.b32.xlu0 %v1179, 112
        %v1209 = vpop.permute.xlu0 %1208
        %1210 = vrot.lane.b32.xlu0 %v1180, 112
        %v1211 = vpop.permute.xlu0 %1210
        %1212 = vrot.lane.b32.xlu0 %v1181, 112
        %v1213 = vpop.permute.xlu0 %1212
        %1214 = vrot.lane.b32.xlu0 %v1182, 112
        %v1215 = vpop.permute.xlu0 %1214
        %1216 = vrot.lane.b32.xlu0 %v1183, 112
        %v1217 = vpop.permute.xlu0 %1216
        %1218 = vrot.lane.b32.xlu0 %v1184, 112
        %v1219 = vpop.permute.xlu0 %1218
        %1220 = vrot.lane.b32.xlu0 %v1185, 112
        %v1221 = vpop.permute.xlu0 %1220
        %v1222 = vsel %vm646, %v1199, %v1201
        %v1223 = vsel %vm646, %v1201, %v1203
        %v1224 = vsel %vm646, %v1205, %v1207
        %v1225 = vsel %vm646, %v1207, %v1209
        %v1226 = vsel %vm646, %v1211, %v1213
        %v1227 = vsel %vm646, %v1213, %v1215
        %v1228 = vsel %vm646, %v1217, %v1219
        %v1229 = vsel %vm646, %v1219, %v1221
        %v1242 = vadd.f32 %v1146, %v1222
        %v1243 = vadd.f32 %v1147, %v1223
        %v1244 = vadd.f32 %v1148, %v1203
        %v1245 = vadd.f32 %v1149, %v1224
        %v1246 = vadd.f32 %v1150, %v1225
        %v1247 = vadd.f32 %v1151, %v1209
        %v1248 = vadd.f32 %v1152, %v1226
        %v1249 = vadd.f32 %v1153, %v1227
        %v1250 = vadd.f32 %v1154, %v1215
        %v1251 = vadd.f32 %v1155, %v1228
        %v1252 = vadd.f32 %v1156, %v1229
        %v1253 = vadd.f32 %v1157, %v1221
        %1254 = vset.pattern.permute.xlu0 15
        %1255 = vperm.xlu0 %1254, %v538
        %v1256 = vpop.permute.xlu0 %1255
        %1258 = vset.pattern.permute.xlu0 15
        %1259 = vperm.xlu0 %1258, %v539
        %v1260 = vpop.permute.xlu0 %1259
        %1262 = vset.pattern.permute.xlu0 15
        %1263 = vperm.xlu0 %1262, %v540
        %v1264 = vpop.permute.xlu0 %1263
        %1266 = vset.pattern.permute.xlu0 15
        %1267 = vperm.xlu0 %1266, %v541
        %v1268 = vpop.permute.xlu0 %1267
        %v1270 = vmul.f32 %v570, %v1256
        %v1271 = vmul.f32 %v571, %v1256
        %v1272 = vmul.f32 %v572, %v1256
        %v1273 = vmul.f32 %v573, %v1260
        %v1274 = vmul.f32 %v574, %v1260
        %v1275 = vmul.f32 %v575, %v1260
        %v1276 = vmul.f32 %v576, %v1264
        %v1277 = vmul.f32 %v577, %v1264
        %v1278 = vmul.f32 %v578, %v1264
        %v1279 = vmul.f32 %v579, %v1268
        %v1280 = vmul.f32 %v580, %v1268
        %v1281 = vmul.f32 %v581, %v1268
        %1294 = vrot.lane.b32.xlu0 %v1270, 96
        %v1295 = vpop.permute.xlu0 %1294
        %1296 = vrot.lane.b32.xlu0 %v1271, 96
        %v1297 = vpop.permute.xlu0 %1296
        %1298 = vrot.lane.b32.xlu0 %v1272, 96
        %v1299 = vpop.permute.xlu0 %1298
        %1300 = vrot.lane.b32.xlu0 %v1273, 96
        %v1301 = vpop.permute.xlu0 %1300
        %1302 = vrot.lane.b32.xlu0 %v1274, 96
        %v1303 = vpop.permute.xlu0 %1302
        %1304 = vrot.lane.b32.xlu0 %v1275, 96
        %v1305 = vpop.permute.xlu0 %1304
        %1306 = vrot.lane.b32.xlu0 %v1276, 96
        %v1307 = vpop.permute.xlu0 %1306
        %1308 = vrot.lane.b32.xlu0 %v1277, 96
        %v1309 = vpop.permute.xlu0 %1308
        %1310 = vrot.lane.b32.xlu0 %v1278, 96
        %v1311 = vpop.permute.xlu0 %1310
        %1312 = vrot.lane.b32.xlu0 %v1279, 96
        %v1313 = vpop.permute.xlu0 %1312
        %1314 = vrot.lane.b32.xlu0 %v1280, 96
        %v1315 = vpop.permute.xlu0 %1314
        %1316 = vrot.lane.b32.xlu0 %v1281, 96
        %v1317 = vpop.permute.xlu0 %1316
        %v1318 = vsel %vm735, %v1295, %v1297
        %v1319 = vsel %vm735, %v1297, %v1299
        %v1320 = vsel %vm735, %v1301, %v1303
        %v1321 = vsel %vm735, %v1303, %v1305
        %v1322 = vsel %vm735, %v1307, %v1309
        %v1323 = vsel %vm735, %v1309, %v1311
        %v1324 = vsel %vm735, %v1313, %v1315
        %v1325 = vsel %vm735, %v1315, %v1317
        %v1338 = vadd.f32 %v1242, %v1318
        %v1339 = vadd.f32 %v1243, %v1319
        %v1340 = vadd.f32 %v1244, %v1299
        %v1341 = vadd.f32 %v1245, %v1320
        %v1342 = vadd.f32 %v1246, %v1321
        %v1343 = vadd.f32 %v1247, %v1305
        %v1344 = vadd.f32 %v1248, %v1322
        %v1345 = vadd.f32 %v1249, %v1323
        %v1346 = vadd.f32 %v1250, %v1311
        %v1347 = vadd.f32 %v1251, %v1324
        %v1348 = vadd.f32 %v1252, %v1325
        %v1349 = vadd.f32 %v1253, %v1317
        %1350 = vset.pattern.permute.xlu0 22
        %1351 = vperm.xlu0 %1350, %v538
        %v1352 = vpop.permute.xlu0 %1351
        %1354 = vset.pattern.permute.xlu0 22
        %1355 = vperm.xlu0 %1354, %v539
        %v1356 = vpop.permute.xlu0 %1355
        %1358 = vset.pattern.permute.xlu0 22
        %1359 = vperm.xlu0 %1358, %v540
        %v1360 = vpop.permute.xlu0 %1359
        %1362 = vset.pattern.permute.xlu0 22
        %1363 = vperm.xlu0 %1362, %v541
        %v1364 = vpop.permute.xlu0 %1363
        %v1366 = vmul.f32 %v570, %v1352
        %v1367 = vmul.f32 %v571, %v1352
        %v1368 = vmul.f32 %v572, %v1352
        %v1369 = vmul.f32 %v573, %v1356
        %v1370 = vmul.f32 %v574, %v1356
        %v1371 = vmul.f32 %v575, %v1356
        %v1372 = vmul.f32 %v576, %v1360
        %v1373 = vmul.f32 %v577, %v1360
        %v1374 = vmul.f32 %v578, %v1360
        %v1375 = vmul.f32 %v579, %v1364
        %v1376 = vmul.f32 %v580, %v1364
        %v1377 = vmul.f32 %v581, %v1364
        %1390 = vrot.lane.b32.xlu0 %v1366, 80
        %v1391 = vpop.permute.xlu0 %1390
        %1392 = vrot.lane.b32.xlu0 %v1367, 80
        %v1393 = vpop.permute.xlu0 %1392
        %1394 = vrot.lane.b32.xlu0 %v1368, 80
        %v1395 = vpop.permute.xlu0 %1394
        %1396 = vrot.lane.b32.xlu0 %v1369, 80
        %v1397 = vpop.permute.xlu0 %1396
        %1398 = vrot.lane.b32.xlu0 %v1370, 80
        %v1399 = vpop.permute.xlu0 %1398
        %1400 = vrot.lane.b32.xlu0 %v1371, 80
        %v1401 = vpop.permute.xlu0 %1400
        %1402 = vrot.lane.b32.xlu0 %v1372, 80
        %v1403 = vpop.permute.xlu0 %1402
        %1404 = vrot.lane.b32.xlu0 %v1373, 80
        %v1405 = vpop.permute.xlu0 %1404
        %1406 = vrot.lane.b32.xlu0 %v1374, 80
        %v1407 = vpop.permute.xlu0 %1406
        %1408 = vrot.lane.b32.xlu0 %v1375, 80
        %v1409 = vpop.permute.xlu0 %1408
        %1410 = vrot.lane.b32.xlu0 %v1376, 80
        %v1411 = vpop.permute.xlu0 %1410
        %1412 = vrot.lane.b32.xlu0 %v1377, 80
        %v1413 = vpop.permute.xlu0 %1412
        %v1414 = vsel %vm824, %v1391, %v1393
        %v1415 = vsel %vm824, %v1393, %v1395
        %v1416 = vsel %vm824, %v1397, %v1399
        %v1417 = vsel %vm824, %v1399, %v1401
        %v1418 = vsel %vm824, %v1403, %v1405
        %v1419 = vsel %vm824, %v1405, %v1407
        %v1420 = vsel %vm824, %v1409, %v1411
        %v1421 = vsel %vm824, %v1411, %v1413
        %v1434 = vadd.f32 %v1338, %v1414
        %v1435 = vadd.f32 %v1339, %v1415
        %v1436 = vadd.f32 %v1340, %v1395
        %v1437 = vadd.f32 %v1341, %v1416
        %v1438 = vadd.f32 %v1342, %v1417
        %v1439 = vadd.f32 %v1343, %v1401
        %v1440 = vadd.f32 %v1344, %v1418
        %v1441 = vadd.f32 %v1345, %v1419
        %v1442 = vadd.f32 %v1346, %v1407
        %v1443 = vadd.f32 %v1347, %v1420
        %v1444 = vadd.f32 %v1348, %v1421
        %v1445 = vadd.f32 %v1349, %v1413
        %1446 = vset.pattern.permute.xlu0 29
        %1447 = vperm.xlu0 %1446, %v538
        %v1448 = vpop.permute.xlu0 %1447
        %1450 = vset.pattern.permute.xlu0 29
        %1451 = vperm.xlu0 %1450, %v539
        %v1452 = vpop.permute.xlu0 %1451
        %1454 = vset.pattern.permute.xlu0 29
        %1455 = vperm.xlu0 %1454, %v540
        %v1456 = vpop.permute.xlu0 %1455
        %1458 = vset.pattern.permute.xlu0 29
        %1459 = vperm.xlu0 %1458, %v541
        %v1460 = vpop.permute.xlu0 %1459
        %v1462 = vmul.f32 %v570, %v1448
        %v1463 = vmul.f32 %v571, %v1448
        %v1464 = vmul.f32 %v572, %v1448
        %v1465 = vmul.f32 %v573, %v1452
        %v1466 = vmul.f32 %v574, %v1452
        %v1467 = vmul.f32 %v575, %v1452
        %v1468 = vmul.f32 %v576, %v1456
        %v1469 = vmul.f32 %v577, %v1456
        %v1470 = vmul.f32 %v578, %v1456
        %v1471 = vmul.f32 %v579, %v1460
        %v1472 = vmul.f32 %v580, %v1460
        %v1473 = vmul.f32 %v581, %v1460
        %1486 = vrot.lane.b32.xlu0 %v1462, 64
        %v1487 = vpop.permute.xlu0 %1486
        %1488 = vrot.lane.b32.xlu0 %v1463, 64
        %v1489 = vpop.permute.xlu0 %1488
        %1490 = vrot.lane.b32.xlu0 %v1464, 64
        %v1491 = vpop.permute.xlu0 %1490
        %1492 = vrot.lane.b32.xlu0 %v1465, 64
        %v1493 = vpop.permute.xlu0 %1492
        %1494 = vrot.lane.b32.xlu0 %v1466, 64
        %v1495 = vpop.permute.xlu0 %1494
        %1496 = vrot.lane.b32.xlu0 %v1467, 64
        %v1497 = vpop.permute.xlu0 %1496
        %1498 = vrot.lane.b32.xlu0 %v1468, 64
        %v1499 = vpop.permute.xlu0 %1498
        %1500 = vrot.lane.b32.xlu0 %v1469, 64
        %v1501 = vpop.permute.xlu0 %1500
        %1502 = vrot.lane.b32.xlu0 %v1470, 64
        %v1503 = vpop.permute.xlu0 %1502
        %1504 = vrot.lane.b32.xlu0 %v1471, 64
        %v1505 = vpop.permute.xlu0 %1504
        %1506 = vrot.lane.b32.xlu0 %v1472, 64
        %v1507 = vpop.permute.xlu0 %1506
        %1508 = vrot.lane.b32.xlu0 %v1473, 64
        %v1509 = vpop.permute.xlu0 %1508
        %v1510 = vsel %vm913, %v1487, %v1489
        %v1511 = vsel %vm913, %v1489, %v1491
        %v1512 = vsel %vm913, %v1493, %v1495
        %v1513 = vsel %vm913, %v1495, %v1497
        %v1514 = vsel %vm913, %v1499, %v1501
        %v1515 = vsel %vm913, %v1501, %v1503
        %v1516 = vsel %vm913, %v1505, %v1507
        %v1517 = vsel %vm913, %v1507, %v1509
        %v1530 = vadd.f32 %v1434, %v1510
        %v1531 = vadd.f32 %v1435, %v1511
        %v1532 = vadd.f32 %v1436, %v1491
        %v1533 = vadd.f32 %v1437, %v1512
        %v1534 = vadd.f32 %v1438, %v1513
        %v1535 = vadd.f32 %v1439, %v1497
        %v1536 = vadd.f32 %v1440, %v1514
        %v1537 = vadd.f32 %v1441, %v1515
        %v1538 = vadd.f32 %v1442, %v1503
        %v1539 = vadd.f32 %v1443, %v1516
        %v1540 = vadd.f32 %v1444, %v1517
        %v1541 = vadd.f32 %v1445, %v1509
        %1542 = vset.pattern.permute.xlu0 36
        %1543 = vperm.xlu0 %1542, %v538
        %v1544 = vpop.permute.xlu0 %1543
        %1546 = vset.pattern.permute.xlu0 36
        %1547 = vperm.xlu0 %1546, %v539
        %v1548 = vpop.permute.xlu0 %1547
        %1550 = vset.pattern.permute.xlu0 36
        %1551 = vperm.xlu0 %1550, %v540
        %v1552 = vpop.permute.xlu0 %1551
        %1554 = vset.pattern.permute.xlu0 36
        %1555 = vperm.xlu0 %1554, %v541
        %v1556 = vpop.permute.xlu0 %1555
        %v1558 = vmul.f32 %v570, %v1544
        %v1559 = vmul.f32 %v571, %v1544
        %v1560 = vmul.f32 %v572, %v1544
        %v1561 = vmul.f32 %v573, %v1548
        %v1562 = vmul.f32 %v574, %v1548
        %v1563 = vmul.f32 %v575, %v1548
        %v1564 = vmul.f32 %v576, %v1552
        %v1565 = vmul.f32 %v577, %v1552
        %v1566 = vmul.f32 %v578, %v1552
        %v1567 = vmul.f32 %v579, %v1556
        %v1568 = vmul.f32 %v580, %v1556
        %v1569 = vmul.f32 %v581, %v1556
        %1582 = vrot.lane.b32.xlu0 %v1558, 48
        %v1583 = vpop.permute.xlu0 %1582
        %1584 = vrot.lane.b32.xlu0 %v1559, 48
        %v1585 = vpop.permute.xlu0 %1584
        %1586 = vrot.lane.b32.xlu0 %v1560, 48
        %v1587 = vpop.permute.xlu0 %1586
        %1588 = vrot.lane.b32.xlu0 %v1561, 48
        %v1589 = vpop.permute.xlu0 %1588
        %1590 = vrot.lane.b32.xlu0 %v1562, 48
        %v1591 = vpop.permute.xlu0 %1590
        %1592 = vrot.lane.b32.xlu0 %v1563, 48
        %v1593 = vpop.permute.xlu0 %1592
        %1594 = vrot.lane.b32.xlu0 %v1564, 48
        %v1595 = vpop.permute.xlu0 %1594
        %1596 = vrot.lane.b32.xlu0 %v1565, 48
        %v1597 = vpop.permute.xlu0 %1596
        %1598 = vrot.lane.b32.xlu0 %v1566, 48
        %v1599 = vpop.permute.xlu0 %1598
        %1600 = vrot.lane.b32.xlu0 %v1567, 48
        %v1601 = vpop.permute.xlu0 %1600
        %1602 = vrot.lane.b32.xlu0 %v1568, 48
        %v1603 = vpop.permute.xlu0 %1602
        %1604 = vrot.lane.b32.xlu0 %v1569, 48
        %v1605 = vpop.permute.xlu0 %1604
        %v1606 = vsel %vm1002, %v1583, %v1585
        %v1607 = vsel %vm1002, %v1585, %v1587
        %v1608 = vsel %vm1002, %v1589, %v1591
        %v1609 = vsel %vm1002, %v1591, %v1593
        %v1610 = vsel %vm1002, %v1595, %v1597
        %v1611 = vsel %vm1002, %v1597, %v1599
        %v1612 = vsel %vm1002, %v1601, %v1603
        %v1613 = vsel %vm1002, %v1603, %v1605
        %v1626 = vadd.f32 %v1530, %v1606
        %v1627 = vadd.f32 %v1531, %v1607
        %v1628 = vadd.f32 %v1532, %v1587
        %v1629 = vadd.f32 %v1533, %v1608
        %v1630 = vadd.f32 %v1534, %v1609
        %v1631 = vadd.f32 %v1535, %v1593
        %v1632 = vadd.f32 %v1536, %v1610
        %v1633 = vadd.f32 %v1537, %v1611
        %v1634 = vadd.f32 %v1538, %v1599
        %v1635 = vadd.f32 %v1539, %v1612
        %v1636 = vadd.f32 %v1540, %v1613
        %v1637 = vadd.f32 %v1541, %v1605
        %1638 = vset.pattern.permute.xlu0 43
        %1639 = vperm.xlu0 %1638, %v538
        %v1640 = vpop.permute.xlu0 %1639
        %1642 = vset.pattern.permute.xlu0 43
        %1643 = vperm.xlu0 %1642, %v539
        %v1644 = vpop.permute.xlu0 %1643
        %1646 = vset.pattern.permute.xlu0 43
        %1647 = vperm.xlu0 %1646, %v540
        %v1648 = vpop.permute.xlu0 %1647
        %1650 = vset.pattern.permute.xlu0 43
        %1651 = vperm.xlu0 %1650, %v541
        %v1652 = vpop.permute.xlu0 %1651
        %v1654 = vmul.f32 %v570, %v1640
        %v1655 = vmul.f32 %v571, %v1640
        %v1656 = vmul.f32 %v572, %v1640
        %v1657 = vmul.f32 %v573, %v1644
        %v1658 = vmul.f32 %v574, %v1644
        %v1659 = vmul.f32 %v575, %v1644
        %v1660 = vmul.f32 %v576, %v1648
        %v1661 = vmul.f32 %v577, %v1648
        %v1662 = vmul.f32 %v578, %v1648
        %v1663 = vmul.f32 %v579, %v1652
        %v1664 = vmul.f32 %v580, %v1652
        %v1665 = vmul.f32 %v581, %v1652
        %1678 = vrot.lane.b32.xlu0 %v1654, 32
        %v1679 = vpop.permute.xlu0 %1678
        %1680 = vrot.lane.b32.xlu0 %v1655, 32
        %v1681 = vpop.permute.xlu0 %1680
        %1682 = vrot.lane.b32.xlu0 %v1656, 32
        %v1683 = vpop.permute.xlu0 %1682
        %1684 = vrot.lane.b32.xlu0 %v1657, 32
        %v1685 = vpop.permute.xlu0 %1684
        %1686 = vrot.lane.b32.xlu0 %v1658, 32
        %v1687 = vpop.permute.xlu0 %1686
        %1688 = vrot.lane.b32.xlu0 %v1659, 32
        %v1689 = vpop.permute.xlu0 %1688
        %1690 = vrot.lane.b32.xlu0 %v1660, 32
        %v1691 = vpop.permute.xlu0 %1690
        %1692 = vrot.lane.b32.xlu0 %v1661, 32
        %v1693 = vpop.permute.xlu0 %1692
        %1694 = vrot.lane.b32.xlu0 %v1662, 32
        %v1695 = vpop.permute.xlu0 %1694
        %1696 = vrot.lane.b32.xlu0 %v1663, 32
        %v1697 = vpop.permute.xlu0 %1696
        %1698 = vrot.lane.b32.xlu0 %v1664, 32
        %v1699 = vpop.permute.xlu0 %1698
        %1700 = vrot.lane.b32.xlu0 %v1665, 32
        %v1701 = vpop.permute.xlu0 %1700
        %v1702 = vsel %vm1091, %v1679, %v1681
        %v1703 = vsel %vm1091, %v1681, %v1683
        %v1704 = vsel %vm1091, %v1685, %v1687
        %v1705 = vsel %vm1091, %v1687, %v1689
        %v1706 = vsel %vm1091, %v1691, %v1693
        %v1707 = vsel %vm1091, %v1693, %v1695
        %v1708 = vsel %vm1091, %v1697, %v1699
        %v1709 = vsel %vm1091, %v1699, %v1701
        %v1722 = vadd.f32 %v1626, %v1702
        %v1723 = vadd.f32 %v1627, %v1703
        %v1724 = vadd.f32 %v1628, %v1683
        %v1725 = vadd.f32 %v1629, %v1704
        %v1726 = vadd.f32 %v1630, %v1705
        %v1727 = vadd.f32 %v1631, %v1689
        %v1728 = vadd.f32 %v1632, %v1706
        %v1729 = vadd.f32 %v1633, %v1707
        %v1730 = vadd.f32 %v1634, %v1695
        %v1731 = vadd.f32 %v1635, %v1708
        %v1732 = vadd.f32 %v1636, %v1709
        %v1733 = vadd.f32 %v1637, %v1701
        %s1734 = scalar_lea.vmem %s5, 1
        %v1735 = vld [vmem:[%s1734] ss:$8 sm:$0x3]
        %v1737 = vperm.slane %v1735, 0
        %v1738 = vperm.slane %v1735, 1
        %1739 = vrot.lane.b32.xlu0 %v1737, 1
        %v1740 = vpop.permute.xlu0 %1739
        %1741 = vrot.lane.b32.xlu0 %v1738, 1
        %v1742 = vpop.permute.xlu0 %1741
        %vm1743 = vcmask 7168
        %v1744 = vsel %vm1743, %v1740, %v1742
        %v1748 = vmul.f32 %v1722, %v1740
        %v1749 = vmul.f32 %v1723, %v1744
        %v1750 = vmul.f32 %v1724, %v1742
        %v1751 = vmul.f32 %v1725, %v1740
        %v1752 = vmul.f32 %v1726, %v1744
        %v1753 = vmul.f32 %v1727, %v1742
        %v1754 = vmul.f32 %v1728, %v1740
        %v1755 = vmul.f32 %v1729, %v1744
        %v1756 = vmul.f32 %v1730, %v1742
        %v1757 = vmul.f32 %v1731, %v1740
        %v1758 = vmul.f32 %v1732, %v1744
        %v1759 = vmul.f32 %v1733, %v1742
        %1772 = vrot.lane.b32.xlu0 %v1748, 127
        %v1773 = vpop.permute.xlu0 %1772
        %1774 = vrot.lane.b32.xlu0 %v1749, 127
        %v1775 = vpop.permute.xlu0 %1774
        %1776 = vrot.lane.b32.xlu0 %v1750, 127
        %v1777 = vpop.permute.xlu0 %1776
        %1778 = vrot.lane.b32.xlu0 %v1751, 127
        %v1779 = vpop.permute.xlu0 %1778
        %1780 = vrot.lane.b32.xlu0 %v1752, 127
        %v1781 = vpop.permute.xlu0 %1780
        %1782 = vrot.lane.b32.xlu0 %v1753, 127
        %v1783 = vpop.permute.xlu0 %1782
        %1784 = vrot.lane.b32.xlu0 %v1754, 127
        %v1785 = vpop.permute.xlu0 %1784
        %1786 = vrot.lane.b32.xlu0 %v1755, 127
        %v1787 = vpop.permute.xlu0 %1786
        %1788 = vrot.lane.b32.xlu0 %v1756, 127
        %v1789 = vpop.permute.xlu0 %1788
        %1790 = vrot.lane.b32.xlu0 %v1757, 127
        %v1791 = vpop.permute.xlu0 %1790
        %1792 = vrot.lane.b32.xlu0 %v1758, 127
        %v1793 = vpop.permute.xlu0 %1792
        %1794 = vrot.lane.b32.xlu0 %v1759, 127
        %v1795 = vpop.permute.xlu0 %1794
        %vm1796 = vcmask 1039360
        %v1797 = vsel %vm1796, %v1773, %v1775
        %v1798 = vsel %vm1796, %v1775, %v1777
        %v1799 = vsel %vm1796, %v1779, %v1781
        %v1800 = vsel %vm1796, %v1781, %v1783
        %v1801 = vsel %vm1796, %v1785, %v1787
        %v1802 = vsel %vm1796, %v1787, %v1789
        %v1803 = vsel %vm1796, %v1791, %v1793
        %v1804 = vsel %vm1796, %v1793, %v1795
        %v1813 = vadd.f32 %v1122, %v1797
        %v1814 = vadd.f32 %v1123, %v1798
        %v1815 = vadd.f32 %v1124, %v1799
        %v1816 = vadd.f32 %v1125, %v1800
        %v1817 = vadd.f32 %v1126, %v1801
        %v1818 = vadd.f32 %v1127, %v1802
        %v1819 = vadd.f32 %v1128, %v1803
        %v1820 = vadd.f32 %v1129, %v1804
        %1821 = vset.pattern.permute.xlu0 2
        %1822 = vperm.xlu0 %1821, %v538
        %v1823 = vpop.permute.xlu0 %1822
        %1825 = vset.pattern.permute.xlu0 2
        %1826 = vperm.xlu0 %1825, %v539
        %v1827 = vpop.permute.xlu0 %1826
        %1829 = vset.pattern.permute.xlu0 2
        %1830 = vperm.xlu0 %1829, %v540
        %v1831 = vpop.permute.xlu0 %1830
        %1833 = vset.pattern.permute.xlu0 2
        %1834 = vperm.xlu0 %1833, %v541
        %v1835 = vpop.permute.xlu0 %1834
        %v1837 = vmul.f32 %v570, %v1823
        %v1838 = vmul.f32 %v571, %v1823
        %v1839 = vmul.f32 %v572, %v1823
        %v1840 = vmul.f32 %v573, %v1827
        %v1841 = vmul.f32 %v574, %v1827
        %v1842 = vmul.f32 %v575, %v1827
        %v1843 = vmul.f32 %v576, %v1831
        %v1844 = vmul.f32 %v577, %v1831
        %v1845 = vmul.f32 %v578, %v1831
        %v1846 = vmul.f32 %v579, %v1835
        %v1847 = vmul.f32 %v580, %v1835
        %v1848 = vmul.f32 %v581, %v1835
        %1849 = vset.pattern.permute.xlu0 9
        %1850 = vperm.xlu0 %1849, %v538
        %v1851 = vpop.permute.xlu0 %1850
        %1853 = vset.pattern.permute.xlu0 9
        %1854 = vperm.xlu0 %1853, %v539
        %v1855 = vpop.permute.xlu0 %1854
        %1857 = vset.pattern.permute.xlu0 9
        %1858 = vperm.xlu0 %1857, %v540
        %v1859 = vpop.permute.xlu0 %1858
        %1861 = vset.pattern.permute.xlu0 9
        %1862 = vperm.xlu0 %1861, %v541
        %v1863 = vpop.permute.xlu0 %1862
        %v1865 = vmul.f32 %v570, %v1851
        %v1866 = vmul.f32 %v571, %v1851
        %v1867 = vmul.f32 %v572, %v1851
        %v1868 = vmul.f32 %v573, %v1855
        %v1869 = vmul.f32 %v574, %v1855
        %v1870 = vmul.f32 %v575, %v1855
        %v1871 = vmul.f32 %v576, %v1859
        %v1872 = vmul.f32 %v577, %v1859
        %v1873 = vmul.f32 %v578, %v1859
        %v1874 = vmul.f32 %v579, %v1863
        %v1875 = vmul.f32 %v580, %v1863
        %v1876 = vmul.f32 %v581, %v1863
        %1889 = vrot.lane.b32.xlu0 %v1865, 112
        %v1890 = vpop.permute.xlu0 %1889
        %1891 = vrot.lane.b32.xlu0 %v1866, 112
        %v1892 = vpop.permute.xlu0 %1891
        %1893 = vrot.lane.b32.xlu0 %v1867, 112
        %v1894 = vpop.permute.xlu0 %1893
        %1895 = vrot.lane.b32.xlu0 %v1868, 112
        %v1896 = vpop.permute.xlu0 %1895
        %1897 = vrot.lane.b32.xlu0 %v1869, 112
        %v1898 = vpop.permute.xlu0 %1897
        %1899 = vrot.lane.b32.xlu0 %v1870, 112
        %v1900 = vpop.permute.xlu0 %1899
        %1901 = vrot.lane.b32.xlu0 %v1871, 112
        %v1902 = vpop.permute.xlu0 %1901
        %1903 = vrot.lane.b32.xlu0 %v1872, 112
        %v1904 = vpop.permute.xlu0 %1903
        %1905 = vrot.lane.b32.xlu0 %v1873, 112
        %v1906 = vpop.permute.xlu0 %1905
        %1907 = vrot.lane.b32.xlu0 %v1874, 112
        %v1908 = vpop.permute.xlu0 %1907
        %1909 = vrot.lane.b32.xlu0 %v1875, 112
        %v1910 = vpop.permute.xlu0 %1909
        %1911 = vrot.lane.b32.xlu0 %v1876, 112
        %v1912 = vpop.permute.xlu0 %1911
        %v1913 = vsel %vm646, %v1890, %v1892
        %v1914 = vsel %vm646, %v1892, %v1894
        %v1915 = vsel %vm646, %v1896, %v1898
        %v1916 = vsel %vm646, %v1898, %v1900
        %v1917 = vsel %vm646, %v1902, %v1904
        %v1918 = vsel %vm646, %v1904, %v1906
        %v1919 = vsel %vm646, %v1908, %v1910
        %v1920 = vsel %vm646, %v1910, %v1912
        %v1933 = vadd.f32 %v1837, %v1913
        %v1934 = vadd.f32 %v1838, %v1914
        %v1935 = vadd.f32 %v1839, %v1894
        %v1936 = vadd.f32 %v1840, %v1915
        %v1937 = vadd.f32 %v1841, %v1916
        %v1938 = vadd.f32 %v1842, %v1900
        %v1939 = vadd.f32 %v1843, %v1917
        %v1940 = vadd.f32 %v1844, %v1918
        %v1941 = vadd.f32 %v1845, %v1906
        %v1942 = vadd.f32 %v1846, %v1919
        %v1943 = vadd.f32 %v1847, %v1920
        %v1944 = vadd.f32 %v1848, %v1912
        %1945 = vset.pattern.permute.xlu0 16
        %1946 = vperm.xlu0 %1945, %v538
        %v1947 = vpop.permute.xlu0 %1946
        %1949 = vset.pattern.permute.xlu0 16
        %1950 = vperm.xlu0 %1949, %v539
        %v1951 = vpop.permute.xlu0 %1950
        %1953 = vset.pattern.permute.xlu0 16
        %1954 = vperm.xlu0 %1953, %v540
        %v1955 = vpop.permute.xlu0 %1954
        %1957 = vset.pattern.permute.xlu0 16
        %1958 = vperm.xlu0 %1957, %v541
        %v1959 = vpop.permute.xlu0 %1958
        %v1961 = vmul.f32 %v570, %v1947
        %v1962 = vmul.f32 %v571, %v1947
        %v1963 = vmul.f32 %v572, %v1947
        %v1964 = vmul.f32 %v573, %v1951
        %v1965 = vmul.f32 %v574, %v1951
        %v1966 = vmul.f32 %v575, %v1951
        %v1967 = vmul.f32 %v576, %v1955
        %v1968 = vmul.f32 %v577, %v1955
        %v1969 = vmul.f32 %v578, %v1955
        %v1970 = vmul.f32 %v579, %v1959
        %v1971 = vmul.f32 %v580, %v1959
        %v1972 = vmul.f32 %v581, %v1959
        %1985 = vrot.lane.b32.xlu0 %v1961, 96
        %v1986 = vpop.permute.xlu0 %1985
        %1987 = vrot.lane.b32.xlu0 %v1962, 96
        %v1988 = vpop.permute.xlu0 %1987
        %1989 = vrot.lane.b32.xlu0 %v1963, 96
        %v1990 = vpop.permute.xlu0 %1989
        %1991 = vrot.lane.b32.xlu0 %v1964, 96
        %v1992 = vpop.permute.xlu0 %1991
        %1993 = vrot.lane.b32.xlu0 %v1965, 96
        %v1994 = vpop.permute.xlu0 %1993
        %1995 = vrot.lane.b32.xlu0 %v1966, 96
        %v1996 = vpop.permute.xlu0 %1995
        %1997 = vrot.lane.b32.xlu0 %v1967, 96
        %v1998 = vpop.permute.xlu0 %1997
        %1999 = vrot.lane.b32.xlu0 %v1968, 96
        %v2000 = vpop.permute.xlu0 %1999
        %2001 = vrot.lane.b32.xlu0 %v1969, 96
        %v2002 = vpop.permute.xlu0 %2001
        %2003 = vrot.lane.b32.xlu0 %v1970, 96
        %v2004 = vpop.permute.xlu0 %2003
        %2005 = vrot.lane.b32.xlu0 %v1971, 96
        %v2006 = vpop.permute.xlu0 %2005
        %2007 = vrot.lane.b32.xlu0 %v1972, 96
        %v2008 = vpop.permute.xlu0 %2007
        %v2009 = vsel %vm735, %v1986, %v1988
        %v2010 = vsel %vm735, %v1988, %v1990
        %v2011 = vsel %vm735, %v1992, %v1994
        %v2012 = vsel %vm735, %v1994, %v1996
        %v2013 = vsel %vm735, %v1998, %v2000
        %v2014 = vsel %vm735, %v2000, %v2002
        %v2015 = vsel %vm735, %v2004, %v2006
        %v2016 = vsel %vm735, %v2006, %v2008
        %v2029 = vadd.f32 %v1933, %v2009
        %v2030 = vadd.f32 %v1934, %v2010
        %v2031 = vadd.f32 %v1935, %v1990
        %v2032 = vadd.f32 %v1936, %v2011
        %v2033 = vadd.f32 %v1937, %v2012
        %v2034 = vadd.f32 %v1938, %v1996
        %v2035 = vadd.f32 %v1939, %v2013
        %v2036 = vadd.f32 %v1940, %v2014
        %v2037 = vadd.f32 %v1941, %v2002
        %v2038 = vadd.f32 %v1942, %v2015
        %v2039 = vadd.f32 %v1943, %v2016
        %v2040 = vadd.f32 %v1944, %v2008
        %2041 = vset.pattern.permute.xlu0 23
        %2042 = vperm.xlu0 %2041, %v538
        %v2043 = vpop.permute.xlu0 %2042
        %2045 = vset.pattern.permute.xlu0 23
        %2046 = vperm.xlu0 %2045, %v539
        %v2047 = vpop.permute.xlu0 %2046
        %2049 = vset.pattern.permute.xlu0 23
        %2050 = vperm.xlu0 %2049, %v540
        %v2051 = vpop.permute.xlu0 %2050
        %2053 = vset.pattern.permute.xlu0 23
        %2054 = vperm.xlu0 %2053, %v541
        %v2055 = vpop.permute.xlu0 %2054
        %v2057 = vmul.f32 %v570, %v2043
        %v2058 = vmul.f32 %v571, %v2043
        %v2059 = vmul.f32 %v572, %v2043
        %v2060 = vmul.f32 %v573, %v2047
        %v2061 = vmul.f32 %v574, %v2047
        %v2062 = vmul.f32 %v575, %v2047
        %v2063 = vmul.f32 %v576, %v2051
        %v2064 = vmul.f32 %v577, %v2051
        %v2065 = vmul.f32 %v578, %v2051
        %v2066 = vmul.f32 %v579, %v2055
        %v2067 = vmul.f32 %v580, %v2055
        %v2068 = vmul.f32 %v581, %v2055
        %2081 = vrot.lane.b32.xlu0 %v2057, 80
        %v2082 = vpop.permute.xlu0 %2081
        %2083 = vrot.lane.b32.xlu0 %v2058, 80
        %v2084 = vpop.permute.xlu0 %2083
        %2085 = vrot.lane.b32.xlu0 %v2059, 80
        %v2086 = vpop.permute.xlu0 %2085
        %2087 = vrot.lane.b32.xlu0 %v2060, 80
        %v2088 = vpop.permute.xlu0 %2087
        %2089 = vrot.lane.b32.xlu0 %v2061, 80
        %v2090 = vpop.permute.xlu0 %2089
        %2091 = vrot.lane.b32.xlu0 %v2062, 80
        %v2092 = vpop.permute.xlu0 %2091
        %2093 = vrot.lane.b32.xlu0 %v2063, 80
        %v2094 = vpop.permute.xlu0 %2093
        %2095 = vrot.lane.b32.xlu0 %v2064, 80
        %v2096 = vpop.permute.xlu0 %2095
        %2097 = vrot.lane.b32.xlu0 %v2065, 80
        %v2098 = vpop.permute.xlu0 %2097
        %2099 = vrot.lane.b32.xlu0 %v2066, 80
        %v2100 = vpop.permute.xlu0 %2099
        %2101 = vrot.lane.b32.xlu0 %v2067, 80
        %v2102 = vpop.permute.xlu0 %2101
        %2103 = vrot.lane.b32.xlu0 %v2068, 80
        %v2104 = vpop.permute.xlu0 %2103
        %v2105 = vsel %vm824, %v2082, %v2084
        %v2106 = vsel %vm824, %v2084, %v2086
        %v2107 = vsel %vm824, %v2088, %v2090
        %v2108 = vsel %vm824, %v2090, %v2092
        %v2109 = vsel %vm824, %v2094, %v2096
        %v2110 = vsel %vm824, %v2096, %v2098
        %v2111 = vsel %vm824, %v2100, %v2102
        %v2112 = vsel %vm824, %v2102, %v2104
        %v2125 = vadd.f32 %v2029, %v2105
        %v2126 = vadd.f32 %v2030, %v2106
        %v2127 = vadd.f32 %v2031, %v2086
        %v2128 = vadd.f32 %v2032, %v2107
        %v2129 = vadd.f32 %v2033, %v2108
        %v2130 = vadd.f32 %v2034, %v2092
        %v2131 = vadd.f32 %v2035, %v2109
        %v2132 = vadd.f32 %v2036, %v2110
        %v2133 = vadd.f32 %v2037, %v2098
        %v2134 = vadd.f32 %v2038, %v2111
        %v2135 = vadd.f32 %v2039, %v2112
        %v2136 = vadd.f32 %v2040, %v2104
        %2137 = vset.pattern.permute.xlu0 30
        %2138 = vperm.xlu0 %2137, %v538
        %v2139 = vpop.permute.xlu0 %2138
        %2141 = vset.pattern.permute.xlu0 30
        %2142 = vperm.xlu0 %2141, %v539
        %v2143 = vpop.permute.xlu0 %2142
        %2145 = vset.pattern.permute.xlu0 30
        %2146 = vperm.xlu0 %2145, %v540
        %v2147 = vpop.permute.xlu0 %2146
        %2149 = vset.pattern.permute.xlu0 30
        %2150 = vperm.xlu0 %2149, %v541
        %v2151 = vpop.permute.xlu0 %2150
        %v2153 = vmul.f32 %v570, %v2139
        %v2154 = vmul.f32 %v571, %v2139
        %v2155 = vmul.f32 %v572, %v2139
        %v2156 = vmul.f32 %v573, %v2143
        %v2157 = vmul.f32 %v574, %v2143
        %v2158 = vmul.f32 %v575, %v2143
        %v2159 = vmul.f32 %v576, %v2147
        %v2160 = vmul.f32 %v577, %v2147
        %v2161 = vmul.f32 %v578, %v2147
        %v2162 = vmul.f32 %v579, %v2151
        %v2163 = vmul.f32 %v580, %v2151
        %v2164 = vmul.f32 %v581, %v2151
        %2177 = vrot.lane.b32.xlu0 %v2153, 64
        %v2178 = vpop.permute.xlu0 %2177
        %2179 = vrot.lane.b32.xlu0 %v2154, 64
        %v2180 = vpop.permute.xlu0 %2179
        %2181 = vrot.lane.b32.xlu0 %v2155, 64
        %v2182 = vpop.permute.xlu0 %2181
        %2183 = vrot.lane.b32.xlu0 %v2156, 64
        %v2184 = vpop.permute.xlu0 %2183
        %2185 = vrot.lane.b32.xlu0 %v2157, 64
        %v2186 = vpop.permute.xlu0 %2185
        %2187 = vrot.lane.b32.xlu0 %v2158, 64
        %v2188 = vpop.permute.xlu0 %2187
        %2189 = vrot.lane.b32.xlu0 %v2159, 64
        %v2190 = vpop.permute.xlu0 %2189
        %2191 = vrot.lane.b32.xlu0 %v2160, 64
        %v2192 = vpop.permute.xlu0 %2191
        %2193 = vrot.lane.b32.xlu0 %v2161, 64
        %v2194 = vpop.permute.xlu0 %2193
        %2195 = vrot.lane.b32.xlu0 %v2162, 64
        %v2196 = vpop.permute.xlu0 %2195
        %2197 = vrot.lane.b32.xlu0 %v2163, 64
        %v2198 = vpop.permute.xlu0 %2197
        %2199 = vrot.lane.b32.xlu0 %v2164, 64
        %v2200 = vpop.permute.xlu0 %2199
        %v2201 = vsel %vm913, %v2178, %v2180
        %v2202 = vsel %vm913, %v2180, %v2182
        %v2203 = vsel %vm913, %v2184, %v2186
        %v2204 = vsel %vm913, %v2186, %v2188
        %v2205 = vsel %vm913, %v2190, %v2192
        %v2206 = vsel %vm913, %v2192, %v2194
        %v2207 = vsel %vm913, %v2196, %v2198
        %v2208 = vsel %vm913, %v2198, %v2200
        %v2221 = vadd.f32 %v2125, %v2201
        %v2222 = vadd.f32 %v2126, %v2202
        %v2223 = vadd.f32 %v2127, %v2182
        %v2224 = vadd.f32 %v2128, %v2203
        %v2225 = vadd.f32 %v2129, %v2204
        %v2226 = vadd.f32 %v2130, %v2188
        %v2227 = vadd.f32 %v2131, %v2205
        %v2228 = vadd.f32 %v2132, %v2206
        %v2229 = vadd.f32 %v2133, %v2194
        %v2230 = vadd.f32 %v2134, %v2207
        %v2231 = vadd.f32 %v2135, %v2208
        %v2232 = vadd.f32 %v2136, %v2200
        %2233 = vset.pattern.permute.xlu0 37
        %2234 = vperm.xlu0 %2233, %v538
        %v2235 = vpop.permute.xlu0 %2234
        %2237 = vset.pattern.permute.xlu0 37
        %2238 = vperm.xlu0 %2237, %v539
        %v2239 = vpop.permute.xlu0 %2238
        %2241 = vset.pattern.permute.xlu0 37
        %2242 = vperm.xlu0 %2241, %v540
        %v2243 = vpop.permute.xlu0 %2242
        %2245 = vset.pattern.permute.xlu0 37
        %2246 = vperm.xlu0 %2245, %v541
        %v2247 = vpop.permute.xlu0 %2246
        %v2249 = vmul.f32 %v570, %v2235
        %v2250 = vmul.f32 %v571, %v2235
        %v2251 = vmul.f32 %v572, %v2235
        %v2252 = vmul.f32 %v573, %v2239
        %v2253 = vmul.f32 %v574, %v2239
        %v2254 = vmul.f32 %v575, %v2239
        %v2255 = vmul.f32 %v576, %v2243
        %v2256 = vmul.f32 %v577, %v2243
        %v2257 = vmul.f32 %v578, %v2243
        %v2258 = vmul.f32 %v579, %v2247
        %v2259 = vmul.f32 %v580, %v2247
        %v2260 = vmul.f32 %v581, %v2247
        %2273 = vrot.lane.b32.xlu0 %v2249, 48
        %v2274 = vpop.permute.xlu0 %2273
        %2275 = vrot.lane.b32.xlu0 %v2250, 48
        %v2276 = vpop.permute.xlu0 %2275
        %2277 = vrot.lane.b32.xlu0 %v2251, 48
        %v2278 = vpop.permute.xlu0 %2277
        %2279 = vrot.lane.b32.xlu0 %v2252, 48
        %v2280 = vpop.permute.xlu0 %2279
        %2281 = vrot.lane.b32.xlu0 %v2253, 48
        %v2282 = vpop.permute.xlu0 %2281
        %2283 = vrot.lane.b32.xlu0 %v2254, 48
        %v2284 = vpop.permute.xlu0 %2283
        %2285 = vrot.lane.b32.xlu0 %v2255, 48
        %v2286 = vpop.permute.xlu0 %2285
        %2287 = vrot.lane.b32.xlu0 %v2256, 48
        %v2288 = vpop.permute.xlu0 %2287
        %2289 = vrot.lane.b32.xlu0 %v2257, 48
        %v2290 = vpop.permute.xlu0 %2289
        %2291 = vrot.lane.b32.xlu0 %v2258, 48
        %v2292 = vpop.permute.xlu0 %2291
        %2293 = vrot.lane.b32.xlu0 %v2259, 48
        %v2294 = vpop.permute.xlu0 %2293
        %2295 = vrot.lane.b32.xlu0 %v2260, 48
        %v2296 = vpop.permute.xlu0 %2295
        %v2297 = vsel %vm1002, %v2274, %v2276
        %v2298 = vsel %vm1002, %v2276, %v2278
        %v2299 = vsel %vm1002, %v2280, %v2282
        %v2300 = vsel %vm1002, %v2282, %v2284
        %v2301 = vsel %vm1002, %v2286, %v2288
        %v2302 = vsel %vm1002, %v2288, %v2290
        %v2303 = vsel %vm1002, %v2292, %v2294
        %v2304 = vsel %vm1002, %v2294, %v2296
        %v2317 = vadd.f32 %v2221, %v2297
        %v2318 = vadd.f32 %v2222, %v2298
        %v2319 = vadd.f32 %v2223, %v2278
        %v2320 = vadd.f32 %v2224, %v2299
        %v2321 = vadd.f32 %v2225, %v2300
        %v2322 = vadd.f32 %v2226, %v2284
        %v2323 = vadd.f32 %v2227, %v2301
        %v2324 = vadd.f32 %v2228, %v2302
        %v2325 = vadd.f32 %v2229, %v2290
        %v2326 = vadd.f32 %v2230, %v2303
        %v2327 = vadd.f32 %v2231, %v2304
        %v2328 = vadd.f32 %v2232, %v2296
        %2329 = vset.pattern.permute.xlu0 44
        %2330 = vperm.xlu0 %2329, %v538
        %v2331 = vpop.permute.xlu0 %2330
        %2333 = vset.pattern.permute.xlu0 44
        %2334 = vperm.xlu0 %2333, %v539
        %v2335 = vpop.permute.xlu0 %2334
        %2337 = vset.pattern.permute.xlu0 44
        %2338 = vperm.xlu0 %2337, %v540
        %v2339 = vpop.permute.xlu0 %2338
        %2341 = vset.pattern.permute.xlu0 44
        %2342 = vperm.xlu0 %2341, %v541
        %v2343 = vpop.permute.xlu0 %2342
        %v2345 = vmul.f32 %v570, %v2331
        %v2346 = vmul.f32 %v571, %v2331
        %v2347 = vmul.f32 %v572, %v2331
        %v2348 = vmul.f32 %v573, %v2335
        %v2349 = vmul.f32 %v574, %v2335
        %v2350 = vmul.f32 %v575, %v2335
        %v2351 = vmul.f32 %v576, %v2339
        %v2352 = vmul.f32 %v577, %v2339
        %v2353 = vmul.f32 %v578, %v2339
        %v2354 = vmul.f32 %v579, %v2343
        %v2355 = vmul.f32 %v580, %v2343
        %v2356 = vmul.f32 %v581, %v2343
        %2369 = vrot.lane.b32.xlu0 %v2345, 32
        %v2370 = vpop.permute.xlu0 %2369
        %2371 = vrot.lane.b32.xlu0 %v2346, 32
        %v2372 = vpop.permute.xlu0 %2371
        %2373 = vrot.lane.b32.xlu0 %v2347, 32
        %v2374 = vpop.permute.xlu0 %2373
        %2375 = vrot.lane.b32.xlu0 %v2348, 32
        %v2376 = vpop.permute.xlu0 %2375
        %2377 = vrot.lane.b32.xlu0 %v2349, 32
        %v2378 = vpop.permute.xlu0 %2377
        %2379 = vrot.lane.b32.xlu0 %v2350, 32
        %v2380 = vpop.permute.xlu0 %2379
        %2381 = vrot.lane.b32.xlu0 %v2351, 32
        %v2382 = vpop.permute.xlu0 %2381
        %2383 = vrot.lane.b32.xlu0 %v2352, 32
        %v2384 = vpop.permute.xlu0 %2383
        %2385 = vrot.lane.b32.xlu0 %v2353, 32
        %v2386 = vpop.permute.xlu0 %2385
        %2387 = vrot.lane.b32.xlu0 %v2354, 32
        %v2388 = vpop.permute.xlu0 %2387
        %2389 = vrot.lane.b32.xlu0 %v2355, 32
        %v2390 = vpop.permute.xlu0 %2389
        %2391 = vrot.lane.b32.xlu0 %v2356, 32
        %v2392 = vpop.permute.xlu0 %2391
        %v2393 = vsel %vm1091, %v2370, %v2372
        %v2394 = vsel %vm1091, %v2372, %v2374
        %v2395 = vsel %vm1091, %v2376, %v2378
        %v2396 = vsel %vm1091, %v2378, %v2380
        %v2397 = vsel %vm1091, %v2382, %v2384
        %v2398 = vsel %vm1091, %v2384, %v2386
        %v2399 = vsel %vm1091, %v2388, %v2390
        %v2400 = vsel %vm1091, %v2390, %v2392
        %v2413 = vadd.f32 %v2317, %v2393
        %v2414 = vadd.f32 %v2318, %v2394
        %v2415 = vadd.f32 %v2319, %v2374
        %v2416 = vadd.f32 %v2320, %v2395
        %v2417 = vadd.f32 %v2321, %v2396
        %v2418 = vadd.f32 %v2322, %v2380
        %v2419 = vadd.f32 %v2323, %v2397
        %v2420 = vadd.f32 %v2324, %v2398
        %v2421 = vadd.f32 %v2325, %v2386
        %v2422 = vadd.f32 %v2326, %v2399
        %v2423 = vadd.f32 %v2327, %v2400
        %v2424 = vadd.f32 %v2328, %v2392
        %s2425 = scalar_lea.vmem %s5, 2
        %v2426 = vld [vmem:[%s2425] ss:$8 sm:$0x3]
        %v2428 = vperm.slane %v2426, 0
        %v2429 = vperm.slane %v2426, 1
        %2430 = vrot.lane.b32.xlu0 %v2428, 2
        %v2431 = vpop.permute.xlu0 %2430
        %2432 = vrot.lane.b32.xlu0 %v2429, 2
        %v2433 = vpop.permute.xlu0 %2432
        %vm2434 = vcmask 15360
        %v2435 = vsel %vm2434, %v2431, %v2433
        %v2439 = vmul.f32 %v2413, %v2431
        %v2440 = vmul.f32 %v2414, %v2435
        %v2441 = vmul.f32 %v2415, %v2433
        %v2442 = vmul.f32 %v2416, %v2431
        %v2443 = vmul.f32 %v2417, %v2435
        %v2444 = vmul.f32 %v2418, %v2433
        %v2445 = vmul.f32 %v2419, %v2431
        %v2446 = vmul.f32 %v2420, %v2435
        %v2447 = vmul.f32 %v2421, %v2433
        %v2448 = vmul.f32 %v2422, %v2431
        %v2449 = vmul.f32 %v2423, %v2435
        %v2450 = vmul.f32 %v2424, %v2433
        %2463 = vrot.lane.b32.xlu0 %v2439, 126
        %v2464 = vpop.permute.xlu0 %2463
        %2465 = vrot.lane.b32.xlu0 %v2440, 126
        %v2466 = vpop.permute.xlu0 %2465
        %2467 = vrot.lane.b32.xlu0 %v2441, 126
        %v2468 = vpop.permute.xlu0 %2467
        %2469 = vrot.lane.b32.xlu0 %v2442, 126
        %v2470 = vpop.permute.xlu0 %2469
        %2471 = vrot.lane.b32.xlu0 %v2443, 126
        %v2472 = vpop.permute.xlu0 %2471
        %2473 = vrot.lane.b32.xlu0 %v2444, 126
        %v2474 = vpop.permute.xlu0 %2473
        %2475 = vrot.lane.b32.xlu0 %v2445, 126
        %v2476 = vpop.permute.xlu0 %2475
        %2477 = vrot.lane.b32.xlu0 %v2446, 126
        %v2478 = vpop.permute.xlu0 %2477
        %2479 = vrot.lane.b32.xlu0 %v2447, 126
        %v2480 = vpop.permute.xlu0 %2479
        %2481 = vrot.lane.b32.xlu0 %v2448, 126
        %v2482 = vpop.permute.xlu0 %2481
        %2483 = vrot.lane.b32.xlu0 %v2449, 126
        %v2484 = vpop.permute.xlu0 %2483
        %2485 = vrot.lane.b32.xlu0 %v2450, 126
        %v2486 = vpop.permute.xlu0 %2485
        %vm2487 = vcmask 1031168
        %v2488 = vsel %vm2487, %v2464, %v2466
        %v2489 = vsel %vm2487, %v2466, %v2468
        %v2490 = vsel %vm2487, %v2470, %v2472
        %v2491 = vsel %vm2487, %v2472, %v2474
        %v2492 = vsel %vm2487, %v2476, %v2478
        %v2493 = vsel %vm2487, %v2478, %v2480
        %v2494 = vsel %vm2487, %v2482, %v2484
        %v2495 = vsel %vm2487, %v2484, %v2486
        %v2504 = vadd.f32 %v1813, %v2488
        %v2505 = vadd.f32 %v1814, %v2489
        %v2506 = vadd.f32 %v1815, %v2490
        %v2507 = vadd.f32 %v1816, %v2491
        %v2508 = vadd.f32 %v1817, %v2492
        %v2509 = vadd.f32 %v1818, %v2493
        %v2510 = vadd.f32 %v1819, %v2494
        %v2511 = vadd.f32 %v1820, %v2495
        %2512 = vset.pattern.permute.xlu0 3
        %2513 = vperm.xlu0 %2512, %v538
        %v2514 = vpop.permute.xlu0 %2513
        %2516 = vset.pattern.permute.xlu0 3
        %2517 = vperm.xlu0 %2516, %v539
        %v2518 = vpop.permute.xlu0 %2517
        %2520 = vset.pattern.permute.xlu0 3
        %2521 = vperm.xlu0 %2520, %v540
        %v2522 = vpop.permute.xlu0 %2521
        %2524 = vset.pattern.permute.xlu0 3
        %2525 = vperm.xlu0 %2524, %v541
        %v2526 = vpop.permute.xlu0 %2525
        %v2528 = vmul.f32 %v570, %v2514
        %v2529 = vmul.f32 %v571, %v2514
        %v2530 = vmul.f32 %v572, %v2514
        %v2531 = vmul.f32 %v573, %v2518
        %v2532 = vmul.f32 %v574, %v2518
        %v2533 = vmul.f32 %v575, %v2518
        %v2534 = vmul.f32 %v576, %v2522
        %v2535 = vmul.f32 %v577, %v2522
        %v2536 = vmul.f32 %v578, %v2522
        %v2537 = vmul.f32 %v579, %v2526
        %v2538 = vmul.f32 %v580, %v2526
        %v2539 = vmul.f32 %v581, %v2526
        %2540 = vset.pattern.permute.xlu0 10
        %2541 = vperm.xlu0 %2540, %v538
        %v2542 = vpop.permute.xlu0 %2541
        %2544 = vset.pattern.permute.xlu0 10
        %2545 = vperm.xlu0 %2544, %v539
        %v2546 = vpop.permute.xlu0 %2545
        %2548 = vset.pattern.permute.xlu0 10
        %2549 = vperm.xlu0 %2548, %v540
        %v2550 = vpop.permute.xlu0 %2549
        %2552 = vset.pattern.permute.xlu0 10
        %2553 = vperm.xlu0 %2552, %v541
        %v2554 = vpop.permute.xlu0 %2553
        %v2556 = vmul.f32 %v570, %v2542
        %v2557 = vmul.f32 %v571, %v2542
        %v2558 = vmul.f32 %v572, %v2542
        %v2559 = vmul.f32 %v573, %v2546
        %v2560 = vmul.f32 %v574, %v2546
        %v2561 = vmul.f32 %v575, %v2546
        %v2562 = vmul.f32 %v576, %v2550
        %v2563 = vmul.f32 %v577, %v2550
        %v2564 = vmul.f32 %v578, %v2550
        %v2565 = vmul.f32 %v579, %v2554
        %v2566 = vmul.f32 %v580, %v2554
        %v2567 = vmul.f32 %v581, %v2554
        %2580 = vrot.lane.b32.xlu0 %v2556, 112
        %v2581 = vpop.permute.xlu0 %2580
        %2582 = vrot.lane.b32.xlu0 %v2557, 112
        %v2583 = vpop.permute.xlu0 %2582
        %2584 = vrot.lane.b32.xlu0 %v2558, 112
        %v2585 = vpop.permute.xlu0 %2584
        %2586 = vrot.lane.b32.xlu0 %v2559, 112
        %v2587 = vpop.permute.xlu0 %2586
        %2588 = vrot.lane.b32.xlu0 %v2560, 112
        %v2589 = vpop.permute.xlu0 %2588
        %2590 = vrot.lane.b32.xlu0 %v2561, 112
        %v2591 = vpop.permute.xlu0 %2590
        %2592 = vrot.lane.b32.xlu0 %v2562, 112
        %v2593 = vpop.permute.xlu0 %2592
        %2594 = vrot.lane.b32.xlu0 %v2563, 112
        %v2595 = vpop.permute.xlu0 %2594
        %2596 = vrot.lane.b32.xlu0 %v2564, 112
        %v2597 = vpop.permute.xlu0 %2596
        %2598 = vrot.lane.b32.xlu0 %v2565, 112
        %v2599 = vpop.permute.xlu0 %2598
        %2600 = vrot.lane.b32.xlu0 %v2566, 112
        %v2601 = vpop.permute.xlu0 %2600
        %2602 = vrot.lane.b32.xlu0 %v2567, 112
        %v2603 = vpop.permute.xlu0 %2602
        %v2604 = vsel %vm646, %v2581, %v2583
        %v2605 = vsel %vm646, %v2583, %v2585
        %v2606 = vsel %vm646, %v2587, %v2589
        %v2607 = vsel %vm646, %v2589, %v2591
        %v2608 = vsel %vm646, %v2593, %v2595
        %v2609 = vsel %vm646, %v2595, %v2597
        %v2610 = vsel %vm646, %v2599, %v2601
        %v2611 = vsel %vm646, %v2601, %v2603
        %v2624 = vadd.f32 %v2528, %v2604
        %v2625 = vadd.f32 %v2529, %v2605
        %v2626 = vadd.f32 %v2530, %v2585
        %v2627 = vadd.f32 %v2531, %v2606
        %v2628 = vadd.f32 %v2532, %v2607
        %v2629 = vadd.f32 %v2533, %v2591
        %v2630 = vadd.f32 %v2534, %v2608
        %v2631 = vadd.f32 %v2535, %v2609
        %v2632 = vadd.f32 %v2536, %v2597
        %v2633 = vadd.f32 %v2537, %v2610
        %v2634 = vadd.f32 %v2538, %v2611
        %v2635 = vadd.f32 %v2539, %v2603
        %2636 = vset.pattern.permute.xlu0 17
        %2637 = vperm.xlu0 %2636, %v538
        %v2638 = vpop.permute.xlu0 %2637
        %2640 = vset.pattern.permute.xlu0 17
        %2641 = vperm.xlu0 %2640, %v539
        %v2642 = vpop.permute.xlu0 %2641
        %2644 = vset.pattern.permute.xlu0 17
        %2645 = vperm.xlu0 %2644, %v540
        %v2646 = vpop.permute.xlu0 %2645
        %2648 = vset.pattern.permute.xlu0 17
        %2649 = vperm.xlu0 %2648, %v541
        %v2650 = vpop.permute.xlu0 %2649
        %v2652 = vmul.f32 %v570, %v2638
        %v2653 = vmul.f32 %v571, %v2638
        %v2654 = vmul.f32 %v572, %v2638
        %v2655 = vmul.f32 %v573, %v2642
        %v2656 = vmul.f32 %v574, %v2642
        %v2657 = vmul.f32 %v575, %v2642
        %v2658 = vmul.f32 %v576, %v2646
        %v2659 = vmul.f32 %v577, %v2646
        %v2660 = vmul.f32 %v578, %v2646
        %v2661 = vmul.f32 %v579, %v2650
        %v2662 = vmul.f32 %v580, %v2650
        %v2663 = vmul.f32 %v581, %v2650
        %2676 = vrot.lane.b32.xlu0 %v2652, 96
        %v2677 = vpop.permute.xlu0 %2676
        %2678 = vrot.lane.b32.xlu0 %v2653, 96
        %v2679 = vpop.permute.xlu0 %2678
        %2680 = vrot.lane.b32.xlu0 %v2654, 96
        %v2681 = vpop.permute.xlu0 %2680
        %2682 = vrot.lane.b32.xlu0 %v2655, 96
        %v2683 = vpop.permute.xlu0 %2682
        %2684 = vrot.lane.b32.xlu0 %v2656, 96
        %v2685 = vpop.permute.xlu0 %2684
        %2686 = vrot.lane.b32.xlu0 %v2657, 96
        %v2687 = vpop.permute.xlu0 %2686
        %2688 = vrot.lane.b32.xlu0 %v2658, 96
        %v2689 = vpop.permute.xlu0 %2688
        %2690 = vrot.lane.b32.xlu0 %v2659, 96
        %v2691 = vpop.permute.xlu0 %2690
        %2692 = vrot.lane.b32.xlu0 %v2660, 96
        %v2693 = vpop.permute.xlu0 %2692
        %2694 = vrot.lane.b32.xlu0 %v2661, 96
        %v2695 = vpop.permute.xlu0 %2694
        %2696 = vrot.lane.b32.xlu0 %v2662, 96
        %v2697 = vpop.permute.xlu0 %2696
        %2698 = vrot.lane.b32.xlu0 %v2663, 96
        %v2699 = vpop.permute.xlu0 %2698
        %v2700 = vsel %vm735, %v2677, %v2679
        %v2701 = vsel %vm735, %v2679, %v2681
        %v2702 = vsel %vm735, %v2683, %v2685
        %v2703 = vsel %vm735, %v2685, %v2687
        %v2704 = vsel %vm735, %v2689, %v2691
        %v2705 = vsel %vm735, %v2691, %v2693
        %v2706 = vsel %vm735, %v2695, %v2697
        %v2707 = vsel %vm735, %v2697, %v2699
        %v2720 = vadd.f32 %v2624, %v2700
        %v2721 = vadd.f32 %v2625, %v2701
        %v2722 = vadd.f32 %v2626, %v2681
        %v2723 = vadd.f32 %v2627, %v2702
        %v2724 = vadd.f32 %v2628, %v2703
        %v2725 = vadd.f32 %v2629, %v2687
        %v2726 = vadd.f32 %v2630, %v2704
        %v2727 = vadd.f32 %v2631, %v2705
        %v2728 = vadd.f32 %v2632, %v2693
        %v2729 = vadd.f32 %v2633, %v2706
        %v2730 = vadd.f32 %v2634, %v2707
        %v2731 = vadd.f32 %v2635, %v2699
        %2732 = vset.pattern.permute.xlu0 24
        %2733 = vperm.xlu0 %2732, %v538
        %v2734 = vpop.permute.xlu0 %2733
        %2736 = vset.pattern.permute.xlu0 24
        %2737 = vperm.xlu0 %2736, %v539
        %v2738 = vpop.permute.xlu0 %2737
        %2740 = vset.pattern.permute.xlu0 24
        %2741 = vperm.xlu0 %2740, %v540
        %v2742 = vpop.permute.xlu0 %2741
        %2744 = vset.pattern.permute.xlu0 24
        %2745 = vperm.xlu0 %2744, %v541
        %v2746 = vpop.permute.xlu0 %2745
        %v2748 = vmul.f32 %v570, %v2734
        %v2749 = vmul.f32 %v571, %v2734
        %v2750 = vmul.f32 %v572, %v2734
        %v2751 = vmul.f32 %v573, %v2738
        %v2752 = vmul.f32 %v574, %v2738
        %v2753 = vmul.f32 %v575, %v2738
        %v2754 = vmul.f32 %v576, %v2742
        %v2755 = vmul.f32 %v577, %v2742
        %v2756 = vmul.f32 %v578, %v2742
        %v2757 = vmul.f32 %v579, %v2746
        %v2758 = vmul.f32 %v580, %v2746
        %v2759 = vmul.f32 %v581, %v2746
        %2772 = vrot.lane.b32.xlu0 %v2748, 80
        %v2773 = vpop.permute.xlu0 %2772
        %2774 = vrot.lane.b32.xlu0 %v2749, 80
        %v2775 = vpop.permute.xlu0 %2774
        %2776 = vrot.lane.b32.xlu0 %v2750, 80
        %v2777 = vpop.permute.xlu0 %2776
        %2778 = vrot.lane.b32.xlu0 %v2751, 80
        %v2779 = vpop.permute.xlu0 %2778
        %2780 = vrot.lane.b32.xlu0 %v2752, 80
        %v2781 = vpop.permute.xlu0 %2780
        %2782 = vrot.lane.b32.xlu0 %v2753, 80
        %v2783 = vpop.permute.xlu0 %2782
        %2784 = vrot.lane.b32.xlu0 %v2754, 80
        %v2785 = vpop.permute.xlu0 %2784
        %2786 = vrot.lane.b32.xlu0 %v2755, 80
        %v2787 = vpop.permute.xlu0 %2786
        %2788 = vrot.lane.b32.xlu0 %v2756, 80
        %v2789 = vpop.permute.xlu0 %2788
        %2790 = vrot.lane.b32.xlu0 %v2757, 80
        %v2791 = vpop.permute.xlu0 %2790
        %2792 = vrot.lane.b32.xlu0 %v2758, 80
        %v2793 = vpop.permute.xlu0 %2792
        %2794 = vrot.lane.b32.xlu0 %v2759, 80
        %v2795 = vpop.permute.xlu0 %2794
        %v2796 = vsel %vm824, %v2773, %v2775
        %v2797 = vsel %vm824, %v2775, %v2777
        %v2798 = vsel %vm824, %v2779, %v2781
        %v2799 = vsel %vm824, %v2781, %v2783
        %v2800 = vsel %vm824, %v2785, %v2787
        %v2801 = vsel %vm824, %v2787, %v2789
        %v2802 = vsel %vm824, %v2791, %v2793
        %v2803 = vsel %vm824, %v2793, %v2795
        %v2816 = vadd.f32 %v2720, %v2796
        %v2817 = vadd.f32 %v2721, %v2797
        %v2818 = vadd.f32 %v2722, %v2777
        %v2819 = vadd.f32 %v2723, %v2798
        %v2820 = vadd.f32 %v2724, %v2799
        %v2821 = vadd.f32 %v2725, %v2783
        %v2822 = vadd.f32 %v2726, %v2800
        %v2823 = vadd.f32 %v2727, %v2801
        %v2824 = vadd.f32 %v2728, %v2789
        %v2825 = vadd.f32 %v2729, %v2802
        %v2826 = vadd.f32 %v2730, %v2803
        %v2827 = vadd.f32 %v2731, %v2795
        %2828 = vset.pattern.permute.xlu0 31
        %2829 = vperm.xlu0 %2828, %v538
        %v2830 = vpop.permute.xlu0 %2829
        %2832 = vset.pattern.permute.xlu0 31
        %2833 = vperm.xlu0 %2832, %v539
        %v2834 = vpop.permute.xlu0 %2833
        %2836 = vset.pattern.permute.xlu0 31
        %2837 = vperm.xlu0 %2836, %v540
        %v2838 = vpop.permute.xlu0 %2837
        %2840 = vset.pattern.permute.xlu0 31
        %2841 = vperm.xlu0 %2840, %v541
        %v2842 = vpop.permute.xlu0 %2841
        %v2844 = vmul.f32 %v570, %v2830
        %v2845 = vmul.f32 %v571, %v2830
        %v2846 = vmul.f32 %v572, %v2830
        %v2847 = vmul.f32 %v573, %v2834
        %v2848 = vmul.f32 %v574, %v2834
        %v2849 = vmul.f32 %v575, %v2834
        %v2850 = vmul.f32 %v576, %v2838
        %v2851 = vmul.f32 %v577, %v2838
        %v2852 = vmul.f32 %v578, %v2838
        %v2853 = vmul.f32 %v579, %v2842
        %v2854 = vmul.f32 %v580, %v2842
        %v2855 = vmul.f32 %v581, %v2842
        %2868 = vrot.lane.b32.xlu0 %v2844, 64
        %v2869 = vpop.permute.xlu0 %2868
        %2870 = vrot.lane.b32.xlu0 %v2845, 64
        %v2871 = vpop.permute.xlu0 %2870
        %2872 = vrot.lane.b32.xlu0 %v2846, 64
        %v2873 = vpop.permute.xlu0 %2872
        %2874 = vrot.lane.b32.xlu0 %v2847, 64
        %v2875 = vpop.permute.xlu0 %2874
        %2876 = vrot.lane.b32.xlu0 %v2848, 64
        %v2877 = vpop.permute.xlu0 %2876
        %2878 = vrot.lane.b32.xlu0 %v2849, 64
        %v2879 = vpop.permute.xlu0 %2878
        %2880 = vrot.lane.b32.xlu0 %v2850, 64
        %v2881 = vpop.permute.xlu0 %2880
        %2882 = vrot.lane.b32.xlu0 %v2851, 64
        %v2883 = vpop.permute.xlu0 %2882
        %2884 = vrot.lane.b32.xlu0 %v2852, 64
        %v2885 = vpop.permute.xlu0 %2884
        %2886 = vrot.lane.b32.xlu0 %v2853, 64
        %v2887 = vpop.permute.xlu0 %2886
        %2888 = vrot.lane.b32.xlu0 %v2854, 64
        %v2889 = vpop.permute.xlu0 %2888
        %2890 = vrot.lane.b32.xlu0 %v2855, 64
        %v2891 = vpop.permute.xlu0 %2890
        %v2892 = vsel %vm913, %v2869, %v2871
        %v2893 = vsel %vm913, %v2871, %v2873
        %v2894 = vsel %vm913, %v2875, %v2877
        %v2895 = vsel %vm913, %v2877, %v2879
        %v2896 = vsel %vm913, %v2881, %v2883
        %v2897 = vsel %vm913, %v2883, %v2885
        %v2898 = vsel %vm913, %v2887, %v2889
        %v2899 = vsel %vm913, %v2889, %v2891
        %v2912 = vadd.f32 %v2816, %v2892
        %v2913 = vadd.f32 %v2817, %v2893
        %v2914 = vadd.f32 %v2818, %v2873
        %v2915 = vadd.f32 %v2819, %v2894
        %v2916 = vadd.f32 %v2820, %v2895
        %v2917 = vadd.f32 %v2821, %v2879
        %v2918 = vadd.f32 %v2822, %v2896
        %v2919 = vadd.f32 %v2823, %v2897
        %v2920 = vadd.f32 %v2824, %v2885
        %v2921 = vadd.f32 %v2825, %v2898
        %v2922 = vadd.f32 %v2826, %v2899
        %v2923 = vadd.f32 %v2827, %v2891
        %2924 = vset.pattern.permute.xlu0 38
        %2925 = vperm.xlu0 %2924, %v538
        %v2926 = vpop.permute.xlu0 %2925
        %2928 = vset.pattern.permute.xlu0 38
        %2929 = vperm.xlu0 %2928, %v539
        %v2930 = vpop.permute.xlu0 %2929
        %2932 = vset.pattern.permute.xlu0 38
        %2933 = vperm.xlu0 %2932, %v540
        %v2934 = vpop.permute.xlu0 %2933
        %2936 = vset.pattern.permute.xlu0 38
        %2937 = vperm.xlu0 %2936, %v541
        %v2938 = vpop.permute.xlu0 %2937
        %v2940 = vmul.f32 %v570, %v2926
        %v2941 = vmul.f32 %v571, %v2926
        %v2942 = vmul.f32 %v572, %v2926
        %v2943 = vmul.f32 %v573, %v2930
        %v2944 = vmul.f32 %v574, %v2930
        %v2945 = vmul.f32 %v575, %v2930
        %v2946 = vmul.f32 %v576, %v2934
        %v2947 = vmul.f32 %v577, %v2934
        %v2948 = vmul.f32 %v578, %v2934
        %v2949 = vmul.f32 %v579, %v2938
        %v2950 = vmul.f32 %v580, %v2938
        %v2951 = vmul.f32 %v581, %v2938
        %2964 = vrot.lane.b32.xlu0 %v2940, 48
        %v2965 = vpop.permute.xlu0 %2964
        %2966 = vrot.lane.b32.xlu0 %v2941, 48
        %v2967 = vpop.permute.xlu0 %2966
        %2968 = vrot.lane.b32.xlu0 %v2942, 48
        %v2969 = vpop.permute.xlu0 %2968
        %2970 = vrot.lane.b32.xlu0 %v2943, 48
        %v2971 = vpop.permute.xlu0 %2970
        %2972 = vrot.lane.b32.xlu0 %v2944, 48
        %v2973 = vpop.permute.xlu0 %2972
        %2974 = vrot.lane.b32.xlu0 %v2945, 48
        %v2975 = vpop.permute.xlu0 %2974
        %2976 = vrot.lane.b32.xlu0 %v2946, 48
        %v2977 = vpop.permute.xlu0 %2976
        %2978 = vrot.lane.b32.xlu0 %v2947, 48
        %v2979 = vpop.permute.xlu0 %2978
        %2980 = vrot.lane.b32.xlu0 %v2948, 48
        %v2981 = vpop.permute.xlu0 %2980
        %2982 = vrot.lane.b32.xlu0 %v2949, 48
        %v2983 = vpop.permute.xlu0 %2982
        %2984 = vrot.lane.b32.xlu0 %v2950, 48
        %v2985 = vpop.permute.xlu0 %2984
        %2986 = vrot.lane.b32.xlu0 %v2951, 48
        %v2987 = vpop.permute.xlu0 %2986
        %v2988 = vsel %vm1002, %v2965, %v2967
        %v2989 = vsel %vm1002, %v2967, %v2969
        %v2990 = vsel %vm1002, %v2971, %v2973
        %v2991 = vsel %vm1002, %v2973, %v2975
        %v2992 = vsel %vm1002, %v2977, %v2979
        %v2993 = vsel %vm1002, %v2979, %v2981
        %v2994 = vsel %vm1002, %v2983, %v2985
        %v2995 = vsel %vm1002, %v2985, %v2987
        %v3008 = vadd.f32 %v2912, %v2988
        %v3009 = vadd.f32 %v2913, %v2989
        %v3010 = vadd.f32 %v2914, %v2969
        %v3011 = vadd.f32 %v2915, %v2990
        %v3012 = vadd.f32 %v2916, %v2991
        %v3013 = vadd.f32 %v2917, %v2975
        %v3014 = vadd.f32 %v2918, %v2992
        %v3015 = vadd.f32 %v2919, %v2993
        %v3016 = vadd.f32 %v2920, %v2981
        %v3017 = vadd.f32 %v2921, %v2994
        %v3018 = vadd.f32 %v2922, %v2995
        %v3019 = vadd.f32 %v2923, %v2987
        %3020 = vset.pattern.permute.xlu0 45
        %3021 = vperm.xlu0 %3020, %v538
        %v3022 = vpop.permute.xlu0 %3021
        %3024 = vset.pattern.permute.xlu0 45
        %3025 = vperm.xlu0 %3024, %v539
        %v3026 = vpop.permute.xlu0 %3025
        %3028 = vset.pattern.permute.xlu0 45
        %3029 = vperm.xlu0 %3028, %v540
        %v3030 = vpop.permute.xlu0 %3029
        %3032 = vset.pattern.permute.xlu0 45
        %3033 = vperm.xlu0 %3032, %v541
        %v3034 = vpop.permute.xlu0 %3033
        %v3036 = vmul.f32 %v570, %v3022
        %v3037 = vmul.f32 %v571, %v3022
        %v3038 = vmul.f32 %v572, %v3022
        %v3039 = vmul.f32 %v573, %v3026
        %v3040 = vmul.f32 %v574, %v3026
        %v3041 = vmul.f32 %v575, %v3026
        %v3042 = vmul.f32 %v576, %v3030
        %v3043 = vmul.f32 %v577, %v3030
        %v3044 = vmul.f32 %v578, %v3030
        %v3045 = vmul.f32 %v579, %v3034
        %v3046 = vmul.f32 %v580, %v3034
        %v3047 = vmul.f32 %v581, %v3034
        %3060 = vrot.lane.b32.xlu0 %v3036, 32
        %v3061 = vpop.permute.xlu0 %3060
        %3062 = vrot.lane.b32.xlu0 %v3037, 32
        %v3063 = vpop.permute.xlu0 %3062
        %3064 = vrot.lane.b32.xlu0 %v3038, 32
        %v3065 = vpop.permute.xlu0 %3064
        %3066 = vrot.lane.b32.xlu0 %v3039, 32
        %v3067 = vpop.permute.xlu0 %3066
        %3068 = vrot.lane.b32.xlu0 %v3040, 32
        %v3069 = vpop.permute.xlu0 %3068
        %3070 = vrot.lane.b32.xlu0 %v3041, 32
        %v3071 = vpop.permute.xlu0 %3070
        %3072 = vrot.lane.b32.xlu0 %v3042, 32
        %v3073 = vpop.permute.xlu0 %3072
        %3074 = vrot.lane.b32.xlu0 %v3043, 32
        %v3075 = vpop.permute.xlu0 %3074
        %3076 = vrot.lane.b32.xlu0 %v3044, 32
        %v3077 = vpop.permute.xlu0 %3076
        %3078 = vrot.lane.b32.xlu0 %v3045, 32
        %v3079 = vpop.permute.xlu0 %3078
        %3080 = vrot.lane.b32.xlu0 %v3046, 32
        %v3081 = vpop.permute.xlu0 %3080
        %3082 = vrot.lane.b32.xlu0 %v3047, 32
        %v3083 = vpop.permute.xlu0 %3082
        %v3084 = vsel %vm1091, %v3061, %v3063
        %v3085 = vsel %vm1091, %v3063, %v3065
        %v3086 = vsel %vm1091, %v3067, %v3069
        %v3087 = vsel %vm1091, %v3069, %v3071
        %v3088 = vsel %vm1091, %v3073, %v3075
        %v3089 = vsel %vm1091, %v3075, %v3077
        %v3090 = vsel %vm1091, %v3079, %v3081
        %v3091 = vsel %vm1091, %v3081, %v3083
        %v3104 = vadd.f32 %v3008, %v3084
        %v3105 = vadd.f32 %v3009, %v3085
        %v3106 = vadd.f32 %v3010, %v3065
        %v3107 = vadd.f32 %v3011, %v3086
        %v3108 = vadd.f32 %v3012, %v3087
        %v3109 = vadd.f32 %v3013, %v3071
        %v3110 = vadd.f32 %v3014, %v3088
        %v3111 = vadd.f32 %v3015, %v3089
        %v3112 = vadd.f32 %v3016, %v3077
        %v3113 = vadd.f32 %v3017, %v3090
        %v3114 = vadd.f32 %v3018, %v3091
        %v3115 = vadd.f32 %v3019, %v3083
        %s3116 = scalar_lea.vmem %s5, 3
        %v3117 = vld [vmem:[%s3116] ss:$8 sm:$0x3]
        %v3119 = vperm.slane %v3117, 0
        %v3120 = vperm.slane %v3117, 1
        %3121 = vrot.lane.b32.xlu0 %v3119, 3
        %v3122 = vpop.permute.xlu0 %3121
        %3123 = vrot.lane.b32.xlu0 %v3120, 3
        %v3124 = vpop.permute.xlu0 %3123
        %vm3125 = vcmask 23552
        %v3126 = vsel %vm3125, %v3122, %v3124
        %v3130 = vmul.f32 %v3104, %v3122
        %v3131 = vmul.f32 %v3105, %v3126
        %v3132 = vmul.f32 %v3106, %v3124
        %v3133 = vmul.f32 %v3107, %v3122
        %v3134 = vmul.f32 %v3108, %v3126
        %v3135 = vmul.f32 %v3109, %v3124
        %v3136 = vmul.f32 %v3110, %v3122
        %v3137 = vmul.f32 %v3111, %v3126
        %v3138 = vmul.f32 %v3112, %v3124
        %v3139 = vmul.f32 %v3113, %v3122
        %v3140 = vmul.f32 %v3114, %v3126
        %v3141 = vmul.f32 %v3115, %v3124
        %3154 = vrot.lane.b32.xlu0 %v3130, 125
        %v3155 = vpop.permute.xlu0 %3154
        %3156 = vrot.lane.b32.xlu0 %v3131, 125
        %v3157 = vpop.permute.xlu0 %3156
        %3158 = vrot.lane.b32.xlu0 %v3132, 125
        %v3159 = vpop.permute.xlu0 %3158
        %3160 = vrot.lane.b32.xlu0 %v3133, 125
        %v3161 = vpop.permute.xlu0 %3160
        %3162 = vrot.lane.b32.xlu0 %v3134, 125
        %v3163 = vpop.permute.xlu0 %3162
        %3164 = vrot.lane.b32.xlu0 %v3135, 125
        %v3165 = vpop.permute.xlu0 %3164
        %3166 = vrot.lane.b32.xlu0 %v3136, 125
        %v3167 = vpop.permute.xlu0 %3166
        %3168 = vrot.lane.b32.xlu0 %v3137, 125
        %v3169 = vpop.permute.xlu0 %3168
        %3170 = vrot.lane.b32.xlu0 %v3138, 125
        %v3171 = vpop.permute.xlu0 %3170
        %3172 = vrot.lane.b32.xlu0 %v3139, 125
        %v3173 = vpop.permute.xlu0 %3172
        %3174 = vrot.lane.b32.xlu0 %v3140, 125
        %v3175 = vpop.permute.xlu0 %3174
        %3176 = vrot.lane.b32.xlu0 %v3141, 125
        %v3177 = vpop.permute.xlu0 %3176
        %vm3178 = vcmask 1022976
        %v3179 = vsel %vm3178, %v3155, %v3157
        %v3180 = vsel %vm3178, %v3157, %v3159
        %v3181 = vsel %vm3178, %v3161, %v3163
        %v3182 = vsel %vm3178, %v3163, %v3165
        %v3183 = vsel %vm3178, %v3167, %v3169
        %v3184 = vsel %vm3178, %v3169, %v3171
        %v3185 = vsel %vm3178, %v3173, %v3175
        %v3186 = vsel %vm3178, %v3175, %v3177
        %v3195 = vadd.f32 %v2504, %v3179
        %v3196 = vadd.f32 %v2505, %v3180
        %v3197 = vadd.f32 %v2506, %v3181
        %v3198 = vadd.f32 %v2507, %v3182
        %v3199 = vadd.f32 %v2508, %v3183
        %v3200 = vadd.f32 %v2509, %v3184
        %v3201 = vadd.f32 %v2510, %v3185
        %v3202 = vadd.f32 %v2511, %v3186
        %3203 = vset.pattern.permute.xlu0 4
        %3204 = vperm.xlu0 %3203, %v538
        %v3205 = vpop.permute.xlu0 %3204
        %3207 = vset.pattern.permute.xlu0 4
        %3208 = vperm.xlu0 %3207, %v539
        %v3209 = vpop.permute.xlu0 %3208
        %3211 = vset.pattern.permute.xlu0 4
        %3212 = vperm.xlu0 %3211, %v540
        %v3213 = vpop.permute.xlu0 %3212
        %3215 = vset.pattern.permute.xlu0 4
        %3216 = vperm.xlu0 %3215, %v541
        %v3217 = vpop.permute.xlu0 %3216
        %v3219 = vmul.f32 %v570, %v3205
        %v3220 = vmul.f32 %v571, %v3205
        %v3221 = vmul.f32 %v572, %v3205
        %v3222 = vmul.f32 %v573, %v3209
        %v3223 = vmul.f32 %v574, %v3209
        %v3224 = vmul.f32 %v575, %v3209
        %v3225 = vmul.f32 %v576, %v3213
        %v3226 = vmul.f32 %v577, %v3213
        %v3227 = vmul.f32 %v578, %v3213
        %v3228 = vmul.f32 %v579, %v3217
        %v3229 = vmul.f32 %v580, %v3217
        %v3230 = vmul.f32 %v581, %v3217
        %3231 = vset.pattern.permute.xlu0 11
        %3232 = vperm.xlu0 %3231, %v538
        %v3233 = vpop.permute.xlu0 %3232
        %3235 = vset.pattern.permute.xlu0 11
        %3236 = vperm.xlu0 %3235, %v539
        %v3237 = vpop.permute.xlu0 %3236
        %3239 = vset.pattern.permute.xlu0 11
        %3240 = vperm.xlu0 %3239, %v540
        %v3241 = vpop.permute.xlu0 %3240
        %3243 = vset.pattern.permute.xlu0 11
        %3244 = vperm.xlu0 %3243, %v541
        %v3245 = vpop.permute.xlu0 %3244
        %v3247 = vmul.f32 %v570, %v3233
        %v3248 = vmul.f32 %v571, %v3233
        %v3249 = vmul.f32 %v572, %v3233
        %v3250 = vmul.f32 %v573, %v3237
        %v3251 = vmul.f32 %v574, %v3237
        %v3252 = vmul.f32 %v575, %v3237
        %v3253 = vmul.f32 %v576, %v3241
        %v3254 = vmul.f32 %v577, %v3241
        %v3255 = vmul.f32 %v578, %v3241
        %v3256 = vmul.f32 %v579, %v3245
        %v3257 = vmul.f32 %v580, %v3245
        %v3258 = vmul.f32 %v581, %v3245
        %3271 = vrot.lane.b32.xlu0 %v3247, 112
        %v3272 = vpop.permute.xlu0 %3271
        %3273 = vrot.lane.b32.xlu0 %v3248, 112
        %v3274 = vpop.permute.xlu0 %3273
        %3275 = vrot.lane.b32.xlu0 %v3249, 112
        %v3276 = vpop.permute.xlu0 %3275
        %3277 = vrot.lane.b32.xlu0 %v3250, 112
        %v3278 = vpop.permute.xlu0 %3277
        %3279 = vrot.lane.b32.xlu0 %v3251, 112
        %v3280 = vpop.permute.xlu0 %3279
        %3281 = vrot.lane.b32.xlu0 %v3252, 112
        %v3282 = vpop.permute.xlu0 %3281
        %3283 = vrot.lane.b32.xlu0 %v3253, 112
        %v3284 = vpop.permute.xlu0 %3283
        %3285 = vrot.lane.b32.xlu0 %v3254, 112
        %v3286 = vpop.permute.xlu0 %3285
        %3287 = vrot.lane.b32.xlu0 %v3255, 112
        %v3288 = vpop.permute.xlu0 %3287
        %3289 = vrot.lane.b32.xlu0 %v3256, 112
        %v3290 = vpop.permute.xlu0 %3289
        %3291 = vrot.lane.b32.xlu0 %v3257, 112
        %v3292 = vpop.permute.xlu0 %3291
        %3293 = vrot.lane.b32.xlu0 %v3258, 112
        %v3294 = vpop.permute.xlu0 %3293
        %v3295 = vsel %vm646, %v3272, %v3274
        %v3296 = vsel %vm646, %v3274, %v3276
        %v3297 = vsel %vm646, %v3278, %v3280
        %v3298 = vsel %vm646, %v3280, %v3282
        %v3299 = vsel %vm646, %v3284, %v3286
        %v3300 = vsel %vm646, %v3286, %v3288
        %v3301 = vsel %vm646, %v3290, %v3292
        %v3302 = vsel %vm646, %v3292, %v3294
        %v3315 = vadd.f32 %v3219, %v3295
        %v3316 = vadd.f32 %v3220, %v3296
        %v3317 = vadd.f32 %v3221, %v3276
        %v3318 = vadd.f32 %v3222, %v3297
        %v3319 = vadd.f32 %v3223, %v3298
        %v3320 = vadd.f32 %v3224, %v3282
        %v3321 = vadd.f32 %v3225, %v3299
        %v3322 = vadd.f32 %v3226, %v3300
        %v3323 = vadd.f32 %v3227, %v3288
        %v3324 = vadd.f32 %v3228, %v3301
        %v3325 = vadd.f32 %v3229, %v3302
        %v3326 = vadd.f32 %v3230, %v3294
        %3327 = vset.pattern.permute.xlu0 18
        %3328 = vperm.xlu0 %3327, %v538
        %v3329 = vpop.permute.xlu0 %3328
        %3331 = vset.pattern.permute.xlu0 18
        %3332 = vperm.xlu0 %3331, %v539
        %v3333 = vpop.permute.xlu0 %3332
        %3335 = vset.pattern.permute.xlu0 18
        %3336 = vperm.xlu0 %3335, %v540
        %v3337 = vpop.permute.xlu0 %3336
        %3339 = vset.pattern.permute.xlu0 18
        %3340 = vperm.xlu0 %3339, %v541
        %v3341 = vpop.permute.xlu0 %3340
        %v3343 = vmul.f32 %v570, %v3329
        %v3344 = vmul.f32 %v571, %v3329
        %v3345 = vmul.f32 %v572, %v3329
        %v3346 = vmul.f32 %v573, %v3333
        %v3347 = vmul.f32 %v574, %v3333
        %v3348 = vmul.f32 %v575, %v3333
        %v3349 = vmul.f32 %v576, %v3337
        %v3350 = vmul.f32 %v577, %v3337
        %v3351 = vmul.f32 %v578, %v3337
        %v3352 = vmul.f32 %v579, %v3341
        %v3353 = vmul.f32 %v580, %v3341
        %v3354 = vmul.f32 %v581, %v3341
        %3367 = vrot.lane.b32.xlu0 %v3343, 96
        %v3368 = vpop.permute.xlu0 %3367
        %3369 = vrot.lane.b32.xlu0 %v3344, 96
        %v3370 = vpop.permute.xlu0 %3369
        %3371 = vrot.lane.b32.xlu0 %v3345, 96
        %v3372 = vpop.permute.xlu0 %3371
        %3373 = vrot.lane.b32.xlu0 %v3346, 96
        %v3374 = vpop.permute.xlu0 %3373
        %3375 = vrot.lane.b32.xlu0 %v3347, 96
        %v3376 = vpop.permute.xlu0 %3375
        %3377 = vrot.lane.b32.xlu0 %v3348, 96
        %v3378 = vpop.permute.xlu0 %3377
        %3379 = vrot.lane.b32.xlu0 %v3349, 96
        %v3380 = vpop.permute.xlu0 %3379
        %3381 = vrot.lane.b32.xlu0 %v3350, 96
        %v3382 = vpop.permute.xlu0 %3381
        %3383 = vrot.lane.b32.xlu0 %v3351, 96
        %v3384 = vpop.permute.xlu0 %3383
        %3385 = vrot.lane.b32.xlu0 %v3352, 96
        %v3386 = vpop.permute.xlu0 %3385
        %3387 = vrot.lane.b32.xlu0 %v3353, 96
        %v3388 = vpop.permute.xlu0 %3387
        %3389 = vrot.lane.b32.xlu0 %v3354, 96
        %v3390 = vpop.permute.xlu0 %3389
        %v3391 = vsel %vm735, %v3368, %v3370
        %v3392 = vsel %vm735, %v3370, %v3372
        %v3393 = vsel %vm735, %v3374, %v3376
        %v3394 = vsel %vm735, %v3376, %v3378
        %v3395 = vsel %vm735, %v3380, %v3382
        %v3396 = vsel %vm735, %v3382, %v3384
        %v3397 = vsel %vm735, %v3386, %v3388
        %v3398 = vsel %vm735, %v3388, %v3390
        %v3411 = vadd.f32 %v3315, %v3391
        %v3412 = vadd.f32 %v3316, %v3392
        %v3413 = vadd.f32 %v3317, %v3372
        %v3414 = vadd.f32 %v3318, %v3393
        %v3415 = vadd.f32 %v3319, %v3394
        %v3416 = vadd.f32 %v3320, %v3378
        %v3417 = vadd.f32 %v3321, %v3395
        %v3418 = vadd.f32 %v3322, %v3396
        %v3419 = vadd.f32 %v3323, %v3384
        %v3420 = vadd.f32 %v3324, %v3397
        %v3421 = vadd.f32 %v3325, %v3398
        %v3422 = vadd.f32 %v3326, %v3390
        %3423 = vset.pattern.permute.xlu0 25
        %3424 = vperm.xlu0 %3423, %v538
        %v3425 = vpop.permute.xlu0 %3424
        %3427 = vset.pattern.permute.xlu0 25
        %3428 = vperm.xlu0 %3427, %v539
        %v3429 = vpop.permute.xlu0 %3428
        %3431 = vset.pattern.permute.xlu0 25
        %3432 = vperm.xlu0 %3431, %v540
        %v3433 = vpop.permute.xlu0 %3432
        %3435 = vset.pattern.permute.xlu0 25
        %3436 = vperm.xlu0 %3435, %v541
        %v3437 = vpop.permute.xlu0 %3436
        %v3439 = vmul.f32 %v570, %v3425
        %v3440 = vmul.f32 %v571, %v3425
        %v3441 = vmul.f32 %v572, %v3425
        %v3442 = vmul.f32 %v573, %v3429
        %v3443 = vmul.f32 %v574, %v3429
        %v3444 = vmul.f32 %v575, %v3429
        %v3445 = vmul.f32 %v576, %v3433
        %v3446 = vmul.f32 %v577, %v3433
        %v3447 = vmul.f32 %v578, %v3433
        %v3448 = vmul.f32 %v579, %v3437
        %v3449 = vmul.f32 %v580, %v3437
        %v3450 = vmul.f32 %v581, %v3437
        %3463 = vrot.lane.b32.xlu0 %v3439, 80
        %v3464 = vpop.permute.xlu0 %3463
        %3465 = vrot.lane.b32.xlu0 %v3440, 80
        %v3466 = vpop.permute.xlu0 %3465
        %3467 = vrot.lane.b32.xlu0 %v3441, 80
        %v3468 = vpop.permute.xlu0 %3467
        %3469 = vrot.lane.b32.xlu0 %v3442, 80
        %v3470 = vpop.permute.xlu0 %3469
        %3471 = vrot.lane.b32.xlu0 %v3443, 80
        %v3472 = vpop.permute.xlu0 %3471
        %3473 = vrot.lane.b32.xlu0 %v3444, 80
        %v3474 = vpop.permute.xlu0 %3473
        %3475 = vrot.lane.b32.xlu0 %v3445, 80
        %v3476 = vpop.permute.xlu0 %3475
        %3477 = vrot.lane.b32.xlu0 %v3446, 80
        %v3478 = vpop.permute.xlu0 %3477
        %3479 = vrot.lane.b32.xlu0 %v3447, 80
        %v3480 = vpop.permute.xlu0 %3479
        %3481 = vrot.lane.b32.xlu0 %v3448, 80
        %v3482 = vpop.permute.xlu0 %3481
        %3483 = vrot.lane.b32.xlu0 %v3449, 80
        %v3484 = vpop.permute.xlu0 %3483
        %3485 = vrot.lane.b32.xlu0 %v3450, 80
        %v3486 = vpop.permute.xlu0 %3485
        %v3487 = vsel %vm824, %v3464, %v3466
        %v3488 = vsel %vm824, %v3466, %v3468
        %v3489 = vsel %vm824, %v3470, %v3472
        %v3490 = vsel %vm824, %v3472, %v3474
        %v3491 = vsel %vm824, %v3476, %v3478
        %v3492 = vsel %vm824, %v3478, %v3480
        %v3493 = vsel %vm824, %v3482, %v3484
        %v3494 = vsel %vm824, %v3484, %v3486
        %v3507 = vadd.f32 %v3411, %v3487
        %v3508 = vadd.f32 %v3412, %v3488
        %v3509 = vadd.f32 %v3413, %v3468
        %v3510 = vadd.f32 %v3414, %v3489
        %v3511 = vadd.f32 %v3415, %v3490
        %v3512 = vadd.f32 %v3416, %v3474
        %v3513 = vadd.f32 %v3417, %v3491
        %v3514 = vadd.f32 %v3418, %v3492
        %v3515 = vadd.f32 %v3419, %v3480
        %v3516 = vadd.f32 %v3420, %v3493
        %v3517 = vadd.f32 %v3421, %v3494
        %v3518 = vadd.f32 %v3422, %v3486
        %3519 = vset.pattern.permute.xlu0 32
        %3520 = vperm.xlu0 %3519, %v538
        %v3521 = vpop.permute.xlu0 %3520
        %3523 = vset.pattern.permute.xlu0 32
        %3524 = vperm.xlu0 %3523, %v539
        %v3525 = vpop.permute.xlu0 %3524
        %3527 = vset.pattern.permute.xlu0 32
        %3528 = vperm.xlu0 %3527, %v540
        %v3529 = vpop.permute.xlu0 %3528
        %3531 = vset.pattern.permute.xlu0 32
        %3532 = vperm.xlu0 %3531, %v541
        %v3533 = vpop.permute.xlu0 %3532
        %v3535 = vmul.f32 %v570, %v3521
        %v3536 = vmul.f32 %v571, %v3521
        %v3537 = vmul.f32 %v572, %v3521
        %v3538 = vmul.f32 %v573, %v3525
        %v3539 = vmul.f32 %v574, %v3525
        %v3540 = vmul.f32 %v575, %v3525
        %v3541 = vmul.f32 %v576, %v3529
        %v3542 = vmul.f32 %v577, %v3529
        %v3543 = vmul.f32 %v578, %v3529
        %v3544 = vmul.f32 %v579, %v3533
        %v3545 = vmul.f32 %v580, %v3533
        %v3546 = vmul.f32 %v581, %v3533
        %3559 = vrot.lane.b32.xlu0 %v3535, 64
        %v3560 = vpop.permute.xlu0 %3559
        %3561 = vrot.lane.b32.xlu0 %v3536, 64
        %v3562 = vpop.permute.xlu0 %3561
        %3563 = vrot.lane.b32.xlu0 %v3537, 64
        %v3564 = vpop.permute.xlu0 %3563
        %3565 = vrot.lane.b32.xlu0 %v3538, 64
        %v3566 = vpop.permute.xlu0 %3565
        %3567 = vrot.lane.b32.xlu0 %v3539, 64
        %v3568 = vpop.permute.xlu0 %3567
        %3569 = vrot.lane.b32.xlu0 %v3540, 64
        %v3570 = vpop.permute.xlu0 %3569
        %3571 = vrot.lane.b32.xlu0 %v3541, 64
        %v3572 = vpop.permute.xlu0 %3571
        %3573 = vrot.lane.b32.xlu0 %v3542, 64
        %v3574 = vpop.permute.xlu0 %3573
        %3575 = vrot.lane.b32.xlu0 %v3543, 64
        %v3576 = vpop.permute.xlu0 %3575
        %3577 = vrot.lane.b32.xlu0 %v3544, 64
        %v3578 = vpop.permute.xlu0 %3577
        %3579 = vrot.lane.b32.xlu0 %v3545, 64
        %v3580 = vpop.permute.xlu0 %3579
        %3581 = vrot.lane.b32.xlu0 %v3546, 64
        %v3582 = vpop.permute.xlu0 %3581
        %v3583 = vsel %vm913, %v3560, %v3562
        %v3584 = vsel %vm913, %v3562, %v3564
        %v3585 = vsel %vm913, %v3566, %v3568
        %v3586 = vsel %vm913, %v3568, %v3570
        %v3587 = vsel %vm913, %v3572, %v3574
        %v3588 = vsel %vm913, %v3574, %v3576
        %v3589 = vsel %vm913, %v3578, %v3580
        %v3590 = vsel %vm913, %v3580, %v3582
        %v3603 = vadd.f32 %v3507, %v3583
        %v3604 = vadd.f32 %v3508, %v3584
        %v3605 = vadd.f32 %v3509, %v3564
        %v3606 = vadd.f32 %v3510, %v3585
        %v3607 = vadd.f32 %v3511, %v3586
        %v3608 = vadd.f32 %v3512, %v3570
        %v3609 = vadd.f32 %v3513, %v3587
        %v3610 = vadd.f32 %v3514, %v3588
        %v3611 = vadd.f32 %v3515, %v3576
        %v3612 = vadd.f32 %v3516, %v3589
        %v3613 = vadd.f32 %v3517, %v3590
        %v3614 = vadd.f32 %v3518, %v3582
        %3615 = vset.pattern.permute.xlu0 39
        %3616 = vperm.xlu0 %3615, %v538
        %v3617 = vpop.permute.xlu0 %3616
        %3619 = vset.pattern.permute.xlu0 39
        %3620 = vperm.xlu0 %3619, %v539
        %v3621 = vpop.permute.xlu0 %3620
        %3623 = vset.pattern.permute.xlu0 39
        %3624 = vperm.xlu0 %3623, %v540
        %v3625 = vpop.permute.xlu0 %3624
        %3627 = vset.pattern.permute.xlu0 39
        %3628 = vperm.xlu0 %3627, %v541
        %v3629 = vpop.permute.xlu0 %3628
        %v3631 = vmul.f32 %v570, %v3617
        %v3632 = vmul.f32 %v571, %v3617
        %v3633 = vmul.f32 %v572, %v3617
        %v3634 = vmul.f32 %v573, %v3621
        %v3635 = vmul.f32 %v574, %v3621
        %v3636 = vmul.f32 %v575, %v3621
        %v3637 = vmul.f32 %v576, %v3625
        %v3638 = vmul.f32 %v577, %v3625
        %v3639 = vmul.f32 %v578, %v3625
        %v3640 = vmul.f32 %v579, %v3629
        %v3641 = vmul.f32 %v580, %v3629
        %v3642 = vmul.f32 %v581, %v3629
        %3655 = vrot.lane.b32.xlu0 %v3631, 48
        %v3656 = vpop.permute.xlu0 %3655
        %3657 = vrot.lane.b32.xlu0 %v3632, 48
        %v3658 = vpop.permute.xlu0 %3657
        %3659 = vrot.lane.b32.xlu0 %v3633, 48
        %v3660 = vpop.permute.xlu0 %3659
        %3661 = vrot.lane.b32.xlu0 %v3634, 48
        %v3662 = vpop.permute.xlu0 %3661
        %3663 = vrot.lane.b32.xlu0 %v3635, 48
        %v3664 = vpop.permute.xlu0 %3663
        %3665 = vrot.lane.b32.xlu0 %v3636, 48
        %v3666 = vpop.permute.xlu0 %3665
        %3667 = vrot.lane.b32.xlu0 %v3637, 48
        %v3668 = vpop.permute.xlu0 %3667
        %3669 = vrot.lane.b32.xlu0 %v3638, 48
        %v3670 = vpop.permute.xlu0 %3669
        %3671 = vrot.lane.b32.xlu0 %v3639, 48
        %v3672 = vpop.permute.xlu0 %3671
        %3673 = vrot.lane.b32.xlu0 %v3640, 48
        %v3674 = vpop.permute.xlu0 %3673
        %3675 = vrot.lane.b32.xlu0 %v3641, 48
        %v3676 = vpop.permute.xlu0 %3675
        %3677 = vrot.lane.b32.xlu0 %v3642, 48
        %v3678 = vpop.permute.xlu0 %3677
        %v3679 = vsel %vm1002, %v3656, %v3658
        %v3680 = vsel %vm1002, %v3658, %v3660
        %v3681 = vsel %vm1002, %v3662, %v3664
        %v3682 = vsel %vm1002, %v3664, %v3666
        %v3683 = vsel %vm1002, %v3668, %v3670
        %v3684 = vsel %vm1002, %v3670, %v3672
        %v3685 = vsel %vm1002, %v3674, %v3676
        %v3686 = vsel %vm1002, %v3676, %v3678
        %v3699 = vadd.f32 %v3603, %v3679
        %v3700 = vadd.f32 %v3604, %v3680
        %v3701 = vadd.f32 %v3605, %v3660
        %v3702 = vadd.f32 %v3606, %v3681
        %v3703 = vadd.f32 %v3607, %v3682
        %v3704 = vadd.f32 %v3608, %v3666
        %v3705 = vadd.f32 %v3609, %v3683
        %v3706 = vadd.f32 %v3610, %v3684
        %v3707 = vadd.f32 %v3611, %v3672
        %v3708 = vadd.f32 %v3612, %v3685
        %v3709 = vadd.f32 %v3613, %v3686
        %v3710 = vadd.f32 %v3614, %v3678
        %3711 = vset.pattern.permute.xlu0 46
        %3712 = vperm.xlu0 %3711, %v538
        %v3713 = vpop.permute.xlu0 %3712
        %3715 = vset.pattern.permute.xlu0 46
        %3716 = vperm.xlu0 %3715, %v539
        %v3717 = vpop.permute.xlu0 %3716
        %3719 = vset.pattern.permute.xlu0 46
        %3720 = vperm.xlu0 %3719, %v540
        %v3721 = vpop.permute.xlu0 %3720
        %3723 = vset.pattern.permute.xlu0 46
        %3724 = vperm.xlu0 %3723, %v541
        %v3725 = vpop.permute.xlu0 %3724
        %v3727 = vmul.f32 %v570, %v3713
        %v3728 = vmul.f32 %v571, %v3713
        %v3729 = vmul.f32 %v572, %v3713
        %v3730 = vmul.f32 %v573, %v3717
        %v3731 = vmul.f32 %v574, %v3717
        %v3732 = vmul.f32 %v575, %v3717
        %v3733 = vmul.f32 %v576, %v3721
        %v3734 = vmul.f32 %v577, %v3721
        %v3735 = vmul.f32 %v578, %v3721
        %v3736 = vmul.f32 %v579, %v3725
        %v3737 = vmul.f32 %v580, %v3725
        %v3738 = vmul.f32 %v581, %v3725
        %3751 = vrot.lane.b32.xlu0 %v3727, 32
        %v3752 = vpop.permute.xlu0 %3751
        %3753 = vrot.lane.b32.xlu0 %v3728, 32
        %v3754 = vpop.permute.xlu0 %3753
        %3755 = vrot.lane.b32.xlu0 %v3729, 32
        %v3756 = vpop.permute.xlu0 %3755
        %3757 = vrot.lane.b32.xlu0 %v3730, 32
        %v3758 = vpop.permute.xlu0 %3757
        %3759 = vrot.lane.b32.xlu0 %v3731, 32
        %v3760 = vpop.permute.xlu0 %3759
        %3761 = vrot.lane.b32.xlu0 %v3732, 32
        %v3762 = vpop.permute.xlu0 %3761
        %3763 = vrot.lane.b32.xlu0 %v3733, 32
        %v3764 = vpop.permute.xlu0 %3763
        %3765 = vrot.lane.b32.xlu0 %v3734, 32
        %v3766 = vpop.permute.xlu0 %3765
        %3767 = vrot.lane.b32.xlu0 %v3735, 32
        %v3768 = vpop.permute.xlu0 %3767
        %3769 = vrot.lane.b32.xlu0 %v3736, 32
        %v3770 = vpop.permute.xlu0 %3769
        %3771 = vrot.lane.b32.xlu0 %v3737, 32
        %v3772 = vpop.permute.xlu0 %3771
        %3773 = vrot.lane.b32.xlu0 %v3738, 32
        %v3774 = vpop.permute.xlu0 %3773
        %v3775 = vsel %vm1091, %v3752, %v3754
        %v3776 = vsel %vm1091, %v3754, %v3756
        %v3777 = vsel %vm1091, %v3758, %v3760
        %v3778 = vsel %vm1091, %v3760, %v3762
        %v3779 = vsel %vm1091, %v3764, %v3766
        %v3780 = vsel %vm1091, %v3766, %v3768
        %v3781 = vsel %vm1091, %v3770, %v3772
        %v3782 = vsel %vm1091, %v3772, %v3774
        %v3795 = vadd.f32 %v3699, %v3775
        %v3796 = vadd.f32 %v3700, %v3776
        %v3797 = vadd.f32 %v3701, %v3756
        %v3798 = vadd.f32 %v3702, %v3777
        %v3799 = vadd.f32 %v3703, %v3778
        %v3800 = vadd.f32 %v3704, %v3762
        %v3801 = vadd.f32 %v3705, %v3779
        %v3802 = vadd.f32 %v3706, %v3780
        %v3803 = vadd.f32 %v3707, %v3768
        %v3804 = vadd.f32 %v3708, %v3781
        %v3805 = vadd.f32 %v3709, %v3782
        %v3806 = vadd.f32 %v3710, %v3774
        %s3807 = scalar_lea.vmem %s5, 4
        %v3808 = vld [vmem:[%s3807] ss:$8 sm:$0x3]
        %v3810 = vperm.slane %v3808, 0
        %v3811 = vperm.slane %v3808, 1
        %3812 = vrot.lane.b32.xlu0 %v3810, 4
        %v3813 = vpop.permute.xlu0 %3812
        %3814 = vrot.lane.b32.xlu0 %v3811, 4
        %v3815 = vpop.permute.xlu0 %3814
        %vm3816 = vcmask 31744
        %v3817 = vsel %vm3816, %v3813, %v3815
        %v3821 = vmul.f32 %v3795, %v3813
        %v3822 = vmul.f32 %v3796, %v3817
        %v3823 = vmul.f32 %v3797, %v3815
        %v3824 = vmul.f32 %v3798, %v3813
        %v3825 = vmul.f32 %v3799, %v3817
        %v3826 = vmul.f32 %v3800, %v3815
        %v3827 = vmul.f32 %v3801, %v3813
        %v3828 = vmul.f32 %v3802, %v3817
        %v3829 = vmul.f32 %v3803, %v3815
        %v3830 = vmul.f32 %v3804, %v3813
        %v3831 = vmul.f32 %v3805, %v3817
        %v3832 = vmul.f32 %v3806, %v3815
        %3845 = vrot.lane.b32.xlu0 %v3821, 124
        %v3846 = vpop.permute.xlu0 %3845
        %3847 = vrot.lane.b32.xlu0 %v3822, 124
        %v3848 = vpop.permute.xlu0 %3847
        %3849 = vrot.lane.b32.xlu0 %v3823, 124
        %v3850 = vpop.permute.xlu0 %3849
        %3851 = vrot.lane.b32.xlu0 %v3824, 124
        %v3852 = vpop.permute.xlu0 %3851
        %3853 = vrot.lane.b32.xlu0 %v3825, 124
        %v3854 = vpop.permute.xlu0 %3853
        %3855 = vrot.lane.b32.xlu0 %v3826, 124
        %v3856 = vpop.permute.xlu0 %3855
        %3857 = vrot.lane.b32.xlu0 %v3827, 124
        %v3858 = vpop.permute.xlu0 %3857
        %3859 = vrot.lane.b32.xlu0 %v3828, 124
        %v3860 = vpop.permute.xlu0 %3859
        %3861 = vrot.lane.b32.xlu0 %v3829, 124
        %v3862 = vpop.permute.xlu0 %3861
        %3863 = vrot.lane.b32.xlu0 %v3830, 124
        %v3864 = vpop.permute.xlu0 %3863
        %3865 = vrot.lane.b32.xlu0 %v3831, 124
        %v3866 = vpop.permute.xlu0 %3865
        %3867 = vrot.lane.b32.xlu0 %v3832, 124
        %v3868 = vpop.permute.xlu0 %3867
        %vm3869 = vcmask 1014784
        %v3870 = vsel %vm3869, %v3846, %v3848
        %v3871 = vsel %vm3869, %v3848, %v3850
        %v3872 = vsel %vm3869, %v3852, %v3854
        %v3873 = vsel %vm3869, %v3854, %v3856
        %v3874 = vsel %vm3869, %v3858, %v3860
        %v3875 = vsel %vm3869, %v3860, %v3862
        %v3876 = vsel %vm3869, %v3864, %v3866
        %v3877 = vsel %vm3869, %v3866, %v3868
        %v3886 = vadd.f32 %v3195, %v3870
        %v3887 = vadd.f32 %v3196, %v3871
        %v3888 = vadd.f32 %v3197, %v3872
        %v3889 = vadd.f32 %v3198, %v3873
        %v3890 = vadd.f32 %v3199, %v3874
        %v3891 = vadd.f32 %v3200, %v3875
        %v3892 = vadd.f32 %v3201, %v3876
        %v3893 = vadd.f32 %v3202, %v3877
        %3894 = vset.pattern.permute.xlu0 5
        %3895 = vperm.xlu0 %3894, %v538
        %v3896 = vpop.permute.xlu0 %3895
        %3898 = vset.pattern.permute.xlu0 5
        %3899 = vperm.xlu0 %3898, %v539
        %v3900 = vpop.permute.xlu0 %3899
        %3902 = vset.pattern.permute.xlu0 5
        %3903 = vperm.xlu0 %3902, %v540
        %v3904 = vpop.permute.xlu0 %3903
        %3906 = vset.pattern.permute.xlu0 5
        %3907 = vperm.xlu0 %3906, %v541
        %v3908 = vpop.permute.xlu0 %3907
        %v3910 = vmul.f32 %v570, %v3896
        %v3911 = vmul.f32 %v571, %v3896
        %v3912 = vmul.f32 %v572, %v3896
        %v3913 = vmul.f32 %v573, %v3900
        %v3914 = vmul.f32 %v574, %v3900
        %v3915 = vmul.f32 %v575, %v3900
        %v3916 = vmul.f32 %v576, %v3904
        %v3917 = vmul.f32 %v577, %v3904
        %v3918 = vmul.f32 %v578, %v3904
        %v3919 = vmul.f32 %v579, %v3908
        %v3920 = vmul.f32 %v580, %v3908
        %v3921 = vmul.f32 %v581, %v3908
        %3922 = vset.pattern.permute.xlu0 12
        %3923 = vperm.xlu0 %3922, %v538
        %v3924 = vpop.permute.xlu0 %3923
        %3926 = vset.pattern.permute.xlu0 12
        %3927 = vperm.xlu0 %3926, %v539
        %v3928 = vpop.permute.xlu0 %3927
        %3930 = vset.pattern.permute.xlu0 12
        %3931 = vperm.xlu0 %3930, %v540
        %v3932 = vpop.permute.xlu0 %3931
        %3934 = vset.pattern.permute.xlu0 12
        %3935 = vperm.xlu0 %3934, %v541
        %v3936 = vpop.permute.xlu0 %3935
        %v3938 = vmul.f32 %v570, %v3924
        %v3939 = vmul.f32 %v571, %v3924
        %v3940 = vmul.f32 %v572, %v3924
        %v3941 = vmul.f32 %v573, %v3928
        %v3942 = vmul.f32 %v574, %v3928
        %v3943 = vmul.f32 %v575, %v3928
        %v3944 = vmul.f32 %v576, %v3932
        %v3945 = vmul.f32 %v577, %v3932
        %v3946 = vmul.f32 %v578, %v3932
        %v3947 = vmul.f32 %v579, %v3936
        %v3948 = vmul.f32 %v580, %v3936
        %v3949 = vmul.f32 %v581, %v3936
        %3962 = vrot.lane.b32.xlu0 %v3938, 112
        %v3963 = vpop.permute.xlu0 %3962
        %3964 = vrot.lane.b32.xlu0 %v3939, 112
        %v3965 = vpop.permute.xlu0 %3964
        %3966 = vrot.lane.b32.xlu0 %v3940, 112
        %v3967 = vpop.permute.xlu0 %3966
        %3968 = vrot.lane.b32.xlu0 %v3941, 112
        %v3969 = vpop.permute.xlu0 %3968
        %3970 = vrot.lane.b32.xlu0 %v3942, 112
        %v3971 = vpop.permute.xlu0 %3970
        %3972 = vrot.lane.b32.xlu0 %v3943, 112
        %v3973 = vpop.permute.xlu0 %3972
        %3974 = vrot.lane.b32.xlu0 %v3944, 112
        %v3975 = vpop.permute.xlu0 %3974
        %3976 = vrot.lane.b32.xlu0 %v3945, 112
        %v3977 = vpop.permute.xlu0 %3976
        %3978 = vrot.lane.b32.xlu0 %v3946, 112
        %v3979 = vpop.permute.xlu0 %3978
        %3980 = vrot.lane.b32.xlu0 %v3947, 112
        %v3981 = vpop.permute.xlu0 %3980
        %3982 = vrot.lane.b32.xlu0 %v3948, 112
        %v3983 = vpop.permute.xlu0 %3982
        %3984 = vrot.lane.b32.xlu0 %v3949, 112
        %v3985 = vpop.permute.xlu0 %3984
        %v3986 = vsel %vm646, %v3963, %v3965
        %v3987 = vsel %vm646, %v3965, %v3967
        %v3988 = vsel %vm646, %v3969, %v3971
        %v3989 = vsel %vm646, %v3971, %v3973
        %v3990 = vsel %vm646, %v3975, %v3977
        %v3991 = vsel %vm646, %v3977, %v3979
        %v3992 = vsel %vm646, %v3981, %v3983
        %v3993 = vsel %vm646, %v3983, %v3985
        %v4006 = vadd.f32 %v3910, %v3986
        %v4007 = vadd.f32 %v3911, %v3987
        %v4008 = vadd.f32 %v3912, %v3967
        %v4009 = vadd.f32 %v3913, %v3988
        %v4010 = vadd.f32 %v3914, %v3989
        %v4011 = vadd.f32 %v3915, %v3973
        %v4012 = vadd.f32 %v3916, %v3990
        %v4013 = vadd.f32 %v3917, %v3991
        %v4014 = vadd.f32 %v3918, %v3979
        %v4015 = vadd.f32 %v3919, %v3992
        %v4016 = vadd.f32 %v3920, %v3993
        %v4017 = vadd.f32 %v3921, %v3985
        %4018 = vset.pattern.permute.xlu0 19
        %4019 = vperm.xlu0 %4018, %v538
        %v4020 = vpop.permute.xlu0 %4019
        %4022 = vset.pattern.permute.xlu0 19
        %4023 = vperm.xlu0 %4022, %v539
        %v4024 = vpop.permute.xlu0 %4023
        %4026 = vset.pattern.permute.xlu0 19
        %4027 = vperm.xlu0 %4026, %v540
        %v4028 = vpop.permute.xlu0 %4027
        %4030 = vset.pattern.permute.xlu0 19
        %4031 = vperm.xlu0 %4030, %v541
        %v4032 = vpop.permute.xlu0 %4031
        %v4034 = vmul.f32 %v570, %v4020
        %v4035 = vmul.f32 %v571, %v4020
        %v4036 = vmul.f32 %v572, %v4020
        %v4037 = vmul.f32 %v573, %v4024
        %v4038 = vmul.f32 %v574, %v4024
        %v4039 = vmul.f32 %v575, %v4024
        %v4040 = vmul.f32 %v576, %v4028
        %v4041 = vmul.f32 %v577, %v4028
        %v4042 = vmul.f32 %v578, %v4028
        %v4043 = vmul.f32 %v579, %v4032
        %v4044 = vmul.f32 %v580, %v4032
        %v4045 = vmul.f32 %v581, %v4032
        %4058 = vrot.lane.b32.xlu0 %v4034, 96
        %v4059 = vpop.permute.xlu0 %4058
        %4060 = vrot.lane.b32.xlu0 %v4035, 96
        %v4061 = vpop.permute.xlu0 %4060
        %4062 = vrot.lane.b32.xlu0 %v4036, 96
        %v4063 = vpop.permute.xlu0 %4062
        %4064 = vrot.lane.b32.xlu0 %v4037, 96
        %v4065 = vpop.permute.xlu0 %4064
        %4066 = vrot.lane.b32.xlu0 %v4038, 96
        %v4067 = vpop.permute.xlu0 %4066
        %4068 = vrot.lane.b32.xlu0 %v4039, 96
        %v4069 = vpop.permute.xlu0 %4068
        %4070 = vrot.lane.b32.xlu0 %v4040, 96
        %v4071 = vpop.permute.xlu0 %4070
        %4072 = vrot.lane.b32.xlu0 %v4041, 96
        %v4073 = vpop.permute.xlu0 %4072
        %4074 = vrot.lane.b32.xlu0 %v4042, 96
        %v4075 = vpop.permute.xlu0 %4074
        %4076 = vrot.lane.b32.xlu0 %v4043, 96
        %v4077 = vpop.permute.xlu0 %4076
        %4078 = vrot.lane.b32.xlu0 %v4044, 96
        %v4079 = vpop.permute.xlu0 %4078
        %4080 = vrot.lane.b32.xlu0 %v4045, 96
        %v4081 = vpop.permute.xlu0 %4080
        %v4082 = vsel %vm735, %v4059, %v4061
        %v4083 = vsel %vm735, %v4061, %v4063
        %v4084 = vsel %vm735, %v4065, %v4067
        %v4085 = vsel %vm735, %v4067, %v4069
        %v4086 = vsel %vm735, %v4071, %v4073
        %v4087 = vsel %vm735, %v4073, %v4075
        %v4088 = vsel %vm735, %v4077, %v4079
        %v4089 = vsel %vm735, %v4079, %v4081
        %v4102 = vadd.f32 %v4006, %v4082
        %v4103 = vadd.f32 %v4007, %v4083
        %v4104 = vadd.f32 %v4008, %v4063
        %v4105 = vadd.f32 %v4009, %v4084
        %v4106 = vadd.f32 %v4010, %v4085
        %v4107 = vadd.f32 %v4011, %v4069
        %v4108 = vadd.f32 %v4012, %v4086
        %v4109 = vadd.f32 %v4013, %v4087
        %v4110 = vadd.f32 %v4014, %v4075
        %v4111 = vadd.f32 %v4015, %v4088
        %v4112 = vadd.f32 %v4016, %v4089
        %v4113 = vadd.f32 %v4017, %v4081
        %4114 = vset.pattern.permute.xlu0 26
        %4115 = vperm.xlu0 %4114, %v538
        %v4116 = vpop.permute.xlu0 %4115
        %4118 = vset.pattern.permute.xlu0 26
        %4119 = vperm.xlu0 %4118, %v539
        %v4120 = vpop.permute.xlu0 %4119
        %4122 = vset.pattern.permute.xlu0 26
        %4123 = vperm.xlu0 %4122, %v540
        %v4124 = vpop.permute.xlu0 %4123
        %4126 = vset.pattern.permute.xlu0 26
        %4127 = vperm.xlu0 %4126, %v541
        %v4128 = vpop.permute.xlu0 %4127
        %v4130 = vmul.f32 %v570, %v4116
        %v4131 = vmul.f32 %v571, %v4116
        %v4132 = vmul.f32 %v572, %v4116
        %v4133 = vmul.f32 %v573, %v4120
        %v4134 = vmul.f32 %v574, %v4120
        %v4135 = vmul.f32 %v575, %v4120
        %v4136 = vmul.f32 %v576, %v4124
        %v4137 = vmul.f32 %v577, %v4124
        %v4138 = vmul.f32 %v578, %v4124
        %v4139 = vmul.f32 %v579, %v4128
        %v4140 = vmul.f32 %v580, %v4128
        %v4141 = vmul.f32 %v581, %v4128
        %4154 = vrot.lane.b32.xlu0 %v4130, 80
        %v4155 = vpop.permute.xlu0 %4154
        %4156 = vrot.lane.b32.xlu0 %v4131, 80
        %v4157 = vpop.permute.xlu0 %4156
        %4158 = vrot.lane.b32.xlu0 %v4132, 80
        %v4159 = vpop.permute.xlu0 %4158
        %4160 = vrot.lane.b32.xlu0 %v4133, 80
        %v4161 = vpop.permute.xlu0 %4160
        %4162 = vrot.lane.b32.xlu0 %v4134, 80
        %v4163 = vpop.permute.xlu0 %4162
        %4164 = vrot.lane.b32.xlu0 %v4135, 80
        %v4165 = vpop.permute.xlu0 %4164
        %4166 = vrot.lane.b32.xlu0 %v4136, 80
        %v4167 = vpop.permute.xlu0 %4166
        %4168 = vrot.lane.b32.xlu0 %v4137, 80
        %v4169 = vpop.permute.xlu0 %4168
        %4170 = vrot.lane.b32.xlu0 %v4138, 80
        %v4171 = vpop.permute.xlu0 %4170
        %4172 = vrot.lane.b32.xlu0 %v4139, 80
        %v4173 = vpop.permute.xlu0 %4172
        %4174 = vrot.lane.b32.xlu0 %v4140, 80
        %v4175 = vpop.permute.xlu0 %4174
        %4176 = vrot.lane.b32.xlu0 %v4141, 80
        %v4177 = vpop.permute.xlu0 %4176
        %v4178 = vsel %vm824, %v4155, %v4157
        %v4179 = vsel %vm824, %v4157, %v4159
        %v4180 = vsel %vm824, %v4161, %v4163
        %v4181 = vsel %vm824, %v4163, %v4165
        %v4182 = vsel %vm824, %v4167, %v4169
        %v4183 = vsel %vm824, %v4169, %v4171
        %v4184 = vsel %vm824, %v4173, %v4175
        %v4185 = vsel %vm824, %v4175, %v4177
        %v4198 = vadd.f32 %v4102, %v4178
        %v4199 = vadd.f32 %v4103, %v4179
        %v4200 = vadd.f32 %v4104, %v4159
        %v4201 = vadd.f32 %v4105, %v4180
        %v4202 = vadd.f32 %v4106, %v4181
        %v4203 = vadd.f32 %v4107, %v4165
        %v4204 = vadd.f32 %v4108, %v4182
        %v4205 = vadd.f32 %v4109, %v4183
        %v4206 = vadd.f32 %v4110, %v4171
        %v4207 = vadd.f32 %v4111, %v4184
        %v4208 = vadd.f32 %v4112, %v4185
        %v4209 = vadd.f32 %v4113, %v4177
        %4210 = vset.pattern.permute.xlu0 33
        %4211 = vperm.xlu0 %4210, %v538
        %v4212 = vpop.permute.xlu0 %4211
        %4214 = vset.pattern.permute.xlu0 33
        %4215 = vperm.xlu0 %4214, %v539
        %v4216 = vpop.permute.xlu0 %4215
        %4218 = vset.pattern.permute.xlu0 33
        %4219 = vperm.xlu0 %4218, %v540
        %v4220 = vpop.permute.xlu0 %4219
        %4222 = vset.pattern.permute.xlu0 33
        %4223 = vperm.xlu0 %4222, %v541
        %v4224 = vpop.permute.xlu0 %4223
        %v4226 = vmul.f32 %v570, %v4212
        %v4227 = vmul.f32 %v571, %v4212
        %v4228 = vmul.f32 %v572, %v4212
        %v4229 = vmul.f32 %v573, %v4216
        %v4230 = vmul.f32 %v574, %v4216
        %v4231 = vmul.f32 %v575, %v4216
        %v4232 = vmul.f32 %v576, %v4220
        %v4233 = vmul.f32 %v577, %v4220
        %v4234 = vmul.f32 %v578, %v4220
        %v4235 = vmul.f32 %v579, %v4224
        %v4236 = vmul.f32 %v580, %v4224
        %v4237 = vmul.f32 %v581, %v4224
        %4250 = vrot.lane.b32.xlu0 %v4226, 64
        %v4251 = vpop.permute.xlu0 %4250
        %4252 = vrot.lane.b32.xlu0 %v4227, 64
        %v4253 = vpop.permute.xlu0 %4252
        %4254 = vrot.lane.b32.xlu0 %v4228, 64
        %v4255 = vpop.permute.xlu0 %4254
        %4256 = vrot.lane.b32.xlu0 %v4229, 64
        %v4257 = vpop.permute.xlu0 %4256
        %4258 = vrot.lane.b32.xlu0 %v4230, 64
        %v4259 = vpop.permute.xlu0 %4258
        %4260 = vrot.lane.b32.xlu0 %v4231, 64
        %v4261 = vpop.permute.xlu0 %4260
        %4262 = vrot.lane.b32.xlu0 %v4232, 64
        %v4263 = vpop.permute.xlu0 %4262
        %4264 = vrot.lane.b32.xlu0 %v4233, 64
        %v4265 = vpop.permute.xlu0 %4264
        %4266 = vrot.lane.b32.xlu0 %v4234, 64
        %v4267 = vpop.permute.xlu0 %4266
        %4268 = vrot.lane.b32.xlu0 %v4235, 64
        %v4269 = vpop.permute.xlu0 %4268
        %4270 = vrot.lane.b32.xlu0 %v4236, 64
        %v4271 = vpop.permute.xlu0 %4270
        %4272 = vrot.lane.b32.xlu0 %v4237, 64
        %v4273 = vpop.permute.xlu0 %4272
        %v4274 = vsel %vm913, %v4251, %v4253
        %v4275 = vsel %vm913, %v4253, %v4255
        %v4276 = vsel %vm913, %v4257, %v4259
        %v4277 = vsel %vm913, %v4259, %v4261
        %v4278 = vsel %vm913, %v4263, %v4265
        %v4279 = vsel %vm913, %v4265, %v4267
        %v4280 = vsel %vm913, %v4269, %v4271
        %v4281 = vsel %vm913, %v4271, %v4273
        %v4294 = vadd.f32 %v4198, %v4274
        %v4295 = vadd.f32 %v4199, %v4275
        %v4296 = vadd.f32 %v4200, %v4255
        %v4297 = vadd.f32 %v4201, %v4276
        %v4298 = vadd.f32 %v4202, %v4277
        %v4299 = vadd.f32 %v4203, %v4261
        %v4300 = vadd.f32 %v4204, %v4278
        %v4301 = vadd.f32 %v4205, %v4279
        %v4302 = vadd.f32 %v4206, %v4267
        %v4303 = vadd.f32 %v4207, %v4280
        %v4304 = vadd.f32 %v4208, %v4281
        %v4305 = vadd.f32 %v4209, %v4273
        %4306 = vset.pattern.permute.xlu0 40
        %4307 = vperm.xlu0 %4306, %v538
        %v4308 = vpop.permute.xlu0 %4307
        %4310 = vset.pattern.permute.xlu0 40
        %4311 = vperm.xlu0 %4310, %v539
        %v4312 = vpop.permute.xlu0 %4311
        %4314 = vset.pattern.permute.xlu0 40
        %4315 = vperm.xlu0 %4314, %v540
        %v4316 = vpop.permute.xlu0 %4315
        %4318 = vset.pattern.permute.xlu0 40
        %4319 = vperm.xlu0 %4318, %v541
        %v4320 = vpop.permute.xlu0 %4319
        %v4322 = vmul.f32 %v570, %v4308
        %v4323 = vmul.f32 %v571, %v4308
        %v4324 = vmul.f32 %v572, %v4308
        %v4325 = vmul.f32 %v573, %v4312
        %v4326 = vmul.f32 %v574, %v4312
        %v4327 = vmul.f32 %v575, %v4312
        %v4328 = vmul.f32 %v576, %v4316
        %v4329 = vmul.f32 %v577, %v4316
        %v4330 = vmul.f32 %v578, %v4316
        %v4331 = vmul.f32 %v579, %v4320
        %v4332 = vmul.f32 %v580, %v4320
        %v4333 = vmul.f32 %v581, %v4320
        %4346 = vrot.lane.b32.xlu0 %v4322, 48
        %v4347 = vpop.permute.xlu0 %4346
        %4348 = vrot.lane.b32.xlu0 %v4323, 48
        %v4349 = vpop.permute.xlu0 %4348
        %4350 = vrot.lane.b32.xlu0 %v4324, 48
        %v4351 = vpop.permute.xlu0 %4350
        %4352 = vrot.lane.b32.xlu0 %v4325, 48
        %v4353 = vpop.permute.xlu0 %4352
        %4354 = vrot.lane.b32.xlu0 %v4326, 48
        %v4355 = vpop.permute.xlu0 %4354
        %4356 = vrot.lane.b32.xlu0 %v4327, 48
        %v4357 = vpop.permute.xlu0 %4356
        %4358 = vrot.lane.b32.xlu0 %v4328, 48
        %v4359 = vpop.permute.xlu0 %4358
        %4360 = vrot.lane.b32.xlu0 %v4329, 48
        %v4361 = vpop.permute.xlu0 %4360
        %4362 = vrot.lane.b32.xlu0 %v4330, 48
        %v4363 = vpop.permute.xlu0 %4362
        %4364 = vrot.lane.b32.xlu0 %v4331, 48
        %v4365 = vpop.permute.xlu0 %4364
        %4366 = vrot.lane.b32.xlu0 %v4332, 48
        %v4367 = vpop.permute.xlu0 %4366
        %4368 = vrot.lane.b32.xlu0 %v4333, 48
        %v4369 = vpop.permute.xlu0 %4368
        %v4370 = vsel %vm1002, %v4347, %v4349
        %v4371 = vsel %vm1002, %v4349, %v4351
        %v4372 = vsel %vm1002, %v4353, %v4355
        %v4373 = vsel %vm1002, %v4355, %v4357
        %v4374 = vsel %vm1002, %v4359, %v4361
        %v4375 = vsel %vm1002, %v4361, %v4363
        %v4376 = vsel %vm1002, %v4365, %v4367
        %v4377 = vsel %vm1002, %v4367, %v4369
        %v4390 = vadd.f32 %v4294, %v4370
        %v4391 = vadd.f32 %v4295, %v4371
        %v4392 = vadd.f32 %v4296, %v4351
        %v4393 = vadd.f32 %v4297, %v4372
        %v4394 = vadd.f32 %v4298, %v4373
        %v4395 = vadd.f32 %v4299, %v4357
        %v4396 = vadd.f32 %v4300, %v4374
        %v4397 = vadd.f32 %v4301, %v4375
        %v4398 = vadd.f32 %v4302, %v4363
        %v4399 = vadd.f32 %v4303, %v4376
        %v4400 = vadd.f32 %v4304, %v4377
        %v4401 = vadd.f32 %v4305, %v4369
        %4402 = vset.pattern.permute.xlu0 47
        %4403 = vperm.xlu0 %4402, %v538
        %v4404 = vpop.permute.xlu0 %4403
        %4406 = vset.pattern.permute.xlu0 47
        %4407 = vperm.xlu0 %4406, %v539
        %v4408 = vpop.permute.xlu0 %4407
        %4410 = vset.pattern.permute.xlu0 47
        %4411 = vperm.xlu0 %4410, %v540
        %v4412 = vpop.permute.xlu0 %4411
        %4414 = vset.pattern.permute.xlu0 47
        %4415 = vperm.xlu0 %4414, %v541
        %v4416 = vpop.permute.xlu0 %4415
        %v4418 = vmul.f32 %v570, %v4404
        %v4419 = vmul.f32 %v571, %v4404
        %v4420 = vmul.f32 %v572, %v4404
        %v4421 = vmul.f32 %v573, %v4408
        %v4422 = vmul.f32 %v574, %v4408
        %v4423 = vmul.f32 %v575, %v4408
        %v4424 = vmul.f32 %v576, %v4412
        %v4425 = vmul.f32 %v577, %v4412
        %v4426 = vmul.f32 %v578, %v4412
        %v4427 = vmul.f32 %v579, %v4416
        %v4428 = vmul.f32 %v580, %v4416
        %v4429 = vmul.f32 %v581, %v4416
        %4442 = vrot.lane.b32.xlu0 %v4418, 32
        %v4443 = vpop.permute.xlu0 %4442
        %4444 = vrot.lane.b32.xlu0 %v4419, 32
        %v4445 = vpop.permute.xlu0 %4444
        %4446 = vrot.lane.b32.xlu0 %v4420, 32
        %v4447 = vpop.permute.xlu0 %4446
        %4448 = vrot.lane.b32.xlu0 %v4421, 32
        %v4449 = vpop.permute.xlu0 %4448
        %4450 = vrot.lane.b32.xlu0 %v4422, 32
        %v4451 = vpop.permute.xlu0 %4450
        %4452 = vrot.lane.b32.xlu0 %v4423, 32
        %v4453 = vpop.permute.xlu0 %4452
        %4454 = vrot.lane.b32.xlu0 %v4424, 32
        %v4455 = vpop.permute.xlu0 %4454
        %4456 = vrot.lane.b32.xlu0 %v4425, 32
        %v4457 = vpop.permute.xlu0 %4456
        %4458 = vrot.lane.b32.xlu0 %v4426, 32
        %v4459 = vpop.permute.xlu0 %4458
        %4460 = vrot.lane.b32.xlu0 %v4427, 32
        %v4461 = vpop.permute.xlu0 %4460
        %4462 = vrot.lane.b32.xlu0 %v4428, 32
        %v4463 = vpop.permute.xlu0 %4462
        %4464 = vrot.lane.b32.xlu0 %v4429, 32
        %v4465 = vpop.permute.xlu0 %4464
        %v4466 = vsel %vm1091, %v4443, %v4445
        %v4467 = vsel %vm1091, %v4445, %v4447
        %v4468 = vsel %vm1091, %v4449, %v4451
        %v4469 = vsel %vm1091, %v4451, %v4453
        %v4470 = vsel %vm1091, %v4455, %v4457
        %v4471 = vsel %vm1091, %v4457, %v4459
        %v4472 = vsel %vm1091, %v4461, %v4463
        %v4473 = vsel %vm1091, %v4463, %v4465
        %v4486 = vadd.f32 %v4390, %v4466
        %v4487 = vadd.f32 %v4391, %v4467
        %v4488 = vadd.f32 %v4392, %v4447
        %v4489 = vadd.f32 %v4393, %v4468
        %v4490 = vadd.f32 %v4394, %v4469
        %v4491 = vadd.f32 %v4395, %v4453
        %v4492 = vadd.f32 %v4396, %v4470
        %v4493 = vadd.f32 %v4397, %v4471
        %v4494 = vadd.f32 %v4398, %v4459
        %v4495 = vadd.f32 %v4399, %v4472
        %v4496 = vadd.f32 %v4400, %v4473
        %v4497 = vadd.f32 %v4401, %v4465
        %s4498 = scalar_lea.vmem %s5, 5
        %v4499 = vld [vmem:[%s4498] ss:$8 sm:$0x3]
        %v4501 = vperm.slane %v4499, 0
        %v4502 = vperm.slane %v4499, 1
        %4503 = vrot.lane.b32.xlu0 %v4501, 5
        %v4504 = vpop.permute.xlu0 %4503
        %4505 = vrot.lane.b32.xlu0 %v4502, 5
        %v4506 = vpop.permute.xlu0 %4505
        %vm4507 = vcmask 39936
        %v4508 = vsel %vm4507, %v4504, %v4506
        %v4512 = vmul.f32 %v4486, %v4504
        %v4513 = vmul.f32 %v4487, %v4508
        %v4514 = vmul.f32 %v4488, %v4506
        %v4515 = vmul.f32 %v4489, %v4504
        %v4516 = vmul.f32 %v4490, %v4508
        %v4517 = vmul.f32 %v4491, %v4506
        %v4518 = vmul.f32 %v4492, %v4504
        %v4519 = vmul.f32 %v4493, %v4508
        %v4520 = vmul.f32 %v4494, %v4506
        %v4521 = vmul.f32 %v4495, %v4504
        %v4522 = vmul.f32 %v4496, %v4508
        %v4523 = vmul.f32 %v4497, %v4506
        %4536 = vrot.lane.b32.xlu0 %v4512, 123
        %v4537 = vpop.permute.xlu0 %4536
        %4538 = vrot.lane.b32.xlu0 %v4513, 123
        %v4539 = vpop.permute.xlu0 %4538
        %4540 = vrot.lane.b32.xlu0 %v4514, 123
        %v4541 = vpop.permute.xlu0 %4540
        %4542 = vrot.lane.b32.xlu0 %v4515, 123
        %v4543 = vpop.permute.xlu0 %4542
        %4544 = vrot.lane.b32.xlu0 %v4516, 123
        %v4545 = vpop.permute.xlu0 %4544
        %4546 = vrot.lane.b32.xlu0 %v4517, 123
        %v4547 = vpop.permute.xlu0 %4546
        %4548 = vrot.lane.b32.xlu0 %v4518, 123
        %v4549 = vpop.permute.xlu0 %4548
        %4550 = vrot.lane.b32.xlu0 %v4519, 123
        %v4551 = vpop.permute.xlu0 %4550
        %4552 = vrot.lane.b32.xlu0 %v4520, 123
        %v4553 = vpop.permute.xlu0 %4552
        %4554 = vrot.lane.b32.xlu0 %v4521, 123
        %v4555 = vpop.permute.xlu0 %4554
        %4556 = vrot.lane.b32.xlu0 %v4522, 123
        %v4557 = vpop.permute.xlu0 %4556
        %4558 = vrot.lane.b32.xlu0 %v4523, 123
        %v4559 = vpop.permute.xlu0 %4558
        %vm4560 = vcmask 1006592
        %v4561 = vsel %vm4560, %v4537, %v4539
        %v4562 = vsel %vm4560, %v4539, %v4541
        %v4563 = vsel %vm4560, %v4543, %v4545
        %v4564 = vsel %vm4560, %v4545, %v4547
        %v4565 = vsel %vm4560, %v4549, %v4551
        %v4566 = vsel %vm4560, %v4551, %v4553
        %v4567 = vsel %vm4560, %v4555, %v4557
        %v4568 = vsel %vm4560, %v4557, %v4559
        %v4577 = vadd.f32 %v3886, %v4561
        %v4578 = vadd.f32 %v3887, %v4562
        %v4579 = vadd.f32 %v3888, %v4563
        %v4580 = vadd.f32 %v3889, %v4564
        %v4581 = vadd.f32 %v3890, %v4565
        %v4582 = vadd.f32 %v3891, %v4566
        %v4583 = vadd.f32 %v3892, %v4567
        %v4584 = vadd.f32 %v3893, %v4568
        %4585 = vset.pattern.permute.xlu0 6
        %4586 = vperm.xlu0 %4585, %v538
        %v4587 = vpop.permute.xlu0 %4586
        %4589 = vset.pattern.permute.xlu0 6
        %4590 = vperm.xlu0 %4589, %v539
        %v4591 = vpop.permute.xlu0 %4590
        %4593 = vset.pattern.permute.xlu0 6
        %4594 = vperm.xlu0 %4593, %v540
        %v4595 = vpop.permute.xlu0 %4594
        %4597 = vset.pattern.permute.xlu0 6
        %4598 = vperm.xlu0 %4597, %v541
        %v4599 = vpop.permute.xlu0 %4598
        %v4601 = vmul.f32 %v570, %v4587
        %v4602 = vmul.f32 %v571, %v4587
        %v4603 = vmul.f32 %v572, %v4587
        %v4604 = vmul.f32 %v573, %v4591
        %v4605 = vmul.f32 %v574, %v4591
        %v4606 = vmul.f32 %v575, %v4591
        %v4607 = vmul.f32 %v576, %v4595
        %v4608 = vmul.f32 %v577, %v4595
        %v4609 = vmul.f32 %v578, %v4595
        %v4610 = vmul.f32 %v579, %v4599
        %v4611 = vmul.f32 %v580, %v4599
        %v4612 = vmul.f32 %v581, %v4599
        %4613 = vset.pattern.permute.xlu0 13
        %4614 = vperm.xlu0 %4613, %v538
        %v4615 = vpop.permute.xlu0 %4614
        %4617 = vset.pattern.permute.xlu0 13
        %4618 = vperm.xlu0 %4617, %v539
        %v4619 = vpop.permute.xlu0 %4618
        %4621 = vset.pattern.permute.xlu0 13
        %4622 = vperm.xlu0 %4621, %v540
        %v4623 = vpop.permute.xlu0 %4622
        %4625 = vset.pattern.permute.xlu0 13
        %4626 = vperm.xlu0 %4625, %v541
        %v4627 = vpop.permute.xlu0 %4626
        %v4629 = vmul.f32 %v570, %v4615
        %v4630 = vmul.f32 %v571, %v4615
        %v4631 = vmul.f32 %v572, %v4615
        %v4632 = vmul.f32 %v573, %v4619
        %v4633 = vmul.f32 %v574, %v4619
        %v4634 = vmul.f32 %v575, %v4619
        %v4635 = vmul.f32 %v576, %v4623
        %v4636 = vmul.f32 %v577, %v4623
        %v4637 = vmul.f32 %v578, %v4623
        %v4638 = vmul.f32 %v579, %v4627
        %v4639 = vmul.f32 %v580, %v4627
        %v4640 = vmul.f32 %v581, %v4627
        %4653 = vrot.lane.b32.xlu0 %v4629, 112
        %v4654 = vpop.permute.xlu0 %4653
        %4655 = vrot.lane.b32.xlu0 %v4630, 112
        %v4656 = vpop.permute.xlu0 %4655
        %4657 = vrot.lane.b32.xlu0 %v4631, 112
        %v4658 = vpop.permute.xlu0 %4657
        %4659 = vrot.lane.b32.xlu0 %v4632, 112
        %v4660 = vpop.permute.xlu0 %4659
        %4661 = vrot.lane.b32.xlu0 %v4633, 112
        %v4662 = vpop.permute.xlu0 %4661
        %4663 = vrot.lane.b32.xlu0 %v4634, 112
        %v4664 = vpop.permute.xlu0 %4663
        %4665 = vrot.lane.b32.xlu0 %v4635, 112
        %v4666 = vpop.permute.xlu0 %4665
        %4667 = vrot.lane.b32.xlu0 %v4636, 112
        %v4668 = vpop.permute.xlu0 %4667
        %4669 = vrot.lane.b32.xlu0 %v4637, 112
        %v4670 = vpop.permute.xlu0 %4669
        %4671 = vrot.lane.b32.xlu0 %v4638, 112
        %v4672 = vpop.permute.xlu0 %4671
        %4673 = vrot.lane.b32.xlu0 %v4639, 112
        %v4674 = vpop.permute.xlu0 %4673
        %4675 = vrot.lane.b32.xlu0 %v4640, 112
        %v4676 = vpop.permute.xlu0 %4675
        %v4677 = vsel %vm646, %v4654, %v4656
        %v4678 = vsel %vm646, %v4656, %v4658
        %v4679 = vsel %vm646, %v4660, %v4662
        %v4680 = vsel %vm646, %v4662, %v4664
        %v4681 = vsel %vm646, %v4666, %v4668
        %v4682 = vsel %vm646, %v4668, %v4670
        %v4683 = vsel %vm646, %v4672, %v4674
        %v4684 = vsel %vm646, %v4674, %v4676
        %v4697 = vadd.f32 %v4601, %v4677
        %v4698 = vadd.f32 %v4602, %v4678
        %v4699 = vadd.f32 %v4603, %v4658
        %v4700 = vadd.f32 %v4604, %v4679
        %v4701 = vadd.f32 %v4605, %v4680
        %v4702 = vadd.f32 %v4606, %v4664
        %v4703 = vadd.f32 %v4607, %v4681
        %v4704 = vadd.f32 %v4608, %v4682
        %v4705 = vadd.f32 %v4609, %v4670
        %v4706 = vadd.f32 %v4610, %v4683
        %v4707 = vadd.f32 %v4611, %v4684
        %v4708 = vadd.f32 %v4612, %v4676
        %4709 = vset.pattern.permute.xlu0 20
        %4710 = vperm.xlu0 %4709, %v538
        %v4711 = vpop.permute.xlu0 %4710
        %4713 = vset.pattern.permute.xlu0 20
        %4714 = vperm.xlu0 %4713, %v539
        %v4715 = vpop.permute.xlu0 %4714
        %4717 = vset.pattern.permute.xlu0 20
        %4718 = vperm.xlu0 %4717, %v540
        %v4719 = vpop.permute.xlu0 %4718
        %4721 = vset.pattern.permute.xlu0 20
        %4722 = vperm.xlu0 %4721, %v541
        %v4723 = vpop.permute.xlu0 %4722
        %v4725 = vmul.f32 %v570, %v4711
        %v4726 = vmul.f32 %v571, %v4711
        %v4727 = vmul.f32 %v572, %v4711
        %v4728 = vmul.f32 %v573, %v4715
        %v4729 = vmul.f32 %v574, %v4715
        %v4730 = vmul.f32 %v575, %v4715
        %v4731 = vmul.f32 %v576, %v4719
        %v4732 = vmul.f32 %v577, %v4719
        %v4733 = vmul.f32 %v578, %v4719
        %v4734 = vmul.f32 %v579, %v4723
        %v4735 = vmul.f32 %v580, %v4723
        %v4736 = vmul.f32 %v581, %v4723
        %4749 = vrot.lane.b32.xlu0 %v4725, 96
        %v4750 = vpop.permute.xlu0 %4749
        %4751 = vrot.lane.b32.xlu0 %v4726, 96
        %v4752 = vpop.permute.xlu0 %4751
        %4753 = vrot.lane.b32.xlu0 %v4727, 96
        %v4754 = vpop.permute.xlu0 %4753
        %4755 = vrot.lane.b32.xlu0 %v4728, 96
        %v4756 = vpop.permute.xlu0 %4755
        %4757 = vrot.lane.b32.xlu0 %v4729, 96
        %v4758 = vpop.permute.xlu0 %4757
        %4759 = vrot.lane.b32.xlu0 %v4730, 96
        %v4760 = vpop.permute.xlu0 %4759
        %4761 = vrot.lane.b32.xlu0 %v4731, 96
        %v4762 = vpop.permute.xlu0 %4761
        %4763 = vrot.lane.b32.xlu0 %v4732, 96
        %v4764 = vpop.permute.xlu0 %4763
        %4765 = vrot.lane.b32.xlu0 %v4733, 96
        %v4766 = vpop.permute.xlu0 %4765
        %4767 = vrot.lane.b32.xlu0 %v4734, 96
        %v4768 = vpop.permute.xlu0 %4767
        %4769 = vrot.lane.b32.xlu0 %v4735, 96
        %v4770 = vpop.permute.xlu0 %4769
        %4771 = vrot.lane.b32.xlu0 %v4736, 96
        %v4772 = vpop.permute.xlu0 %4771
        %v4773 = vsel %vm735, %v4750, %v4752
        %v4774 = vsel %vm735, %v4752, %v4754
        %v4775 = vsel %vm735, %v4756, %v4758
        %v4776 = vsel %vm735, %v4758, %v4760
        %v4777 = vsel %vm735, %v4762, %v4764
        %v4778 = vsel %vm735, %v4764, %v4766
        %v4779 = vsel %vm735, %v4768, %v4770
        %v4780 = vsel %vm735, %v4770, %v4772
        %v4793 = vadd.f32 %v4697, %v4773
        %v4794 = vadd.f32 %v4698, %v4774
        %v4795 = vadd.f32 %v4699, %v4754
        %v4796 = vadd.f32 %v4700, %v4775
        %v4797 = vadd.f32 %v4701, %v4776
        %v4798 = vadd.f32 %v4702, %v4760
        %v4799 = vadd.f32 %v4703, %v4777
        %v4800 = vadd.f32 %v4704, %v4778
        %v4801 = vadd.f32 %v4705, %v4766
        %v4802 = vadd.f32 %v4706, %v4779
        %v4803 = vadd.f32 %v4707, %v4780
        %v4804 = vadd.f32 %v4708, %v4772
        %4805 = vset.pattern.permute.xlu0 27
        %4806 = vperm.xlu0 %4805, %v538
        %v4807 = vpop.permute.xlu0 %4806
        %4809 = vset.pattern.permute.xlu0 27
        %4810 = vperm.xlu0 %4809, %v539
        %v4811 = vpop.permute.xlu0 %4810
        %4813 = vset.pattern.permute.xlu0 27
        %4814 = vperm.xlu0 %4813, %v540
        %v4815 = vpop.permute.xlu0 %4814
        %4817 = vset.pattern.permute.xlu0 27
        %4818 = vperm.xlu0 %4817, %v541
        %v4819 = vpop.permute.xlu0 %4818
        %v4821 = vmul.f32 %v570, %v4807
        %v4822 = vmul.f32 %v571, %v4807
        %v4823 = vmul.f32 %v572, %v4807
        %v4824 = vmul.f32 %v573, %v4811
        %v4825 = vmul.f32 %v574, %v4811
        %v4826 = vmul.f32 %v575, %v4811
        %v4827 = vmul.f32 %v576, %v4815
        %v4828 = vmul.f32 %v577, %v4815
        %v4829 = vmul.f32 %v578, %v4815
        %v4830 = vmul.f32 %v579, %v4819
        %v4831 = vmul.f32 %v580, %v4819
        %v4832 = vmul.f32 %v581, %v4819
        %4845 = vrot.lane.b32.xlu0 %v4821, 80
        %v4846 = vpop.permute.xlu0 %4845
        %4847 = vrot.lane.b32.xlu0 %v4822, 80
        %v4848 = vpop.permute.xlu0 %4847
        %4849 = vrot.lane.b32.xlu0 %v4823, 80
        %v4850 = vpop.permute.xlu0 %4849
        %4851 = vrot.lane.b32.xlu0 %v4824, 80
        %v4852 = vpop.permute.xlu0 %4851
        %4853 = vrot.lane.b32.xlu0 %v4825, 80
        %v4854 = vpop.permute.xlu0 %4853
        %4855 = vrot.lane.b32.xlu0 %v4826, 80
        %v4856 = vpop.permute.xlu0 %4855
        %4857 = vrot.lane.b32.xlu0 %v4827, 80
        %v4858 = vpop.permute.xlu0 %4857
        %4859 = vrot.lane.b32.xlu0 %v4828, 80
        %v4860 = vpop.permute.xlu0 %4859
        %4861 = vrot.lane.b32.xlu0 %v4829, 80
        %v4862 = vpop.permute.xlu0 %4861
        %4863 = vrot.lane.b32.xlu0 %v4830, 80
        %v4864 = vpop.permute.xlu0 %4863
        %4865 = vrot.lane.b32.xlu0 %v4831, 80
        %v4866 = vpop.permute.xlu0 %4865
        %4867 = vrot.lane.b32.xlu0 %v4832, 80
        %v4868 = vpop.permute.xlu0 %4867
        %v4869 = vsel %vm824, %v4846, %v4848
        %v4870 = vsel %vm824, %v4848, %v4850
        %v4871 = vsel %vm824, %v4852, %v4854
        %v4872 = vsel %vm824, %v4854, %v4856
        %v4873 = vsel %vm824, %v4858, %v4860
        %v4874 = vsel %vm824, %v4860, %v4862
        %v4875 = vsel %vm824, %v4864, %v4866
        %v4876 = vsel %vm824, %v4866, %v4868
        %v4889 = vadd.f32 %v4793, %v4869
        %v4890 = vadd.f32 %v4794, %v4870
        %v4891 = vadd.f32 %v4795, %v4850
        %v4892 = vadd.f32 %v4796, %v4871
        %v4893 = vadd.f32 %v4797, %v4872
        %v4894 = vadd.f32 %v4798, %v4856
        %v4895 = vadd.f32 %v4799, %v4873
        %v4896 = vadd.f32 %v4800, %v4874
        %v4897 = vadd.f32 %v4801, %v4862
        %v4898 = vadd.f32 %v4802, %v4875
        %v4899 = vadd.f32 %v4803, %v4876
        %v4900 = vadd.f32 %v4804, %v4868
        %4901 = vset.pattern.permute.xlu0 34
        %4902 = vperm.xlu0 %4901, %v538
        %v4903 = vpop.permute.xlu0 %4902
        %4905 = vset.pattern.permute.xlu0 34
        %4906 = vperm.xlu0 %4905, %v539
        %v4907 = vpop.permute.xlu0 %4906
        %4909 = vset.pattern.permute.xlu0 34
        %4910 = vperm.xlu0 %4909, %v540
        %v4911 = vpop.permute.xlu0 %4910
        %4913 = vset.pattern.permute.xlu0 34
        %4914 = vperm.xlu0 %4913, %v541
        %v4915 = vpop.permute.xlu0 %4914
        %v4917 = vmul.f32 %v570, %v4903
        %v4918 = vmul.f32 %v571, %v4903
        %v4919 = vmul.f32 %v572, %v4903
        %v4920 = vmul.f32 %v573, %v4907
        %v4921 = vmul.f32 %v574, %v4907
        %v4922 = vmul.f32 %v575, %v4907
        %v4923 = vmul.f32 %v576, %v4911
        %v4924 = vmul.f32 %v577, %v4911
        %v4925 = vmul.f32 %v578, %v4911
        %v4926 = vmul.f32 %v579, %v4915
        %v4927 = vmul.f32 %v580, %v4915
        %v4928 = vmul.f32 %v581, %v4915
        %4941 = vrot.lane.b32.xlu0 %v4917, 64
        %v4942 = vpop.permute.xlu0 %4941
        %4943 = vrot.lane.b32.xlu0 %v4918, 64
        %v4944 = vpop.permute.xlu0 %4943
        %4945 = vrot.lane.b32.xlu0 %v4919, 64
        %v4946 = vpop.permute.xlu0 %4945
        %4947 = vrot.lane.b32.xlu0 %v4920, 64
        %v4948 = vpop.permute.xlu0 %4947
        %4949 = vrot.lane.b32.xlu0 %v4921, 64
        %v4950 = vpop.permute.xlu0 %4949
        %4951 = vrot.lane.b32.xlu0 %v4922, 64
        %v4952 = vpop.permute.xlu0 %4951
        %4953 = vrot.lane.b32.xlu0 %v4923, 64
        %v4954 = vpop.permute.xlu0 %4953
        %4955 = vrot.lane.b32.xlu0 %v4924, 64
        %v4956 = vpop.permute.xlu0 %4955
        %4957 = vrot.lane.b32.xlu0 %v4925, 64
        %v4958 = vpop.permute.xlu0 %4957
        %4959 = vrot.lane.b32.xlu0 %v4926, 64
        %v4960 = vpop.permute.xlu0 %4959
        %4961 = vrot.lane.b32.xlu0 %v4927, 64
        %v4962 = vpop.permute.xlu0 %4961
        %4963 = vrot.lane.b32.xlu0 %v4928, 64
        %v4964 = vpop.permute.xlu0 %4963
        %v4965 = vsel %vm913, %v4942, %v4944
        %v4966 = vsel %vm913, %v4944, %v4946
        %v4967 = vsel %vm913, %v4948, %v4950
        %v4968 = vsel %vm913, %v4950, %v4952
        %v4969 = vsel %vm913, %v4954, %v4956
        %v4970 = vsel %vm913, %v4956, %v4958
        %v4971 = vsel %vm913, %v4960, %v4962
        %v4972 = vsel %vm913, %v4962, %v4964
        %v4985 = vadd.f32 %v4889, %v4965
        %v4986 = vadd.f32 %v4890, %v4966
        %v4987 = vadd.f32 %v4891, %v4946
        %v4988 = vadd.f32 %v4892, %v4967
        %v4989 = vadd.f32 %v4893, %v4968
        %v4990 = vadd.f32 %v4894, %v4952
        %v4991 = vadd.f32 %v4895, %v4969
        %v4992 = vadd.f32 %v4896, %v4970
        %v4993 = vadd.f32 %v4897, %v4958
        %v4994 = vadd.f32 %v4898, %v4971
        %v4995 = vadd.f32 %v4899, %v4972
        %v4996 = vadd.f32 %v4900, %v4964
        %4997 = vset.pattern.permute.xlu0 41
        %4998 = vperm.xlu0 %4997, %v538
        %v4999 = vpop.permute.xlu0 %4998
        %5001 = vset.pattern.permute.xlu0 41
        %5002 = vperm.xlu0 %5001, %v539
        %v5003 = vpop.permute.xlu0 %5002
        %5005 = vset.pattern.permute.xlu0 41
        %5006 = vperm.xlu0 %5005, %v540
        %v5007 = vpop.permute.xlu0 %5006
        %5009 = vset.pattern.permute.xlu0 41
        %5010 = vperm.xlu0 %5009, %v541
        %v5011 = vpop.permute.xlu0 %5010
        %v5013 = vmul.f32 %v570, %v4999
        %v5014 = vmul.f32 %v571, %v4999
        %v5015 = vmul.f32 %v572, %v4999
        %v5016 = vmul.f32 %v573, %v5003
        %v5017 = vmul.f32 %v574, %v5003
        %v5018 = vmul.f32 %v575, %v5003
        %v5019 = vmul.f32 %v576, %v5007
        %v5020 = vmul.f32 %v577, %v5007
        %v5021 = vmul.f32 %v578, %v5007
        %v5022 = vmul.f32 %v579, %v5011
        %v5023 = vmul.f32 %v580, %v5011
        %v5024 = vmul.f32 %v581, %v5011
        %5037 = vrot.lane.b32.xlu0 %v5013, 48
        %v5038 = vpop.permute.xlu0 %5037
        %5039 = vrot.lane.b32.xlu0 %v5014, 48
        %v5040 = vpop.permute.xlu0 %5039
        %5041 = vrot.lane.b32.xlu0 %v5015, 48
        %v5042 = vpop.permute.xlu0 %5041
        %5043 = vrot.lane.b32.xlu0 %v5016, 48
        %v5044 = vpop.permute.xlu0 %5043
        %5045 = vrot.lane.b32.xlu0 %v5017, 48
        %v5046 = vpop.permute.xlu0 %5045
        %5047 = vrot.lane.b32.xlu0 %v5018, 48
        %v5048 = vpop.permute.xlu0 %5047
        %5049 = vrot.lane.b32.xlu0 %v5019, 48
        %v5050 = vpop.permute.xlu0 %5049
        %5051 = vrot.lane.b32.xlu0 %v5020, 48
        %v5052 = vpop.permute.xlu0 %5051
        %5053 = vrot.lane.b32.xlu0 %v5021, 48
        %v5054 = vpop.permute.xlu0 %5053
        %5055 = vrot.lane.b32.xlu0 %v5022, 48
        %v5056 = vpop.permute.xlu0 %5055
        %5057 = vrot.lane.b32.xlu0 %v5023, 48
        %v5058 = vpop.permute.xlu0 %5057
        %5059 = vrot.lane.b32.xlu0 %v5024, 48
        %v5060 = vpop.permute.xlu0 %5059
        %v5061 = vsel %vm1002, %v5038, %v5040
        %v5062 = vsel %vm1002, %v5040, %v5042
        %v5063 = vsel %vm1002, %v5044, %v5046
        %v5064 = vsel %vm1002, %v5046, %v5048
        %v5065 = vsel %vm1002, %v5050, %v5052
        %v5066 = vsel %vm1002, %v5052, %v5054
        %v5067 = vsel %vm1002, %v5056, %v5058
        %v5068 = vsel %vm1002, %v5058, %v5060
        %v5081 = vadd.f32 %v4985, %v5061
        %v5082 = vadd.f32 %v4986, %v5062
        %v5083 = vadd.f32 %v4987, %v5042
        %v5084 = vadd.f32 %v4988, %v5063
        %v5085 = vadd.f32 %v4989, %v5064
        %v5086 = vadd.f32 %v4990, %v5048
        %v5087 = vadd.f32 %v4991, %v5065
        %v5088 = vadd.f32 %v4992, %v5066
        %v5089 = vadd.f32 %v4993, %v5054
        %v5090 = vadd.f32 %v4994, %v5067
        %v5091 = vadd.f32 %v4995, %v5068
        %v5092 = vadd.f32 %v4996, %v5060
        %5093 = vset.pattern.permute.xlu0 48
        %5094 = vperm.xlu0 %5093, %v538
        %v5095 = vpop.permute.xlu0 %5094
        %5097 = vset.pattern.permute.xlu0 48
        %5098 = vperm.xlu0 %5097, %v539
        %v5099 = vpop.permute.xlu0 %5098
        %5101 = vset.pattern.permute.xlu0 48
        %5102 = vperm.xlu0 %5101, %v540
        %v5103 = vpop.permute.xlu0 %5102
        %5105 = vset.pattern.permute.xlu0 48
        %5106 = vperm.xlu0 %5105, %v541
        %v5107 = vpop.permute.xlu0 %5106
        %v5109 = vmul.f32 %v570, %v5095
        %v5110 = vmul.f32 %v571, %v5095
        %v5111 = vmul.f32 %v572, %v5095
        %v5112 = vmul.f32 %v573, %v5099
        %v5113 = vmul.f32 %v574, %v5099
        %v5114 = vmul.f32 %v575, %v5099
        %v5115 = vmul.f32 %v576, %v5103
        %v5116 = vmul.f32 %v577, %v5103
        %v5117 = vmul.f32 %v578, %v5103
        %v5118 = vmul.f32 %v579, %v5107
        %v5119 = vmul.f32 %v580, %v5107
        %v5120 = vmul.f32 %v581, %v5107
        %5133 = vrot.lane.b32.xlu0 %v5109, 32
        %v5134 = vpop.permute.xlu0 %5133
        %5135 = vrot.lane.b32.xlu0 %v5110, 32
        %v5136 = vpop.permute.xlu0 %5135
        %5137 = vrot.lane.b32.xlu0 %v5111, 32
        %v5138 = vpop.permute.xlu0 %5137
        %5139 = vrot.lane.b32.xlu0 %v5112, 32
        %v5140 = vpop.permute.xlu0 %5139
        %5141 = vrot.lane.b32.xlu0 %v5113, 32
        %v5142 = vpop.permute.xlu0 %5141
        %5143 = vrot.lane.b32.xlu0 %v5114, 32
        %v5144 = vpop.permute.xlu0 %5143
        %5145 = vrot.lane.b32.xlu0 %v5115, 32
        %v5146 = vpop.permute.xlu0 %5145
        %5147 = vrot.lane.b32.xlu0 %v5116, 32
        %v5148 = vpop.permute.xlu0 %5147
        %5149 = vrot.lane.b32.xlu0 %v5117, 32
        %v5150 = vpop.permute.xlu0 %5149
        %5151 = vrot.lane.b32.xlu0 %v5118, 32
        %v5152 = vpop.permute.xlu0 %5151
        %5153 = vrot.lane.b32.xlu0 %v5119, 32
        %v5154 = vpop.permute.xlu0 %5153
        %5155 = vrot.lane.b32.xlu0 %v5120, 32
        %v5156 = vpop.permute.xlu0 %5155
        %v5157 = vsel %vm1091, %v5134, %v5136
        %v5158 = vsel %vm1091, %v5136, %v5138
        %v5159 = vsel %vm1091, %v5140, %v5142
        %v5160 = vsel %vm1091, %v5142, %v5144
        %v5161 = vsel %vm1091, %v5146, %v5148
        %v5162 = vsel %vm1091, %v5148, %v5150
        %v5163 = vsel %vm1091, %v5152, %v5154
        %v5164 = vsel %vm1091, %v5154, %v5156
        %v5177 = vadd.f32 %v5081, %v5157
        %v5178 = vadd.f32 %v5082, %v5158
        %v5179 = vadd.f32 %v5083, %v5138
        %v5180 = vadd.f32 %v5084, %v5159
        %v5181 = vadd.f32 %v5085, %v5160
        %v5182 = vadd.f32 %v5086, %v5144
        %v5183 = vadd.f32 %v5087, %v5161
        %v5184 = vadd.f32 %v5088, %v5162
        %v5185 = vadd.f32 %v5089, %v5150
        %v5186 = vadd.f32 %v5090, %v5163
        %v5187 = vadd.f32 %v5091, %v5164
        %v5188 = vadd.f32 %v5092, %v5156
        %s5189 = scalar_lea.vmem %s5, 6
        %v5190 = vld [vmem:[%s5189] ss:$8 sm:$0x3]
        %v5192 = vperm.slane %v5190, 0
        %v5193 = vperm.slane %v5190, 1
        %5194 = vrot.lane.b32.xlu0 %v5192, 6
        %v5195 = vpop.permute.xlu0 %5194
        %5196 = vrot.lane.b32.xlu0 %v5193, 6
        %v5197 = vpop.permute.xlu0 %5196
        %vm5198 = vcmask 48128
        %v5199 = vsel %vm5198, %v5195, %v5197
        %v5203 = vmul.f32 %v5177, %v5195
        %v5204 = vmul.f32 %v5178, %v5199
        %v5205 = vmul.f32 %v5179, %v5197
        %v5206 = vmul.f32 %v5180, %v5195
        %v5207 = vmul.f32 %v5181, %v5199
        %v5208 = vmul.f32 %v5182, %v5197
        %v5209 = vmul.f32 %v5183, %v5195
        %v5210 = vmul.f32 %v5184, %v5199
        %v5211 = vmul.f32 %v5185, %v5197
        %v5212 = vmul.f32 %v5186, %v5195
        %v5213 = vmul.f32 %v5187, %v5199
        %v5214 = vmul.f32 %v5188, %v5197
        %5227 = vrot.lane.b32.xlu0 %v5203, 122
        %v5228 = vpop.permute.xlu0 %5227
        %5229 = vrot.lane.b32.xlu0 %v5204, 122
        %v5230 = vpop.permute.xlu0 %5229
        %5231 = vrot.lane.b32.xlu0 %v5205, 122
        %v5232 = vpop.permute.xlu0 %5231
        %5233 = vrot.lane.b32.xlu0 %v5206, 122
        %v5234 = vpop.permute.xlu0 %5233
        %5235 = vrot.lane.b32.xlu0 %v5207, 122
        %v5236 = vpop.permute.xlu0 %5235
        %5237 = vrot.lane.b32.xlu0 %v5208, 122
        %v5238 = vpop.permute.xlu0 %5237
        %5239 = vrot.lane.b32.xlu0 %v5209, 122
        %v5240 = vpop.permute.xlu0 %5239
        %5241 = vrot.lane.b32.xlu0 %v5210, 122
        %v5242 = vpop.permute.xlu0 %5241
        %5243 = vrot.lane.b32.xlu0 %v5211, 122
        %v5244 = vpop.permute.xlu0 %5243
        %5245 = vrot.lane.b32.xlu0 %v5212, 122
        %v5246 = vpop.permute.xlu0 %5245
        %5247 = vrot.lane.b32.xlu0 %v5213, 122
        %v5248 = vpop.permute.xlu0 %5247
        %5249 = vrot.lane.b32.xlu0 %v5214, 122
        %v5250 = vpop.permute.xlu0 %5249
        %vm5251 = vcmask 998400
        %v5252 = vsel %vm5251, %v5228, %v5230
        %v5253 = vsel %vm5251, %v5230, %v5232
        %v5254 = vsel %vm5251, %v5234, %v5236
        %v5255 = vsel %vm5251, %v5236, %v5238
        %v5256 = vsel %vm5251, %v5240, %v5242
        %v5257 = vsel %vm5251, %v5242, %v5244
        %v5258 = vsel %vm5251, %v5246, %v5248
        %v5259 = vsel %vm5251, %v5248, %v5250
        %v5268 = vadd.f32 %v4577, %v5252
        %v5269 = vadd.f32 %v4578, %v5253
        %v5270 = vadd.f32 %v4579, %v5254
        %v5271 = vadd.f32 %v4580, %v5255
        %v5272 = vadd.f32 %v4581, %v5256
        %v5273 = vadd.f32 %v4582, %v5257
        %v5274 = vadd.f32 %v4583, %v5258
        %v5275 = vadd.f32 %v4584, %v5259
        %v5276 = vld [vmem:[%s4] sm:$0xff]
        %v5277 = vld [vmem:[%s4 + $0x8] sm:$0xff]
        %v5278 = vld [vmem:[%s4 + $0x10] sm:$0xff]
        %v5279 = vld [vmem:[%s4 + $0x18] sm:$0xff]
        %5281 = vset.pattern.permute.xlu0 0
        %5282 = vperm.xlu0 %5281, %v5276
        %v5283 = vpop.permute.xlu0 %5282
        %5286 = vset.pattern.permute.xlu0 0
        %5287 = vperm.xlu0 %5286, %v5277
        %v5288 = vpop.permute.xlu0 %5287
        %5291 = vset.pattern.permute.xlu0 0
        %5292 = vperm.xlu0 %5291, %v5278
        %v5293 = vpop.permute.xlu0 %5292
        %5296 = vset.pattern.permute.xlu0 0
        %5297 = vperm.xlu0 %5296, %v5279
        %v5298 = vpop.permute.xlu0 %5297
        %v5300 = vadd.f32 %v5268, %v5283
        %v5301 = vadd.f32 %v5269, %v5283
        %v5302 = vadd.f32 %v5270, %v5288
        %v5303 = vadd.f32 %v5271, %v5288
        %v5304 = vadd.f32 %v5272, %v5293
        %v5305 = vadd.f32 %v5273, %v5293
        %v5306 = vadd.f32 %v5274, %v5298
        %v5307 = vadd.f32 %v5275, %v5298
        %v5308 = vmul.f32 %v428, %v5300
        %v5309 = vmul.f32 %v457, %v5301
        %v5310 = vmul.f32 %v430, %v5302
        %v5311 = vmul.f32 %v459, %v5303
        %v5312 = vmul.f32 %v433, %v5304
        %v5313 = vmul.f32 %v462, %v5305
        %v5314 = vmul.f32 %v435, %v5306
        %v5315 = vmul.f32 %v464, %v5307
        %v5316 = vpack.c.bf16 %v5310, %v5308
        %v5317 = vpack.c.bf16 %v5311, %v5309
        %v5318 = vpack.c.bf16 %v5314, %v5312
        %v5319 = vpack.c.bf16 %v5315, %v5313
        %v5320 = vld [vmem:[%s6] sm:$0xf]
        %v5321 = vld [vmem:[%s6 + $0x4] sm:$0xf]
        %v5322 = vld [vmem:[%s6 + $0x8] sm:$0xf]
        %v5323 = vld [vmem:[%s6 + $0xc] sm:$0xf]
        %v5324 = vld [vmem:[%s7] sm:$0xff]
        %v5325 = vld [vmem:[%s7 + $0x8] sm:$0xff]
        %v5326 = vld [vmem:[%s7 + $0x10] sm:$0xff]
        %v5327 = vld [vmem:[%s7 + $0x18] sm:$0xff]
        %5329 = vset.pattern.permute.xlu0 0
        %5330 = vperm.xlu0 %5329, %v5324
        %v5331 = vpop.permute.xlu0 %5330
        %5334 = vset.pattern.permute.xlu0 0
        %5335 = vperm.xlu0 %5334, %v5325
        %v5336 = vpop.permute.xlu0 %5335
        %5339 = vset.pattern.permute.xlu0 0
        %5340 = vperm.xlu0 %5339, %v5326
        %v5341 = vpop.permute.xlu0 %5340
        %5344 = vset.pattern.permute.xlu0 0
        %5345 = vperm.xlu0 %5344, %v5327
        %v5346 = vpop.permute.xlu0 %5345
        %v5352 = vunpack.c.l.b16 %v5320
        %v5353 = vunpack.c.l.b16 %v5321
        %v5354 = vunpack.c.l.b16 %v5322
        %v5355 = vunpack.c.l.b16 %v5323
        %v5356 = vpack.c.b16 %v5353, %v5352
        %v5357 = vpack.c.b16 %v5355, %v5354
        %v5359 = vsel %vm1091, %v5356, 0
        %v5362 = vsel %vm1091, %v5357, 0
        %5364 = vmatpush.bf16.msra.mxu0 0
        %5365 = vmatpush.bf16.msra.mxu0 0
        %5366 = vmatpush.bf16.msra.mxu0 0
        %5367 = vmatpush.bf16.msra.mxu0 0
        %5368 = vmatpush.bf16.msra.mxu0 0
        %5369 = vmatpush.bf16.msra.mxu0 0
        %5370 = vmatpush.bf16.msra.mxu0 %v5318
        %5371 = vmatpush.bf16.msra.mxu0 %v5316
        %5372 = vmatmul.bf16.gmra.mxu0 %v5359
        %v5373 = vpop.f32.mrf.mxu0
        %v5374 = vadd.f32 %v5331, %v5373
        %v5375 = vpop.f32.mrf.mxu0
        %v5376 = vadd.f32 %v5336, %v5375
        %5377 = vmatmul.bf16.gmra.mxu0 %v5362
        %v5378 = vpop.f32.mrf.mxu0
        %v5379 = vadd.f32 %v5341, %v5378
        %v5380 = vpop.f32.mrf.mxu0
        %v5381 = vadd.f32 %v5346, %v5380
        %5382 = vdwg.mxu0
        %5383 = vmatpush.bf16.msra.mxu0 0
        %5384 = vmatpush.bf16.msra.mxu0 0
        %5385 = vmatpush.bf16.msra.mxu0 0
        %5386 = vmatpush.bf16.msra.mxu0 0
        %5387 = vmatpush.bf16.msra.mxu0 0
        %5388 = vmatpush.bf16.msra.mxu0 0
        %5389 = vmatpush.bf16.msra.mxu0 %v5319
        %5390 = vmatpush.bf16.msra.mxu0 %v5317
        %5391 = vmatmul.bf16.gmra.mxu0 %v5359
        %v5392 = vpop.f32.mrf.mxu0
        %v5393 = vadd.f32 %v5331, %v5392
        %v5394 = vpop.f32.mrf.mxu0
        %v5395 = vadd.f32 %v5336, %v5394
        %5396 = vmatmul.bf16.gmra.mxu0 %v5362
        %v5397 = vpop.f32.mrf.mxu0
        %v5398 = vadd.f32 %v5341, %v5397
        %v5399 = vpop.f32.mrf.mxu0
        %v5400 = vadd.f32 %v5346, %v5399
        %5401 = vdwg.mxu0
        %5402 = vst [vmem:[%s298] sm:$0xff] %v5374
        %5403 = vst [vmem:[%s298 + $0x8] sm:$0xff] %v5393
        %5404 = vst [vmem:[%s298 + $0x10] sm:$0xff] %v5376
        %5405 = vst [vmem:[%s298 + $0x18] sm:$0xff] %v5395
        %5406 = vst [vmem:[%s298 + $0x20] sm:$0xff] %v5379
        %5407 = vst [vmem:[%s298 + $0x28] sm:$0xff] %v5398
        %5408 = vst [vmem:[%s298 + $0x30] sm:$0xff] %v5381
        %5409 = vst [vmem:[%s298 + $0x38] sm:$0xff] %v5400
        %s5410 = sand.u32 %s203, 1
        %s5411 = scalar_lea.sflag [#allocation4], %s5410
        %s5412 = sand.u32 %s203, 1
        %s5413 = smul.addr %s5412, 64
        %s5414 = scalar_lea.vmem [#allocation3], %s5413
        // Predicated region
        $region53: #{tpu_custom_call.1} parent=51 // pred_check
          %p5415 = pneg %p213
        $region54: #{tpu_custom_call.1} parent=51 // pred_check_branch
          %5417 = sbr.rel (%p5415) target = $region56
        $region55: #{tpu_custom_call.1} parent=51 // pred_region
          %5419 = vsyncadd %s5411, 0
          %s5420 = smul.addr %s22, 8
          %s5421 = smul.addr %s5420, 8
          %s5422 = scalar_lea.hbm %s8, %s5421
          %s5423 = sshll.u32 %s5414, 4
          %s5424 = int_to_ptr.vmem [resolvable:$true] %s5423
          %s5425 = sshll.u32 %s5422, 4
          %s5426 = int_to_ptr.hbm [resolvable:$true] %s5425
          %5431 = dma.vmem_to_hbm [thread:$0]  %s5424, 1024, %s5426, %s5411, 256, 256, 16
        $region56: #{tpu_custom_call.1} parent=51 // pred_fallthru
          _
      $region52: #{tpu_custom_call.1} parent=5 // pred_fallthru
        _
      %p5432 = scmp.le.s32.totalorder 2, %s17
      // Predicated region
      $region57: #{tpu_custom_call.1} parent=5 // pred_check
        %p5433 = pneg %p5432
      $region58: #{tpu_custom_call.1} parent=5 // pred_check_branch
        %5435 = sbr.rel (%p5433) target = $region60
      $region59: #{tpu_custom_call.1} parent=5 // pred_region
        %s5436 = ssub.s32 %s17, 2
        // Predicated region
        $region61: #{tpu_custom_call.1} parent=59 // pred_check
          %p5437 = pneg %p219
        $region62: #{tpu_custom_call.1} parent=59 // pred_check_branch
          %5439 = sbr.rel (%p5437) target = $region64
        $region63: #{tpu_custom_call.1} parent=59 // pred_region
          %s5440 = sand.u32 %s204, 1
          %s5441 = scalar_lea.sflag [#allocation4], %s5440
          %s5442 = sand.u32 %s204, 1
          %s5443 = smul.addr %s5442, 64
          %s5444 = scalar_lea.vmem [#allocation3], %s5443
          %5446 = dma.done %s5441, 1024
        $region64: #{tpu_custom_call.1} parent=59 // pred_fallthru
          _
      $region60: #{tpu_custom_call.1} parent=5 // pred_fallthru
        _
    $region6: #{tpu_custom_call.1} parent=1 // loop_footer
      %s21 = sadd.s32 1, %s17
    $region7: #{tpu_custom_call.1} parent=1 // loop_footer_branch
      %16 = sbr.rel target = $region3
    $region8: #{tpu_custom_call.1} parent=1 // loop_exit
      _
    %5447 = vsyncpa [#allocation4], 1
    %s5448 = scalar_lea.sflag [#allocation4], 1
    %5449 = vsyncpa %s5448, 1

</llo_original>
